<compile_context>
chip_gen: v6e
topology: v6e:2x2x1
jax: 0.10.0
libtpu: 0.0.40
codegen_flags: <defaults>
</compile_context>

<pallas_src>
import math
from functools import partial

import numpy as np
import jax
import jax.numpy as jnp
from jax.experimental import pallas as pl
from jax.experimental.pallas import tpu as pltpu  # noqa: F401  (imported per template)


# ----------------------------- configuration ---------------------------------
class Args:
    feature_dims = (32, 16, 24)          # (orig_d_l, orig_d_a, orig_d_v)
    fus_d_l, fus_d_a, fus_d_v = 16, 8, 8
    fus_conv1d_kernel_l = 3
    fus_conv1d_kernel_a = 3
    fus_conv1d_kernel_v = 3
    fus_nheads = 4
    fus_layers = 1
    clf_hidden_dim = 16
    disc_hidden_dim1 = 16
    disc_hidden_dim2 = 8
    rec_hidden_dim1 = 24
    rec_hidden_dim2 = 16
    vocab_size = 32
    fusion_dim = fus_d_l + fus_d_a + fus_d_v   # 32


# ----------------------------- host-side constants ----------------------------
def _sinusoidal_pos_emb_np(S, D):
    half = D // 2
    freqs = np.exp(np.arange(half, dtype=np.float64) * (-math.log(10000.0) / max(half - 1, 1)))
    ang = np.arange(S, dtype=np.float64)[:, None] * freqs[None, :]
    return np.concatenate([np.sin(ang), np.cos(ang)], axis=-1).astype(np.float32)   # (S, D)


def _head_block_matrices_np(D, H):
    """Block indicator (D, H): [c, h] = 1 iff lane c belongs to head h (and its transpose)."""
    Dh = D // H
    blk = np.zeros((D, H), np.float32)
    for h in range(H):
        blk[h * Dh:(h + 1) * Dh, h] = 1.0
    return blk, np.ascontiguousarray(blk.T)


def _pack_slab(entries, lanes=128):
    """Pack named 2-D f32 arrays into one (rows, lanes) slab; row offsets 8-aligned."""
    layout, off = {}, 0
    norm = []
    for name, arr in entries:
        a = np.asarray(arr, np.float32)
        if a.ndim == 1:
            a = a[None, :]
        assert a.ndim == 2 and a.shape[1] <= lanes, (name, a.shape)
        norm.append((name, a))
        layout[name] = (off, a.shape[0], a.shape[1])
        off += ((a.shape[0] + 7) // 8) * 8
    slab = np.zeros((max(off, 8), lanes), np.float32)
    for name, a in norm:
        o, r, c = layout[name]
        slab[o:o + r, :c] = a
    return slab, layout


# ----------------------------- the fused kernel --------------------------------
def _fused_forward_kernel(x_ref, p_ref, fus_ref, rec_ref, disc_ref, clf_ref,
                          *, B, S, D, H, V, dl, da, dv, layout):
    f32 = jnp.float32
    R = B * S

    def P(name):
        off, r, c = layout[name]
        return p_ref[off:off + r, :c]          # static slice -> cheap VMEM view load

    def dot(a, b):
        return jnp.dot(a, b, preferred_element_type=f32)

    xin = x_ref[...]                            # (R, da+dv+1): [audio | video | ids]
    x_av = xin[:, :da + dv]
    ids = xin[:, da + dv:da + dv + 1].astype(jnp.int32)

    # ---- token embedding via one-hot matmul ----
    # TODO(synk): BertTextEncoder (pretrained BERT) has no in-script Pallas equivalent;
    # replaced with a deterministic token-embedding lookup producing (B*S, orig_d_l).
    vocab_iota = jax.lax.broadcasted_iota(jnp.int32, (R, V), 1)
    onehot = (ids == vocab_iota).astype(f32)                      # (R, V)
    x_l = dot(onehot, P("tok_emb"))                               # (R, dl)

    # ---- fused 3-modality Conv1d (K=3, same padding, no bias) ----
    # Neighbour rows come from boundary-masked shift matrices (MXU only, no concats
    # of shifted copies); sqrt(D) embed-scale is already folded into the conv weights.
    x_cat = jnp.concatenate([x_l, x_av], axis=-1)                 # (R, Ct)
    prev = dot(P("sh_prev"), x_cat)                               # row r -> x[r-1] (0 at seq start)
    nxt = dot(P("sh_next"), x_cat)                                # row r -> x[r+1] (0 at seq end)
    proj = dot(prev, P("conv_w0")) + dot(x_cat, P("conv_w1")) + dot(nxt, P("conv_w2"))

    # ---- MulT TransformerEncoder front-end: scaled embedding + sinusoidal pos-emb ----
    # TODO(synk): embed/attn/res/relu dropouts are identity at inference; fus_attn_mask assumed False.
    x = proj + P("pos")                                           # (R, D)

    ln = P("ln")                                                  # (6, D): [g0,b0,g1,b1,g2,b2]

    def layer_norm(v, idx, eps=1e-5):
        g = ln[2 * idx:2 * idx + 1, :]
        be = ln[2 * idx + 1:2 * idx + 2, :]
        mu = jnp.mean(v, axis=-1, keepdims=True)
        var = jnp.mean((v - mu) ** 2, axis=-1, keepdims=True)
        return (v - mu) * jax.lax.rsqrt(var + eps) * g + be

    # ---- multi-head self-attention (pre-LN); queries at position 0 only ----
    # Valid because fus_layers == 1 and only trans_seq[0] is consumed downstream.
    # Batch-vectorized with selector matmuls (no per-batch python loop).
    h = layer_norm(x, 0)
    kv = dot(h, P("wkv")) + P("bkv")                              # (R, 2D)
    k_all = kv[:, :D]
    v_all = kv[:, D:]

    sel_q, sel_sum, sel_exp = P("sel_q"), P("sel_sum"), P("sel_exp")
    scale = 1.0 / math.sqrt(D // H)
    q_b = (dot(dot(sel_q, h), P("wq")) + P("bq")) * scale         # (B, D) queries at pos 0
    q_full = dot(sel_exp, q_b)                                    # (R, D) broadcast to segment rows

    scores = dot(k_all * q_full, P("hblk"))                       # (R, H) per-head dot products
    m = jnp.max(scores, axis=0, keepdims=True)                    # per-head constant shift
    pattn = jnp.exp(scores - m)
    denom = dot(sel_exp, dot(sel_sum, pattn))                     # per-segment sums, broadcast back
    pattn = pattn / denom                                         # exact divide (numerical parity)
    p_lane = dot(pattn, P("hblkt"))                               # (R, D): prob broadcast per head
    attn = dot(sel_sum, p_lane * v_all)                           # (B, D)

    x0 = dot(sel_q, x)                                            # (B, D) residual at position 0
    x0 = x0 + dot(attn, P("wo")) + P("bo")

    # ---- position-wise FFN (pre-LN) + final LN on the single consumed row per batch ----
    f = jnp.maximum(dot(layer_norm(x0, 1), P("w1")) + P("b1"), 0.0)
    x0 = x0 + dot(f, P("w2")) + P("b2")
    fusion = layer_norm(x0, 2)                                    # (B, D)  == trans_seq[0]

    # ---- heads ----
    # TODO(synk): BatchNorm1d uses training-mode batch statistics (PyTorch default for a
    # freshly-constructed module); eval mode would use running stats instead.
    def batchnorm(z, name, eps=1e-5):
        bn = P(name)
        g, be = bn[0:1, :], bn[1:2, :]
        mu = jnp.mean(z, axis=0, keepdims=True)
        var = jnp.mean((z - mu) ** 2, axis=0, keepdims=True)
        return (z - mu) * jax.lax.rsqrt(var + eps) * g + be

    def leaky(v):
        return jnp.where(v > 0, v, 0.2 * v)

    # classifier_v1    TODO(synk): nn.Dropout is identity at inference time; omitted.
    hc = jnp.maximum(dot(batchnorm(fusion, "cbn"), P("cw1")) + P("cb1"), 0.0)
    clf = jax.nn.sigmoid(dot(hc, P("cw2")) + P("cb2")) * 6.0 - 3.0   # output_range / output_shift

    # disc_two_class
    hd = leaky(dot(batchnorm(fusion, "dbn"), P("dw1")) + P("db1"))
    hd = jnp.tanh(dot(hd, P("dw2")) + P("db2"))
    disc = jax.nn.sigmoid(dot(hd, P("dw3")) + P("db3"))

    # decoder_v1       TODO(synk): nn.Dropout layers are identity at inference time; omitted.
    hr = leaky(dot(fusion, P("rw1")) + P("rb1"))
    hr = leaky(batchnorm(dot(hr, P("rw2")) + P("rb2"), "rbn"))
    rec = jnp.tanh(dot(hr, P("rw3")) + P("rb3"))

    fus_ref[...] = fusion
    rec_ref[...] = rec
    disc_ref[...] = disc
    clf_ref[...] = clf


# ----------------------------- v2 composition (wrapper) ------------------------
def v2_forward(param_slab, layout, text_x, audio_x, video_x, args):
    # TODO(synk): the original v2.forward body is `pass`; the natural composition of
    # its sub-modules is returned instead.
    assert args.fus_layers == 1           # row-0-only attention shortcut requires this
    B, S, da = audio_x.shape
    dv = video_x.shape[-1]
    dl = args.feature_dims[0]
    D = args.fusion_dim
    H = args.fus_nheads
    V = args.vocab_size
    assert D % H == 0

    aud = audio_x.reshape(B * S, da).astype(jnp.float32)
    vid = video_x.reshape(B * S, dv).astype(jnp.float32)
    ids = text_x[:, 0, :].reshape(B * S, 1).astype(jnp.float32)      # bert input_ids (exact in f32)
    xin = jnp.concatenate([aud, vid, ids], axis=-1)                  # (B*S, da+dv+1)

    out_shapes = (
        jax.ShapeDtypeStruct((B, D), jnp.float32),   # fusion_feature
        jax.ShapeDtypeStruct((B, D), jnp.float32),   # reconstruction
        jax.ShapeDtypeStruct((B, 1), jnp.float32),   # discriminator
        jax.ShapeDtypeStruct((B, 1), jnp.float32),   # classifier
    )
    fusion, rec, disc, clf = pl.pallas_call(
        partial(_fused_forward_kernel, B=B, S=S, D=D, H=H, V=V,
                dl=dl, da=da, dv=dv, layout=layout),
        out_shape=out_shapes,
    )(xin, param_slab)
    return fusion, rec, disc, clf


# ----------------------------- parameter init ----------------------------------
def _linear_init(key, fan_in, fan_out):
    k1, k2 = jax.random.split(key)
    bound = 1.0 / math.sqrt(fan_in)
    w = jax.random.uniform(k1, (fan_in, fan_out), jnp.float32, -bound, bound)
    b = jax.random.uniform(k2, (1, fan_out), jnp.float32, -bound, bound)
    return w, b


def init_params(key, args):
    keys = iter(jax.random.split(key, 24))
    D = args.fusion_dim
    dl, da, dv = args.feature_dims
    K = args.fus_conv1d_kernel_l
    assert args.fus_conv1d_kernel_a == K and args.fus_conv1d_kernel_v == K and K == 3

    p = {}
    p["tok_emb"] = 0.02 * jax.random.normal(next(keys), (args.vocab_size, dl), jnp.float32)

    def conv_taps(k, cin, cout):
        bound = 1.0 / math.sqrt(cin * K)
        return jax.random.uniform(k, (K, cin, cout), jnp.float32, -bound, bound)

    p["conv_wl"] = conv_taps(next(keys), dl, args.fus_d_l)
    p["conv_wa"] = conv_taps(next(keys), da, args.fus_d_a)
    p["conv_wv"] = conv_taps(next(keys), dv, args.fus_d_v)

    bound = 1.0 / math.sqrt(D)
    trans = {
        "wqkv": jax.random.uniform(next(keys), (D, 3 * D), jnp.float32, -bound, bound),
        "bqkv": jnp.zeros((1, 3 * D), jnp.float32),
        "wo": jax.random.uniform(next(keys), (D, D), jnp.float32, -bound, bound),
        "bo": jnp.zeros((1, D), jnp.float32),
        "ln": jnp.stack([jnp.stack([jnp.ones((D,), jnp.float32),
                                    jnp.zeros((D,), jnp.float32)])] * 3),   # (3, 2, D)
    }
    trans["w1"], trans["b1"] = _linear_init(next(keys), D, 4 * D)
    trans["w2"], trans["b2"] = _linear_init(next(keys), 4 * D, D)
    p["trans"] = trans

    clf = {"bn": jnp.stack([jnp.ones((D,), jnp.float32), jnp.zeros((D,), jnp.float32)])}
    clf["w1"], clf["b1"] = _linear_init(next(keys), D, args.clf_hidden_dim)
    clf["w2"], clf["b2"] = _linear_init(next(keys), args.clf_hidden_dim, 1)
    p["clf"] = clf

    disc = {"bn": jnp.stack([jnp.ones((D,), jnp.float32), jnp.zeros((D,), jnp.float32)])}
    disc["w1"], disc["b1"] = _linear_init(next(keys), D, args.disc_hidden_dim1)
    disc["w2"], disc["b2"] = _linear_init(next(keys), args.disc_hidden_dim1, args.disc_hidden_dim2)
    disc["w3"], disc["b3"] = _linear_init(next(keys), args.disc_hidden_dim2, 1)
    p["disc"] = disc

    rec = {"bn": jnp.stack([jnp.ones((args.rec_hidden_dim2,), jnp.float32),
                            jnp.zeros((args.rec_hidden_dim2,), jnp.float32)])}
    rec["w1"], rec["b1"] = _linear_init(next(keys), D, args.rec_hidden_dim1)
    rec["w2"], rec["b2"] = _linear_init(next(keys), args.rec_hidden_dim1, args.rec_hidden_dim2)
    rec["w3"], rec["b3"] = _linear_init(next(keys), args.rec_hidden_dim2, D)
    p["rec"] = rec
    return p


def build_param_slab(params, args, B, S):
    """One-time host-side packing of all weights + kernel constants into one f32 slab."""
    D = args.fusion_dim
    H = args.fus_nheads
    dl, da, dv = args.feature_dims
    R = B * S
    Ct = dl + da + dv
    g = lambda a: np.asarray(a, np.float32)

    pos = np.tile(_sinusoidal_pos_emb_np(S, D), (B, 1))                 # (R, D)

    sel_q = np.zeros((B, R), np.float32)       # pick row b*S of each batch
    sel_sum = np.zeros((B, R), np.float32)     # sum over each batch's S rows
    sel_exp = np.zeros((R, B), np.float32)     # broadcast per-batch row to its S rows
    sh_prev = np.zeros((R, R), np.float32)     # row r -> row r-1 (0 at sequence start)
    sh_next = np.zeros((R, R), np.float32)     # row r -> row r+1 (0 at sequence end)
    for b in range(B):
        sel_q[b, b * S] = 1.0
        sel_sum[b, b * S:(b + 1) * S] = 1.0
        sel_exp[b * S:(b + 1) * S, b] = 1.0
    for r in range(R):
        if r % S != 0:
            sh_prev[r, r - 1] = 1.0
        if r % S != S - 1:
            sh_next[r, r + 1] = 1.0

    hblk, hblkt = _head_block_matrices_np(D, H)

    # Block-structured per-tap conv weights (Ct, D), modalities [l|a|v] on rows and cols,
    # with the transformer embed scale sqrt(D) folded in.
    wl, wa, wv = g(params["conv_wl"]), g(params["conv_wa"]), g(params["conv_wv"])
    o_l, o_a = args.fus_d_l, args.fus_d_l + args.fus_d_a
    conv = np.zeros((3, Ct, D), np.float32)
    for k in range(3):
        conv[k, :dl, :o_l] = wl[k]
        conv[k, dl:dl + da, o_l:o_a] = wa[k]
        conv[k, dl + da:, o_a:] = wv[k]
    conv *= math.sqrt(D)

    t, c, d, r_ = params["trans"], params["clf"], params["disc"], params["rec"]
    wqkv, bqkv = g(t["wqkv"]), g(t["bqkv"])

    entries = [
        ("pos", pos), ("sel_q", sel_q), ("sel_sum", sel_sum), ("sel_exp", sel_exp),
        ("sh_prev", sh_prev), ("sh_next", sh_next),
        ("hblk", hblk), ("hblkt", hblkt),
        ("tok_emb", g(params["tok_emb"])),
        ("conv_w0", conv[0]), ("conv_w1", conv[1]), ("conv_w2", conv[2]),
        ("wq", wqkv[:, :D]), ("bq", bqkv[:, :D]),
        ("wkv", wqkv[:, D:]), ("bkv", bqkv[:, D:]),
        ("wo", g(t["wo"])), ("bo", g(t["bo"])),
        ("ln", g(t["ln"]).reshape(6, D)),
        ("w1", g(t["w1"])), ("b1", g(t["b1"])),
        ("w2", g(t["w2"])), ("b2", g(t["b2"])),
        ("cbn", g(c["bn"])), ("cw1", g(c["w1"])), ("cb1", g(c["b1"])),
        ("cw2", g(c["w2"])), ("cb2", g(c["b2"])),
        ("dbn", g(d["bn"])), ("dw1", g(d["w1"])), ("db1", g(d["b1"])),
        ("dw2", g(d["w2"])), ("db2", g(d["b2"])), ("dw3", g(d["w3"])), ("db3", g(d["b3"])),
        ("rw1", g(r_["w1"])), ("rb1", g(r_["b1"])), ("rw2", g(r_["w2"])), ("rb2", g(r_["b2"])),
        ("rbn", g(r_["bn"])), ("rw3", g(r_["w3"])), ("rb3", g(r_["b3"])),
    ]
    slab, layout = _pack_slab(entries)
    return jnp.asarray(slab), layout


# ----------------------------- main --------------------------------------------
if __name__ == "__main__":
    args = Args()
    B, S = 2, 8

    key = jax.random.PRNGKey(0)
    k_param, k_txt, k_aud, k_vid = jax.random.split(key, 4)
    params = init_params(k_param, args)
    param_slab, layout = build_param_slab(params, args, B, S)

    text_x = jax.random.randint(k_txt, (B, 3, S), 0, args.vocab_size, dtype=jnp.int32)
    audio_x = jax.random.normal(k_aud, (B, S, args.feature_dims[1]), jnp.float32)
    video_x = jax.random.normal(k_vid, (B, S, args.feature_dims[2]), jnp.float32)

    fwd = jax.jit(lambda sl, t, a, v: v2_forward(sl, layout, t, a, v, args))
    fusion_feature, rec, disc, clf = fwd(param_slab, text_x, audio_x, video_x)
    jax.block_until_ready((fusion_feature, rec, disc, clf))

    assert fusion_feature.shape == (B, args.fusion_dim)
    assert rec.shape == (B, args.fusion_dim)
    assert disc.shape == (B, 1)
    assert clf.shape == (B, 1)
    assert bool(jnp.all(jnp.isfinite(fusion_feature)))
    assert bool(jnp.all(jnp.isfinite(rec)))
    assert bool(jnp.all(jnp.isfinite(disc)))
    assert bool(jnp.all(jnp.isfinite(clf)))
    print("KERNEL_OK")
</pallas_src>

<mosaic_0001>
module attributes {stable_mosaic.version = 11 : i64} {
  func.func @_fused_forward_kernel(%arg0: memref<16x41xf32, #tpu.memory_space<vmem>>, %arg1: memref<936x128xf32, #tpu.memory_space<vmem>>, %arg2: memref<2x32xf32, #tpu.memory_space<vmem>>, %arg3: memref<2x32xf32, #tpu.memory_space<vmem>>, %arg4: memref<2x1xf32, #tpu.memory_space<vmem>>, %arg5: memref<2x1xf32, #tpu.memory_space<vmem>>) attributes {dimension_semantics = [], scalar_prefetch = 0 : i64, scratch_operands = 0 : i64, tpu.core_type = #tpu.core_type<tc>} {
    %c0 = arith.constant 0 : index
    %c0_0 = arith.constant 0 : index
    %0 = vector.load %arg0[%c0, %c0_0] : memref<16x41xf32, #tpu.memory_space<vmem>>, vector<16x41xf32>
    %1 = vector.extract_strided_slice %0 {offsets = [0, 0], sizes = [16, 40], strides = [1, 1]} : vector<16x41xf32> to vector<16x40xf32>
    %2 = vector.extract_strided_slice %0 {offsets = [0, 40], sizes = [16, 1], strides = [1, 1]} : vector<16x41xf32> to vector<16x1xf32>
    %3 = arith.fptosi %2 : vector<16x1xf32> to vector<16x1xi32>
    %4 = tpu.iota {dimensions = array<i32: 1>} : vector<16x32xi32>
    %5 = vector.broadcast %3 : vector<16x1xi32> to vector<16x32xi32>
    %6 = arith.cmpi eq, %5, %4 : vector<16x32xi32>
    %7 = arith.extui %6 : vector<16x32xi1> to vector<16x32xi32>
    %8 = arith.sitofp %7 : vector<16x32xi32> to vector<16x32xf32>
    %c120 = arith.constant 120 : index
    %c0_1 = arith.constant 0 : index
    %9 = vector.load %arg1[%c120, %c0_1] : memref<936x128xf32, #tpu.memory_space<vmem>>, vector<32x32xf32>
    %cst = arith.constant dense<0.000000e+00> : vector<16x32xf32>
    %10 = tpu.matmul %8, %9, %cst {dimension_numbers = #tpu.dot_dimension_numbers<[1], [0], [0], [1], [0, 0, 1, 1], [], []>} : vector<16x32xf32>, vector<32x32xf32>, vector<16x32xf32> -> vector<16x32xf32>
    %11 = tpu.concatenate %10, %1 in 1 : vector<16x32xf32>, vector<16x40xf32> -> vector<16x72xf32>
    %c48 = arith.constant 48 : index
    %c0_2 = arith.constant 0 : index
    %12 = vector.load %arg1[%c48, %c0_2] : memref<936x128xf32, #tpu.memory_space<vmem>>, vector<16x16xf32>
    %cst_3 = arith.constant dense<0.000000e+00> : vector<16x72xf32>
    %13 = tpu.matmul %12, %11, %cst_3 {dimension_numbers = #tpu.dot_dimension_numbers<[1], [0], [0], [1], [0, 0, 1, 1], [], []>} : vector<16x16xf32>, vector<16x72xf32>, vector<16x72xf32> -> vector<16x72xf32>
    %c64 = arith.constant 64 : index
    %c0_4 = arith.constant 0 : index
    %14 = vector.load %arg1[%c64, %c0_4] : memref<936x128xf32, #tpu.memory_space<vmem>>, vector<16x16xf32>
    %cst_5 = arith.constant dense<0.000000e+00> : vector<16x72xf32>
    %15 = tpu.matmul %14, %11, %cst_5 {dimension_numbers = #tpu.dot_dimension_numbers<[1], [0], [0], [1], [0, 0, 1, 1], [], []>} : vector<16x16xf32>, vector<16x72xf32>, vector<16x72xf32> -> vector<16x72xf32>
    %c152 = arith.constant 152 : index
    %c0_6 = arith.constant 0 : index
    %16 = vector.load %arg1[%c152, %c0_6] : memref<936x128xf32, #tpu.memory_space<vmem>>, vector<72x32xf32>
    %cst_7 = arith.constant dense<0.000000e+00> : vector<16x32xf32>
    %17 = tpu.matmul %13, %16, %cst_7 {dimension_numbers = #tpu.dot_dimension_numbers<[1], [0], [0], [1], [0, 0, 1, 1], [], []>} : vector<16x72xf32>, vector<72x32xf32>, vector<16x32xf32> -> vector<16x32xf32>
    %c224 = arith.constant 224 : index
    %c0_8 = arith.constant 0 : index
    %18 = vector.load %arg1[%c224, %c0_8] : memref<936x128xf32, #tpu.memory_space<vmem>>, vector<72x32xf32>
    %cst_9 = arith.constant dense<0.000000e+00> : vector<16x32xf32>
    %19 = tpu.matmul %11, %18, %cst_9 {dimension_numbers = #tpu.dot_dimension_numbers<[1], [0], [0], [1], [0, 0, 1, 1], [], []>} : vector<16x72xf32>, vector<72x32xf32>, vector<16x32xf32> -> vector<16x32xf32>
    %20 = arith.addf %17, %19 : vector<16x32xf32>
    %c296 = arith.constant 296 : index
    %c0_10 = arith.constant 0 : index
    %21 = vector.load %arg1[%c296, %c0_10] : memref<936x128xf32, #tpu.memory_space<vmem>>, vector<72x32xf32>
    %cst_11 = arith.constant dense<0.000000e+00> : vector<16x32xf32>
    %22 = tpu.matmul %15, %21, %cst_11 {dimension_numbers = #tpu.dot_dimension_numbers<[1], [0], [0], [1], [0, 0, 1, 1], [], []>} : vector<16x72xf32>, vector<72x32xf32>, vector<16x32xf32> -> vector<16x32xf32>
    %23 = arith.addf %20, %22 : vector<16x32xf32>
    %c0_12 = arith.constant 0 : index
    %c0_13 = arith.constant 0 : index
    %24 = vector.load %arg1[%c0_12, %c0_13] : memref<936x128xf32, #tpu.memory_space<vmem>>, vector<16x32xf32>
    %25 = arith.addf %23, %24 : vector<16x32xf32>
    %c488 = arith.constant 488 : index
    %c0_14 = arith.constant 0 : index
    %26 = vector.load %arg1[%c488, %c0_14] : memref<936x128xf32, #tpu.memory_space<vmem>>, vector<6x32xf32>
    %27 = vector.extract_strided_slice %26 {offsets = [0, 0], sizes = [1, 32], strides = [1, 1]} : vector<6x32xf32> to vector<1x32xf32>
    %28 = vector.extract_strided_slice %26 {offsets = [1, 0], sizes = [1, 32], strides = [1, 1]} : vector<6x32xf32> to vector<1x32xf32>
    %cst_15 = arith.constant dense<0.000000e+00> : vector<16xf32>
    %29 = vector.multi_reduction <add>, %25, %cst_15 [1] : vector<16x32xf32> to vector<16xf32>
    %30 = vector.shape_cast %29 : vector<16xf32> to vector<16x1xf32>
    %cst_16 = arith.constant 3.200000e+01 : f32
    %31 = vector.broadcast %cst_16 : f32 to vector<16x1xf32>
    %32 = arith.divf %30, %31 : vector<16x1xf32>
    %33 = vector.broadcast %32 : vector<16x1xf32> to vector<16x32xf32>
    %34 = arith.subf %25, %33 : vector<16x32xf32>
    %35 = arith.mulf %34, %34 : vector<16x32xf32>
    %cst_17 = arith.constant dense<0.000000e+00> : vector<16xf32>
    %36 = vector.multi_reduction <add>, %35, %cst_17 [1] : vector<16x32xf32> to vector<16xf32>
    %37 = vector.shape_cast %36 : vector<16xf32> to vector<16x1xf32>
    %cst_18 = arith.constant 3.200000e+01 : f32
    %38 = vector.broadcast %cst_18 : f32 to vector<16x1xf32>
    %39 = arith.divf %37, %38 : vector<16x1xf32>
    %40 = vector.broadcast %32 : vector<16x1xf32> to vector<16x32xf32>
    %41 = arith.subf %25, %40 : vector<16x32xf32>
    %cst_19 = arith.constant 9.99999974E-6 : f32
    %42 = vector.broadcast %cst_19 : f32 to vector<16x1xf32>
    %43 = arith.addf %39, %42 : vector<16x1xf32>
    %44 = math.rsqrt %43 : vector<16x1xf32>
    %45 = vector.broadcast %44 : vector<16x1xf32> to vector<16x32xf32>
    %46 = arith.mulf %41, %45 : vector<16x32xf32>
    %47 = vector.broadcast %27 : vector<1x32xf32> to vector<16x32xf32>
    %48 = arith.mulf %46, %47 : vector<16x32xf32>
    %49 = vector.broadcast %28 : vector<1x32xf32> to vector<16x32xf32>
    %50 = arith.addf %48, %49 : vector<16x32xf32>
    %c408 = arith.constant 408 : index
    %c0_20 = arith.constant 0 : index
    %51 = vector.load %arg1[%c408, %c0_20] : memref<936x128xf32, #tpu.memory_space<vmem>>, vector<32x64xf32>
    %cst_21 = arith.constant dense<0.000000e+00> : vector<16x64xf32>
    %52 = tpu.matmul %50, %51, %cst_21 {dimension_numbers = #tpu.dot_dimension_numbers<[1], [0], [0], [1], [0, 0, 1, 1], [], []>} : vector<16x32xf32>, vector<32x64xf32>, vector<16x64xf32> -> vector<16x64xf32>
    %c440 = arith.constant 440 : index
    %c0_22 = arith.constant 0 : index
    %53 = vector.load %arg1[%c440, %c0_22] : memref<936x128xf32, #tpu.memory_space<vmem>>, vector<1x64xf32>
    %54 = vector.broadcast %53 : vector<1x64xf32> to vector<16x64xf32>
    %55 = arith.addf %52, %54 : vector<16x64xf32>
    %56 = vector.extract_strided_slice %55 {offsets = [0, 0], sizes = [16, 32], strides = [1, 1]} : vector<16x64xf32> to vector<16x32xf32>
    %57 = vector.extract_strided_slice %55 {offsets = [0, 32], sizes = [16, 32], strides = [1, 1]} : vector<16x64xf32> to vector<16x32xf32>
    %c16 = arith.constant 16 : index
    %c0_23 = arith.constant 0 : index
    %58 = vector.load %arg1[%c16, %c0_23] : memref<936x128xf32, #tpu.memory_space<vmem>>, vector<2x16xf32>
    %c24 = arith.constant 24 : index
    %c0_24 = arith.constant 0 : index
    %59 = vector.load %arg1[%c24, %c0_24] : memref<936x128xf32, #tpu.memory_space<vmem>>, vector<2x16xf32>
    %c32 = arith.constant 32 : index
    %c0_25 = arith.constant 0 : index
    %60 = vector.load %arg1[%c32, %c0_25] : memref<936x128xf32, #tpu.memory_space<vmem>>, vector<16x2xf32>
    %cst_26 = arith.constant dense<0.000000e+00> : vector<2x32xf32>
    %61 = tpu.matmul %58, %50, %cst_26 {dimension_numbers = #tpu.dot_dimension_numbers<[1], [0], [0], [1], [0, 0, 1, 1], [], []>} : vector<2x16xf32>, vector<16x32xf32>, vector<2x32xf32> -> vector<2x32xf32>
    %c368 = arith.constant 368 : index
    %c0_27 = arith.constant 0 : index
    %62 = vector.load %arg1[%c368, %c0_27] : memref<936x128xf32, #tpu.memory_space<vmem>>, vector<32x32xf32>
    %cst_28 = arith.constant dense<0.000000e+00> : vector<2x32xf32>
    %63 = tpu.matmul %61, %62, %cst_28 {dimension_numbers = #tpu.dot_dimension_numbers<[1], [0], [0], [1], [0, 0, 1, 1], [], []>} : vector<2x32xf32>, vector<32x32xf32>, vector<2x32xf32> -> vector<2x32xf32>
    %c400 = arith.constant 400 : index
    %c0_29 = arith.constant 0 : index
    %64 = vector.load %arg1[%c400, %c0_29] : memref<936x128xf32, #tpu.memory_space<vmem>>, vector<1x32xf32>
    %65 = vector.broadcast %64 : vector<1x32xf32> to vector<2x32xf32>
    %66 = arith.addf %63, %65 : vector<2x32xf32>
    %cst_30 = arith.constant 0.353553385 : f32
    %67 = vector.broadcast %cst_30 : f32 to vector<2x32xf32>
    %68 = arith.mulf %66, %67 : vector<2x32xf32>
    %cst_31 = arith.constant dense<0.000000e+00> : vector<16x32xf32>
    %69 = tpu.matmul %60, %68, %cst_31 {dimension_numbers = #tpu.dot_dimension_numbers<[1], [0], [0], [1], [0, 0, 1, 1], [], []>} : vector<16x2xf32>, vector<2x32xf32>, vector<16x32xf32> -> vector<16x32xf32>
    %70 = arith.mulf %56, %69 : vector<16x32xf32>
    %c80 = arith.constant 80 : index
    %c0_32 = arith.constant 0 : index
    %71 = vector.load %arg1[%c80, %c0_32] : memref<936x128xf32, #tpu.memory_space<vmem>>, vector<32x4xf32>
    %cst_33 = arith.constant dense<0.000000e+00> : vector<16x4xf32>
    %72 = tpu.matmul %70, %71, %cst_33 {dimension_numbers = #tpu.dot_dimension_numbers<[1], [0], [0], [1], [0, 0, 1, 1], [], []>} : vector<16x32xf32>, vector<32x4xf32>, vector<16x4xf32> -> vector<16x4xf32>
    %cst_34 = arith.constant dense<0xFF800000> : vector<4xf32>
    %73 = vector.multi_reduction <maximumf>, %72, %cst_34 [0] : vector<16x4xf32> to vector<4xf32>
    %74 = vector.shape_cast %73 : vector<4xf32> to vector<1x4xf32>
    %75 = vector.broadcast %74 : vector<1x4xf32> to vector<16x4xf32>
    %76 = arith.subf %72, %75 : vector<16x4xf32>
    %77 = math.exp %76 : vector<16x4xf32>
    %cst_35 = arith.constant dense<0.000000e+00> : vector<2x4xf32>
    %78 = tpu.matmul %59, %77, %cst_35 {dimension_numbers = #tpu.dot_dimension_numbers<[1], [0], [0], [1], [0, 0, 1, 1], [], []>} : vector<2x16xf32>, vector<16x4xf32>, vector<2x4xf32> -> vector<2x4xf32>
    %cst_36 = arith.constant dense<0.000000e+00> : vector<16x4xf32>
    %79 = tpu.matmul %60, %78, %cst_36 {dimension_numbers = #tpu.dot_dimension_numbers<[1], [0], [0], [1], [0, 0, 1, 1], [], []>} : vector<16x2xf32>, vector<2x4xf32>, vector<16x4xf32> -> vector<16x4xf32>
    %80 = arith.divf %77, %79 : vector<16x4xf32>
    %c112 = arith.constant 112 : index
    %c0_37 = arith.constant 0 : index
    %81 = vector.load %arg1[%c112, %c0_37] : memref<936x128xf32, #tpu.memory_space<vmem>>, vector<4x32xf32>
    %cst_38 = arith.constant dense<0.000000e+00> : vector<16x32xf32>
    %82 = tpu.matmul %80, %81, %cst_38 {dimension_numbers = #tpu.dot_dimension_numbers<[1], [0], [0], [1], [0, 0, 1, 1], [], []>} : vector<16x4xf32>, vector<4x32xf32>, vector<16x32xf32> -> vector<16x32xf32>
    %83 = arith.mulf %82, %57 : vector<16x32xf32>
    %cst_39 = arith.constant dense<0.000000e+00> : vector<2x32xf32>
    %84 = tpu.matmul %59, %83, %cst_39 {dimension_numbers = #tpu.dot_dimension_numbers<[1], [0], [0], [1], [0, 0, 1, 1], [], []>} : vector<2x16xf32>, vector<16x32xf32>, vector<2x32xf32> -> vector<2x32xf32>
    %cst_40 = arith.constant dense<0.000000e+00> : vector<2x32xf32>
    %85 = tpu.matmul %58, %25, %cst_40 {dimension_numbers = #tpu.dot_dimension_numbers<[1], [0], [0], [1], [0, 0, 1, 1], [], []>} : vector<2x16xf32>, vector<16x32xf32>, vector<2x32xf32> -> vector<2x32xf32>
    %c448 = arith.constant 448 : index
    %c0_41 = arith.constant 0 : index
    %86 = vector.load %arg1[%c448, %c0_41] : memref<936x128xf32, #tpu.memory_space<vmem>>, vector<32x32xf32>
    %cst_42 = arith.constant dense<0.000000e+00> : vector<2x32xf32>
    %87 = tpu.matmul %84, %86, %cst_42 {dimension_numbers = #tpu.dot_dimension_numbers<[1], [0], [0], [1], [0, 0, 1, 1], [], []>} : vector<2x32xf32>, vector<32x32xf32>, vector<2x32xf32> -> vector<2x32xf32>
    %88 = arith.addf %85, %87 : vector<2x32xf32>
    %c480 = arith.constant 480 : index
    %c0_43 = arith.constant 0 : index
    %89 = vector.load %arg1[%c480, %c0_43] : memref<936x128xf32, #tpu.memory_space<vmem>>, vector<1x32xf32>
    %90 = vector.broadcast %89 : vector<1x32xf32> to vector<2x32xf32>
    %91 = arith.addf %88, %90 : vector<2x32xf32>
    %92 = vector.extract_strided_slice %26 {offsets = [2, 0], sizes = [1, 32], strides = [1, 1]} : vector<6x32xf32> to vector<1x32xf32>
    %93 = vector.extract_strided_slice %26 {offsets = [3, 0], sizes = [1, 32], strides = [1, 1]} : vector<6x32xf32> to vector<1x32xf32>
    %cst_44 = arith.constant dense<0.000000e+00> : vector<2xf32>
    %94 = vector.multi_reduction <add>, %91, %cst_44 [1] : vector<2x32xf32> to vector<2xf32>
    %95 = vector.shape_cast %94 : vector<2xf32> to vector<2x1xf32>
    %cst_45 = arith.constant 3.200000e+01 : f32
    %96 = vector.broadcast %cst_45 : f32 to vector<2x1xf32>
    %97 = arith.divf %95, %96 : vector<2x1xf32>
    %98 = vector.broadcast %97 : vector<2x1xf32> to vector<2x32xf32>
    %99 = arith.subf %91, %98 : vector<2x32xf32>
    %100 = arith.mulf %99, %99 : vector<2x32xf32>
    %cst_46 = arith.constant dense<0.000000e+00> : vector<2xf32>
    %101 = vector.multi_reduction <add>, %100, %cst_46 [1] : vector<2x32xf32> to vector<2xf32>
    %102 = vector.shape_cast %101 : vector<2xf32> to vector<2x1xf32>
    %cst_47 = arith.constant 3.200000e+01 : f32
    %103 = vector.broadcast %cst_47 : f32 to vector<2x1xf32>
    %104 = arith.divf %102, %103 : vector<2x1xf32>
    %105 = vector.broadcast %97 : vector<2x1xf32> to vector<2x32xf32>
    %106 = arith.subf %91, %105 : vector<2x32xf32>
    %cst_48 = arith.constant 9.99999974E-6 : f32
    %107 = vector.broadcast %cst_48 : f32 to vector<2x1xf32>
    %108 = arith.addf %104, %107 : vector<2x1xf32>
    %109 = math.rsqrt %108 : vector<2x1xf32>
    %110 = vector.broadcast %109 : vector<2x1xf32> to vector<2x32xf32>
    %111 = arith.mulf %106, %110 : vector<2x32xf32>
    %112 = vector.broadcast %92 : vector<1x32xf32> to vector<2x32xf32>
    %113 = arith.mulf %111, %112 : vector<2x32xf32>
    %114 = vector.broadcast %93 : vector<1x32xf32> to vector<2x32xf32>
    %115 = arith.addf %113, %114 : vector<2x32xf32>
    %c496 = arith.constant 496 : index
    %c0_49 = arith.constant 0 : index
    %116 = vector.load %arg1[%c496, %c0_49] : memref<936x128xf32, #tpu.memory_space<vmem>>, vector<32x128xf32>
    %cst_50 = arith.constant dense<0.000000e+00> : vector<2x128xf32>
    %117 = tpu.matmul %115, %116, %cst_50 {dimension_numbers = #tpu.dot_dimension_numbers<[1], [0], [0], [1], [0, 0, 1, 1], [], []>} : vector<2x32xf32>, vector<32x128xf32>, vector<2x128xf32> -> vector<2x128xf32>
    %c528 = arith.constant 528 : index
    %c0_51 = arith.constant 0 : index
    %118 = vector.load %arg1[%c528, %c0_51] : memref<936x128xf32, #tpu.memory_space<vmem>>, vector<1x128xf32>
    %119 = vector.broadcast %118 : vector<1x128xf32> to vector<2x128xf32>
    %120 = arith.addf %117, %119 : vector<2x128xf32>
    %cst_52 = arith.constant 0.000000e+00 : f32
    %121 = vector.broadcast %cst_52 : f32 to vector<2x128xf32>
    %122 = arith.maximumf %120, %121 : vector<2x128xf32>
    %c536 = arith.constant 536 : index
    %c0_53 = arith.constant 0 : index
    %123 = vector.load %arg1[%c536, %c0_53] : memref<936x128xf32, #tpu.memory_space<vmem>>, vector<128x32xf32>
    %cst_54 = arith.constant dense<0.000000e+00> : vector<2x32xf32>
    %124 = tpu.matmul %122, %123, %cst_54 {dimension_numbers = #tpu.dot_dimension_numbers<[1], [0], [0], [1], [0, 0, 1, 1], [], []>} : vector<2x128xf32>, vector<128x32xf32>, vector<2x32xf32> -> vector<2x32xf32>
    %125 = arith.addf %91, %124 : vector<2x32xf32>
    %c664 = arith.constant 664 : index
    %c0_55 = arith.constant 0 : index
    %126 = vector.load %arg1[%c664, %c0_55] : memref<936x128xf32, #tpu.memory_space<vmem>>, vector<1x32xf32>
    %127 = vector.broadcast %126 : vector<1x32xf32> to vector<2x32xf32>
    %128 = arith.addf %125, %127 : vector<2x32xf32>
    %129 = vector.extract_strided_slice %26 {offsets = [4, 0], sizes = [1, 32], strides = [1, 1]} : vector<6x32xf32> to vector<1x32xf32>
    %130 = vector.extract_strided_slice %26 {offsets = [5, 0], sizes = [1, 32], strides = [1, 1]} : vector<6x32xf32> to vector<1x32xf32>
    %cst_56 = arith.constant dense<0.000000e+00> : vector<2xf32>
    %131 = vector.multi_reduction <add>, %128, %cst_56 [1] : vector<2x32xf32> to vector<2xf32>
    %132 = vector.shape_cast %131 : vector<2xf32> to vector<2x1xf32>
    %cst_57 = arith.constant 3.200000e+01 : f32
    %133 = vector.broadcast %cst_57 : f32 to vector<2x1xf32>
    %134 = arith.divf %132, %133 : vector<2x1xf32>
    %135 = vector.broadcast %134 : vector<2x1xf32> to vector<2x32xf32>
    %136 = arith.subf %128, %135 : vector<2x32xf32>
    %137 = arith.mulf %136, %136 : vector<2x32xf32>
    %cst_58 = arith.constant dense<0.000000e+00> : vector<2xf32>
    %138 = vector.multi_reduction <add>, %137, %cst_58 [1] : vector<2x32xf32> to vector<2xf32>
    %139 = vector.shape_cast %138 : vector<2xf32> to vector<2x1xf32>
    %cst_59 = arith.constant 3.200000e+01 : f32
    %140 = vector.broadcast %cst_59 : f32 to vector<2x1xf32>
    %141 = arith.divf %139, %140 : vector<2x1xf32>
    %142 = vector.broadcast %134 : vector<2x1xf32> to vector<2x32xf32>
    %143 = arith.subf %128, %142 : vector<2x32xf32>
    %cst_60 = arith.constant 9.99999974E-6 : f32
    %144 = vector.broadcast %cst_60 : f32 to vector<2x1xf32>
    %145 = arith.addf %141, %144 : vector<2x1xf32>
    %146 = math.rsqrt %145 : vector<2x1xf32>
    %147 = vector.broadcast %146 : vector<2x1xf32> to vector<2x32xf32>
    %148 = arith.mulf %143, %147 : vector<2x32xf32>
    %149 = vector.broadcast %129 : vector<1x32xf32> to vector<2x32xf32>
    %150 = arith.mulf %148, %149 : vector<2x32xf32>
    %151 = vector.broadcast %130 : vector<1x32xf32> to vector<2x32xf32>
    %152 = arith.addf %150, %151 : vector<2x32xf32>
    %c672 = arith.constant 672 : index
    %c0_61 = arith.constant 0 : index
    %153 = vector.load %arg1[%c672, %c0_61] : memref<936x128xf32, #tpu.memory_space<vmem>>, vector<2x32xf32>
    %154 = vector.extract_strided_slice %153 {offsets = [0, 0], sizes = [1, 32], strides = [1, 1]} : vector<2x32xf32> to vector<1x32xf32>
    %155 = vector.extract_strided_slice %153 {offsets = [1, 0], sizes = [1, 32], strides = [1, 1]} : vector<2x32xf32> to vector<1x32xf32>
    %cst_62 = arith.constant dense<0.000000e+00> : vector<32xf32>
    %156 = vector.multi_reduction <add>, %152, %cst_62 [0] : vector<2x32xf32> to vector<32xf32>
    %157 = vector.shape_cast %156 : vector<32xf32> to vector<1x32xf32>
    %cst_63 = arith.constant 2.000000e+00 : f32
    %158 = vector.broadcast %cst_63 : f32 to vector<1x32xf32>
    %159 = arith.divf %157, %158 : vector<1x32xf32>
    %160 = vector.broadcast %159 : vector<1x32xf32> to vector<2x32xf32>
    %161 = arith.subf %152, %160 : vector<2x32xf32>
    %162 = arith.mulf %161, %161 : vector<2x32xf32>
    %cst_64 = arith.constant dense<0.000000e+00> : vector<32xf32>
    %163 = vector.multi_reduction <add>, %162, %cst_64 [0] : vector<2x32xf32> to vector<32xf32>
    %164 = vector.shape_cast %163 : vector<32xf32> to vector<1x32xf32>
    %cst_65 = arith.constant 2.000000e+00 : f32
    %165 = vector.broadcast %cst_65 : f32 to vector<1x32xf32>
    %166 = arith.divf %164, %165 : vector<1x32xf32>
    %167 = vector.broadcast %159 : vector<1x32xf32> to vector<2x32xf32>
    %168 = arith.subf %152, %167 : vector<2x32xf32>
    %cst_66 = arith.constant 9.99999974E-6 : f32
    %169 = vector.broadcast %cst_66 : f32 to vector<1x32xf32>
    %170 = arith.addf %166, %169 : vector<1x32xf32>
    %171 = math.rsqrt %170 : vector<1x32xf32>
    %172 = vector.broadcast %171 : vector<1x32xf32> to vector<2x32xf32>
    %173 = arith.mulf %168, %172 : vector<2x32xf32>
    %174 = vector.broadcast %154 : vector<1x32xf32> to vector<2x32xf32>
    %175 = arith.mulf %173, %174 : vector<2x32xf32>
    %176 = vector.broadcast %155 : vector<1x32xf32> to vector<2x32xf32>
    %177 = arith.addf %175, %176 : vector<2x32xf32>
    %c680 = arith.constant 680 : index
    %c0_67 = arith.constant 0 : index
    %178 = vector.load %arg1[%c680, %c0_67] : memref<936x128xf32, #tpu.memory_space<vmem>>, vector<32x16xf32>
    %cst_68 = arith.constant dense<0.000000e+00> : vector<2x16xf32>
    %179 = tpu.matmul %177, %178, %cst_68 {dimension_numbers = #tpu.dot_dimension_numbers<[1], [0], [0], [1], [0, 0, 1, 1], [], []>} : vector<2x32xf32>, vector<32x16xf32>, vector<2x16xf32> -> vector<2x16xf32>
    %c712 = arith.constant 712 : index
    %c0_69 = arith.constant 0 : index
    %180 = vector.load %arg1[%c712, %c0_69] : memref<936x128xf32, #tpu.memory_space<vmem>>, vector<1x16xf32>
    %181 = vector.broadcast %180 : vector<1x16xf32> to vector<2x16xf32>
    %182 = arith.addf %179, %181 : vector<2x16xf32>
    %cst_70 = arith.constant 0.000000e+00 : f32
    %183 = vector.broadcast %cst_70 : f32 to vector<2x16xf32>
    %184 = arith.maximumf %182, %183 : vector<2x16xf32>
    %c720 = arith.constant 720 : index
    %c0_71 = arith.constant 0 : index
    %185 = vector.load %arg1[%c720, %c0_71] : memref<936x128xf32, #tpu.memory_space<vmem>>, vector<16x1xf32>
    %cst_72 = arith.constant dense<0.000000e+00> : vector<2x1xf32>
    %186 = tpu.matmul %184, %185, %cst_72 {dimension_numbers = #tpu.dot_dimension_numbers<[1], [0], [0], [1], [0, 0, 1, 1], [], []>} : vector<2x16xf32>, vector<16x1xf32>, vector<2x1xf32> -> vector<2x1xf32>
    %c736 = arith.constant 736 : index
    %c0_73 = arith.constant 0 : index
    %187 = vector.load %arg1[%c736, %c0_73] : memref<936x128xf32, #tpu.memory_space<vmem>>, vector<1x1xf32>
    %188 = vector.broadcast %187 : vector<1x1xf32> to vector<2x1xf32>
    %189 = arith.addf %186, %188 : vector<2x1xf32>
    %190 = arith.negf %189 : vector<2x1xf32>
    %191 = math.exp %190 : vector<2x1xf32>
    %cst_74 = arith.constant 1.000000e+00 : f32
    %192 = vector.broadcast %cst_74 : f32 to vector<2x1xf32>
    %193 = arith.addf %192, %191 : vector<2x1xf32>
    %194 = arith.divf %192, %193 : vector<2x1xf32>
    %cst_75 = arith.constant 6.000000e+00 : f32
    %195 = vector.broadcast %cst_75 : f32 to vector<2x1xf32>
    %196 = arith.mulf %194, %195 : vector<2x1xf32>
    %cst_76 = arith.constant 3.000000e+00 : f32
    %197 = vector.broadcast %cst_76 : f32 to vector<2x1xf32>
    %198 = arith.subf %196, %197 : vector<2x1xf32>
    %c744 = arith.constant 744 : index
    %c0_77 = arith.constant 0 : index
    %199 = vector.load %arg1[%c744, %c0_77] : memref<936x128xf32, #tpu.memory_space<vmem>>, vector<2x32xf32>
    %200 = vector.extract_strided_slice %199 {offsets = [0, 0], sizes = [1, 32], strides = [1, 1]} : vector<2x32xf32> to vector<1x32xf32>
    %201 = vector.extract_strided_slice %199 {offsets = [1, 0], sizes = [1, 32], strides = [1, 1]} : vector<2x32xf32> to vector<1x32xf32>
    %cst_78 = arith.constant dense<0.000000e+00> : vector<32xf32>
    %202 = vector.multi_reduction <add>, %152, %cst_78 [0] : vector<2x32xf32> to vector<32xf32>
    %203 = vector.shape_cast %202 : vector<32xf32> to vector<1x32xf32>
    %cst_79 = arith.constant 2.000000e+00 : f32
    %204 = vector.broadcast %cst_79 : f32 to vector<1x32xf32>
    %205 = arith.divf %203, %204 : vector<1x32xf32>
    %206 = vector.broadcast %205 : vector<1x32xf32> to vector<2x32xf32>
    %207 = arith.subf %152, %206 : vector<2x32xf32>
    %208 = arith.mulf %207, %207 : vector<2x32xf32>
    %cst_80 = arith.constant dense<0.000000e+00> : vector<32xf32>
    %209 = vector.multi_reduction <add>, %208, %cst_80 [0] : vector<2x32xf32> to vector<32xf32>
    %210 = vector.shape_cast %209 : vector<32xf32> to vector<1x32xf32>
    %cst_81 = arith.constant 2.000000e+00 : f32
    %211 = vector.broadcast %cst_81 : f32 to vector<1x32xf32>
    %212 = arith.divf %210, %211 : vector<1x32xf32>
    %213 = vector.broadcast %205 : vector<1x32xf32> to vector<2x32xf32>
    %214 = arith.subf %152, %213 : vector<2x32xf32>
    %cst_82 = arith.constant 9.99999974E-6 : f32
    %215 = vector.broadcast %cst_82 : f32 to vector<1x32xf32>
    %216 = arith.addf %212, %215 : vector<1x32xf32>
    %217 = math.rsqrt %216 : vector<1x32xf32>
    %218 = vector.broadcast %217 : vector<1x32xf32> to vector<2x32xf32>
    %219 = arith.mulf %214, %218 : vector<2x32xf32>
    %220 = vector.broadcast %200 : vector<1x32xf32> to vector<2x32xf32>
    %221 = arith.mulf %219, %220 : vector<2x32xf32>
    %222 = vector.broadcast %201 : vector<1x32xf32> to vector<2x32xf32>
    %223 = arith.addf %221, %222 : vector<2x32xf32>
    %c752 = arith.constant 752 : index
    %c0_83 = arith.constant 0 : index
    %224 = vector.load %arg1[%c752, %c0_83] : memref<936x128xf32, #tpu.memory_space<vmem>>, vector<32x16xf32>
    %cst_84 = arith.constant dense<0.000000e+00> : vector<2x16xf32>
    %225 = tpu.matmul %223, %224, %cst_84 {dimension_numbers = #tpu.dot_dimension_numbers<[1], [0], [0], [1], [0, 0, 1, 1], [], []>} : vector<2x32xf32>, vector<32x16xf32>, vector<2x16xf32> -> vector<2x16xf32>
    %c784 = arith.constant 784 : index
    %c0_85 = arith.constant 0 : index
    %226 = vector.load %arg1[%c784, %c0_85] : memref<936x128xf32, #tpu.memory_space<vmem>>, vector<1x16xf32>
    %227 = vector.broadcast %226 : vector<1x16xf32> to vector<2x16xf32>
    %228 = arith.addf %225, %227 : vector<2x16xf32>
    %cst_86 = arith.constant 0.000000e+00 : f32
    %229 = vector.broadcast %cst_86 : f32 to vector<2x16xf32>
    %230 = arith.cmpf ogt, %228, %229 : vector<2x16xf32>
    %cst_87 = arith.constant 2.000000e-01 : f32
    %231 = vector.broadcast %cst_87 : f32 to vector<2x16xf32>
    %232 = arith.mulf %231, %228 : vector<2x16xf32>
    %233 = arith.select %230, %228, %232 : vector<2x16xi1>, vector<2x16xf32>
    %c792 = arith.constant 792 : index
    %c0_88 = arith.constant 0 : index
    %234 = vector.load %arg1[%c792, %c0_88] : memref<936x128xf32, #tpu.memory_space<vmem>>, vector<16x8xf32>
    %cst_89 = arith.constant dense<0.000000e+00> : vector<2x8xf32>
    %235 = tpu.matmul %233, %234, %cst_89 {dimension_numbers = #tpu.dot_dimension_numbers<[1], [0], [0], [1], [0, 0, 1, 1], [], []>} : vector<2x16xf32>, vector<16x8xf32>, vector<2x8xf32> -> vector<2x8xf32>
    %c808 = arith.constant 808 : index
    %c0_90 = arith.constant 0 : index
    %236 = vector.load %arg1[%c808, %c0_90] : memref<936x128xf32, #tpu.memory_space<vmem>>, vector<1x8xf32>
    %237 = vector.broadcast %236 : vector<1x8xf32> to vector<2x8xf32>
    %238 = arith.addf %235, %237 : vector<2x8xf32>
    %239 = math.tanh %238 : vector<2x8xf32>
    %c816 = arith.constant 816 : index
    %c0_91 = arith.constant 0 : index
    %240 = vector.load %arg1[%c816, %c0_91] : memref<936x128xf32, #tpu.memory_space<vmem>>, vector<8x1xf32>
    %cst_92 = arith.constant dense<0.000000e+00> : vector<2x1xf32>
    %241 = tpu.matmul %239, %240, %cst_92 {dimension_numbers = #tpu.dot_dimension_numbers<[1], [0], [0], [1], [0, 0, 1, 1], [], []>} : vector<2x8xf32>, vector<8x1xf32>, vector<2x1xf32> -> vector<2x1xf32>
    %c824 = arith.constant 824 : index
    %c0_93 = arith.constant 0 : index
    %242 = vector.load %arg1[%c824, %c0_93] : memref<936x128xf32, #tpu.memory_space<vmem>>, vector<1x1xf32>
    %243 = vector.broadcast %242 : vector<1x1xf32> to vector<2x1xf32>
    %244 = arith.addf %241, %243 : vector<2x1xf32>
    %245 = arith.negf %244 : vector<2x1xf32>
    %246 = math.exp %245 : vector<2x1xf32>
    %cst_94 = arith.constant 1.000000e+00 : f32
    %247 = vector.broadcast %cst_94 : f32 to vector<2x1xf32>
    %248 = arith.addf %247, %246 : vector<2x1xf32>
    %249 = arith.divf %247, %248 : vector<2x1xf32>
    %c832 = arith.constant 832 : index
    %c0_95 = arith.constant 0 : index
    %250 = vector.load %arg1[%c832, %c0_95] : memref<936x128xf32, #tpu.memory_space<vmem>>, vector<32x24xf32>
    %cst_96 = arith.constant dense<0.000000e+00> : vector<2x24xf32>
    %251 = tpu.matmul %152, %250, %cst_96 {dimension_numbers = #tpu.dot_dimension_numbers<[1], [0], [0], [1], [0, 0, 1, 1], [], []>} : vector<2x32xf32>, vector<32x24xf32>, vector<2x24xf32> -> vector<2x24xf32>
    %c864 = arith.constant 864 : index
    %c0_97 = arith.constant 0 : index
    %252 = vector.load %arg1[%c864, %c0_97] : memref<936x128xf32, #tpu.memory_space<vmem>>, vector<1x24xf32>
    %253 = vector.broadcast %252 : vector<1x24xf32> to vector<2x24xf32>
    %254 = arith.addf %251, %253 : vector<2x24xf32>
    %cst_98 = arith.constant 0.000000e+00 : f32
    %255 = vector.broadcast %cst_98 : f32 to vector<2x24xf32>
    %256 = arith.cmpf ogt, %254, %255 : vector<2x24xf32>
    %cst_99 = arith.constant 2.000000e-01 : f32
    %257 = vector.broadcast %cst_99 : f32 to vector<2x24xf32>
    %258 = arith.mulf %257, %254 : vector<2x24xf32>
    %259 = arith.select %256, %254, %258 : vector<2x24xi1>, vector<2x24xf32>
    %c872 = arith.constant 872 : index
    %c0_100 = arith.constant 0 : index
    %260 = vector.load %arg1[%c872, %c0_100] : memref<936x128xf32, #tpu.memory_space<vmem>>, vector<24x16xf32>
    %cst_101 = arith.constant dense<0.000000e+00> : vector<2x16xf32>
    %261 = tpu.matmul %259, %260, %cst_101 {dimension_numbers = #tpu.dot_dimension_numbers<[1], [0], [0], [1], [0, 0, 1, 1], [], []>} : vector<2x24xf32>, vector<24x16xf32>, vector<2x16xf32> -> vector<2x16xf32>
    %c896 = arith.constant 896 : index
    %c0_102 = arith.constant 0 : index
    %262 = vector.load %arg1[%c896, %c0_102] : memref<936x128xf32, #tpu.memory_space<vmem>>, vector<1x16xf32>
    %263 = vector.broadcast %262 : vector<1x16xf32> to vector<2x16xf32>
    %264 = arith.addf %261, %263 : vector<2x16xf32>
    %c904 = arith.constant 904 : index
    %c0_103 = arith.constant 0 : index
    %265 = vector.load %arg1[%c904, %c0_103] : memref<936x128xf32, #tpu.memory_space<vmem>>, vector<2x16xf32>
    %266 = vector.extract_strided_slice %265 {offsets = [0, 0], sizes = [1, 16], strides = [1, 1]} : vector<2x16xf32> to vector<1x16xf32>
    %267 = vector.extract_strided_slice %265 {offsets = [1, 0], sizes = [1, 16], strides = [1, 1]} : vector<2x16xf32> to vector<1x16xf32>
    %cst_104 = arith.constant dense<0.000000e+00> : vector<16xf32>
    %268 = vector.multi_reduction <add>, %264, %cst_104 [0] : vector<2x16xf32> to vector<16xf32>
    %269 = vector.shape_cast %268 : vector<16xf32> to vector<1x16xf32>
    %cst_105 = arith.constant 2.000000e+00 : f32
    %270 = vector.broadcast %cst_105 : f32 to vector<1x16xf32>
    %271 = arith.divf %269, %270 : vector<1x16xf32>
    %272 = vector.broadcast %271 : vector<1x16xf32> to vector<2x16xf32>
    %273 = arith.subf %264, %272 : vector<2x16xf32>
    %274 = arith.mulf %273, %273 : vector<2x16xf32>
    %cst_106 = arith.constant dense<0.000000e+00> : vector<16xf32>
    %275 = vector.multi_reduction <add>, %274, %cst_106 [0] : vector<2x16xf32> to vector<16xf32>
    %276 = vector.shape_cast %275 : vector<16xf32> to vector<1x16xf32>
    %cst_107 = arith.constant 2.000000e+00 : f32
    %277 = vector.broadcast %cst_107 : f32 to vector<1x16xf32>
    %278 = arith.divf %276, %277 : vector<1x16xf32>
    %279 = vector.broadcast %271 : vector<1x16xf32> to vector<2x16xf32>
    %280 = arith.subf %264, %279 : vector<2x16xf32>
    %cst_108 = arith.constant 9.99999974E-6 : f32
    %281 = vector.broadcast %cst_108 : f32 to vector<1x16xf32>
    %282 = arith.addf %278, %281 : vector<1x16xf32>
    %283 = math.rsqrt %282 : vector<1x16xf32>
    %284 = vector.broadcast %283 : vector<1x16xf32> to vector<2x16xf32>
    %285 = arith.mulf %280, %284 : vector<2x16xf32>
    %286 = vector.broadcast %266 : vector<1x16xf32> to vector<2x16xf32>
    %287 = arith.mulf %285, %286 : vector<2x16xf32>
    %288 = vector.broadcast %267 : vector<1x16xf32> to vector<2x16xf32>
    %289 = arith.addf %287, %288 : vector<2x16xf32>
    %cst_109 = arith.constant 0.000000e+00 : f32
    %290 = vector.broadcast %cst_109 : f32 to vector<2x16xf32>
    %291 = arith.cmpf ogt, %289, %290 : vector<2x16xf32>
    %cst_110 = arith.constant 2.000000e-01 : f32
    %292 = vector.broadcast %cst_110 : f32 to vector<2x16xf32>
    %293 = arith.mulf %292, %289 : vector<2x16xf32>
    %294 = arith.select %291, %289, %293 : vector<2x16xi1>, vector<2x16xf32>
    %c912 = arith.constant 912 : index
    %c0_111 = arith.constant 0 : index
    %295 = vector.load %arg1[%c912, %c0_111] : memref<936x128xf32, #tpu.memory_space<vmem>>, vector<16x32xf32>
    %cst_112 = arith.constant dense<0.000000e+00> : vector<2x32xf32>
    %296 = tpu.matmul %294, %295, %cst_112 {dimension_numbers = #tpu.dot_dimension_numbers<[1], [0], [0], [1], [0, 0, 1, 1], [], []>} : vector<2x16xf32>, vector<16x32xf32>, vector<2x32xf32> -> vector<2x32xf32>
    %c928 = arith.constant 928 : index
    %c0_113 = arith.constant 0 : index
    %297 = vector.load %arg1[%c928, %c0_113] : memref<936x128xf32, #tpu.memory_space<vmem>>, vector<1x32xf32>
    %298 = vector.broadcast %297 : vector<1x32xf32> to vector<2x32xf32>
    %299 = arith.addf %296, %298 : vector<2x32xf32>
    %300 = math.tanh %299 : vector<2x32xf32>
    %c0_114 = arith.constant 0 : index
    %c0_115 = arith.constant 0 : index
    %301 = vector.load %arg2[%c0_114, %c0_115] : memref<2x32xf32, #tpu.memory_space<vmem>>, vector<2x32xf32>
    tpu.vector_store %arg2[%c0_114, %c0_115], %152 {strides = array<i32>} : memref<2x32xf32, #tpu.memory_space<vmem>>, vector<2x32xf32>,
    %c0_116 = arith.constant 0 : index
    %c0_117 = arith.constant 0 : index
    %302 = vector.load %arg3[%c0_116, %c0_117] : memref<2x32xf32, #tpu.memory_space<vmem>>, vector<2x32xf32>
    tpu.vector_store %arg3[%c0_116, %c0_117], %300 {strides = array<i32>} : memref<2x32xf32, #tpu.memory_space<vmem>>, vector<2x32xf32>,
    %c0_118 = arith.constant 0 : index
    %c0_119 = arith.constant 0 : index
    %303 = vector.load %arg4[%c0_118, %c0_119] : memref<2x1xf32, #tpu.memory_space<vmem>>, vector<2x1xf32>
    tpu.vector_store %arg4[%c0_118, %c0_119], %249 {strides = array<i32>} : memref<2x1xf32, #tpu.memory_space<vmem>>, vector<2x1xf32>,
    %c0_120 = arith.constant 0 : index
    %c0_121 = arith.constant 0 : index
    %304 = vector.load %arg5[%c0_120, %c0_121] : memref<2x1xf32, #tpu.memory_space<vmem>>, vector<2x1xf32>
    tpu.vector_store %arg5[%c0_120, %c0_121], %198 {strides = array<i32>} : memref<2x1xf32, #tpu.memory_space<vmem>>, vector<2x1xf32>,
    return
  }
}

</mosaic_0001>

<llo_original>
// kernel: _lambda_.1
$region0: #{_lambda_.1}
  #allocation0 [shape = 'u32[]', space=smem, size = 0x4, offset = 0x4, fixed_abs, tag = 'smem constant byte address 0x4 - core index']
  #allocation1 [shape = 'u32[144,128]{1,0:T(1,128)}', space=vmem, size = 0x12000, scoped, tag = 'internal scratch']
  %s0 = inlined_call_operand.vmem [shape: f32[16,41], index: 0, kind: input, shape index: {}]
  %s1 = inlined_call_operand.hbm [shape: f32[936,128], index: 1, kind: input, shape index: {}]
  %s2 = inlined_call_operand.hbm [shape: f32[2,32], index: 2, kind: output, shape index: {0}]
  %s3 = inlined_call_operand.hbm [shape: f32[2,32], index: 3, kind: output, shape index: {1}]
  %s4 = inlined_call_operand.vmem [shape: f32[2,1], index: 4, kind: output, shape index: {2}]
  %s5 = inlined_call_operand.vmem [shape: f32[2,1], index: 5, kind: output, shape index: {3}]
  %6 = xla_tuple %s2, %s3, %s4, %s5
  %s7 = sld [smem:[#allocation0]]
  $region46: #{_lambda_.1} parent=0
    _
  %s9 = ssub.s32 1, %s7
  %s10 = scalar_select 0, %s9, %s7
  $region1: #{_lambda_.1} parent=0
    #allocation2 [shape = 'u8[479232]{0}', space=vmem, size = 0x75000, scoped, tag = 'input window, operand 1, single buffered']
    #allocation3 [shape = 's32[1]{0}', space=sflag, size = 0x4, scoped, tag = 'scoped memory for _lambda_.1']
    #allocation4 [shape = 's32[1]{0}', space=sflag, size = 0x4, scoped, tag = 'scoped memory for _lambda_.1']
    #allocation5 [shape = 'u8[1024]{0}', space=vmem, size = 0x400, scoped, tag = 'output window, operand 0, single buffered']
    #allocation6 [shape = 'u8[1024]{0}', space=vmem, size = 0x400, scoped, tag = 'output window, operand 1, single buffered']
    #allocation7 [shape = 's32[1]{0}', space=sflag, size = 0x4, scoped, tag = 'scoped memory for _lambda_.1']
    %11 = vsyncpa [#allocation3], 0
    %12 = vsyncpa [#allocation4], 0
    %13 = vsyncpa [#allocation7], 0
    // Predicated region
    $region2: #{_lambda_.1} parent=1 // pred_check
      _
    $region3: #{_lambda_.1} parent=1 // pred_check_branch
      %15 = sbr.rel (0) target = $region5
    $region4: #{_lambda_.1} parent=1 // pred_region
      _
    $region5: #{_lambda_.1} parent=1 // pred_fallthru
      _
    // Predicated region
    $region6: #{_lambda_.1} parent=1 // pred_check
      _
    $region7: #{_lambda_.1} parent=1 // pred_check_branch
      %17 = sbr.rel (0) target = $region9
    $region8: #{_lambda_.1} parent=1 // pred_region
      %s19 = ssub.s32 14976, 14976
      %20 = vsyncadd [#allocation3], %s19
      %s21 = sshll.u32 [#allocation2], 4
      %s22 = int_to_ptr.vmem [resolvable:$true] %s21
      %27 = dma.hbm_to_vmem [thread:$0]  %s1, 14976, %s22, [#allocation3], 128, 128, 8
    $region9: #{_lambda_.1} parent=1 // pred_fallthru
      _
    // Predicated region
    $region10: #{_lambda_.1} parent=1 // pred_check
      _
    $region11: #{_lambda_.1} parent=1 // pred_check_branch
      %29 = sbr.rel (0) target = $region13
    $region12: #{_lambda_.1} parent=1 // pred_region
      %30 = dma.done [#allocation3], 14976
    $region13: #{_lambda_.1} parent=1 // pred_fallthru
      _
    %v31 = vld [vmem:[%s0] sm:$0xff]
    %v32 = vld [vmem:[%s0 + $0x8] sm:$0xff]
    %v33 = vcvt.f32.s32.to.zero.pseudo %v31
    %v34 = vcvt.f32.s32.to.zero.pseudo %v32
    %v35 = vlaneseq
    %v36 = vand.u32 %v35, 127
    %37 = vset.pattern.permute.xlu0 40
    %38 = vperm.xlu0 %37, %v33
    %v39 = vpop.permute.xlu0 %38
    %40 = vset.pattern.permute.xlu0 40
    %41 = vperm.xlu0 %40, %v34
    %v42 = vpop.permute.xlu0 %41
    %vm43 = vcmp.eq.s32.totalorder %v39, %v36
    %vm44 = vcmp.eq.s32.totalorder %v42, %v36
    %v45 = vsel %vm43, 1, 0
    %v46 = vsel %vm44, 1, 0
    %v47 = vcvt.s32.f32 %v45
    %v48 = vcvt.s32.f32 %v46
    %v49 = vld [vmem:[#allocation2 + $0x78] sm:$0xff]
    %v50 = vld [vmem:[#allocation2 + $0x80] sm:$0xff]
    %v51 = vld [vmem:[#allocation2 + $0x88] sm:$0xff]
    %v52 = vld [vmem:[#allocation2 + $0x90] sm:$0xff]
    %vm53 = vcmask 261120
    %v55 = vsel %vm53, %v47, 0
    %v58 = vsel %vm53, %v48, 0
    %60 = vmatprep.subr.mxu0 0.0
    %61 = vmatpush1.msra.mxu0 0.0
    %62 = vmatprep.subr.mxu0 0.0
    %63 = vmatpush1.msra.mxu0 0.0
    %64 = vmatprep.subr.mxu0 0.0
    %65 = vmatpush1.msra.mxu0 0.0
    %66 = vmatprep.subr.mxu0 0.0
    %67 = vmatpush1.msra.mxu0 0.0
    %68 = vmatprep.subr.mxu0 0.0
    %69 = vmatpush1.msra.mxu0 0.0
    %70 = vmatprep.subr.mxu0 0.0
    %71 = vmatpush1.msra.mxu0 0.0
    %72 = vmatprep.subr.mxu0 0.0
    %73 = vmatpush1.msra.mxu0 0.0
    %74 = vmatprep.subr.mxu0 0.0
    %75 = vmatpush1.msra.mxu0 0.0
    %76 = vmatprep.subr.mxu0 0.0
    %77 = vmatpush1.msra.mxu0 0.0
    %78 = vmatprep.subr.mxu0 0.0
    %79 = vmatpush1.msra.mxu0 0.0
    %80 = vmatprep.subr.mxu0 0.0
    %81 = vmatpush1.msra.mxu0 0.0
    %82 = vmatprep.subr.mxu0 0.0
    %83 = vmatpush1.msra.mxu0 0.0
    %84 = vmatprep.subr.mxu0 0.0
    %85 = vmatpush1.msra.mxu0 %v52
    %86 = vmatprep.subr.mxu0 0.0
    %87 = vmatpush1.msra.mxu0 %v51
    %88 = vmatprep.subr.mxu0 0.0
    %89 = vmatpush1.msra.mxu0 %v50
    %90 = vmatprep.subr.mxu0 0.0
    %91 = vmatpush1.msra.mxu0 %v49
    %92 = vmatprep.subr.mxu0 0.0
    %93 = vmatpush2.msra.mxu0 0.0
    %94 = vmatprep.subr.mxu0 0.0
    %95 = vmatpush2.msra.mxu0 0.0
    %96 = vmatprep.subr.mxu0 0.0
    %97 = vmatpush2.msra.mxu0 0.0
    %98 = vmatprep.subr.mxu0 0.0
    %99 = vmatpush2.msra.mxu0 0.0
    %100 = vmatprep.subr.mxu0 0.0
    %101 = vmatpush2.msra.mxu0 0.0
    %102 = vmatprep.subr.mxu0 0.0
    %103 = vmatpush2.msra.mxu0 0.0
    %104 = vmatprep.subr.mxu0 0.0
    %105 = vmatpush2.msra.mxu0 0.0
    %106 = vmatprep.subr.mxu0 0.0
    %107 = vmatpush2.msra.mxu0 0.0
    %108 = vmatprep.subr.mxu0 0.0
    %109 = vmatpush2.msra.mxu0 0.0
    %110 = vmatprep.subr.mxu0 0.0
    %111 = vmatpush2.msra.mxu0 0.0
    %112 = vmatprep.subr.mxu0 0.0
    %113 = vmatpush2.msra.mxu0 0.0
    %114 = vmatprep.subr.mxu0 0.0
    %115 = vmatpush2.msra.mxu0 0.0
    %116 = vmatprep.subr.mxu0 0.0
    %117 = vmatpush2.msra.mxu0 0.0
    %118 = vmatprep.subr.mxu0 0.0
    %119 = vmatpush2.msra.mxu0 0.0
    %120 = vmatprep.subr.mxu0 0.0
    %121 = vmatpush2.msra.mxu0 0.0
    %122 = vmatprep.subr.mxu0 0.0
    %123 = vmatpush2.msra.mxu0 0.0
    %124 = vmatprep.mubr.f32.mxu0 0.0
    %125 = vmatmul.mubr.f32.gmra.mxu0 %v55
    %v126 = vpop.f32.mrf.mxu0
    %v127 = vadd.f32 0.0, %v126
    %v128 = vpop.f32.mrf.mxu0
    %129 = vmatprep.mubr.f32.mxu0 0.0
    %130 = vmatmul.mubr.f32.gmra.mxu0 %v58
    %v131 = vpop.f32.mrf.mxu0
    %v132 = vadd.f32 0.0, %v131
    %v133 = vpop.f32.mrf.mxu0
    %134 = vdwg.mxu0
    %137 = vrot.lane.b32.xlu0 %v31, 32
    %v138 = vpop.permute.xlu0 %137
    %139 = vrot.lane.b32.xlu0 %v32, 32
    %v140 = vpop.permute.xlu0 %139
    %v143 = vsel %vm53, %v127, %v138
    %v144 = vsel %vm53, %v132, %v140
    %v145 = vld [vmem:[#allocation2 + $0x30] sm:$0xff]
    %v146 = vld [vmem:[#allocation2 + $0x38] sm:$0xff]
    %vm147 = vcmask 130048
    %v149 = vsel %vm147, %v145, 0
    %v152 = vsel %vm147, %v146, 0
    %154 = vmatprep.subr.mxu0 0.0
    %155 = vmatpush1.msra.mxu0 0.0
    %156 = vmatprep.subr.mxu0 0.0
    %157 = vmatpush1.msra.mxu0 0.0
    %158 = vmatprep.subr.mxu0 0.0
    %159 = vmatpush1.msra.mxu0 0.0
    %160 = vmatprep.subr.mxu0 0.0
    %161 = vmatpush1.msra.mxu0 0.0
    %162 = vmatprep.subr.mxu0 0.0
    %163 = vmatpush1.msra.mxu0 0.0
    %164 = vmatprep.subr.mxu0 0.0
    %165 = vmatpush1.msra.mxu0 0.0
    %166 = vmatprep.subr.mxu0 0.0
    %167 = vmatpush1.msra.mxu0 0.0
    %168 = vmatprep.subr.mxu0 0.0
    %169 = vmatpush1.msra.mxu0 0.0
    %170 = vmatprep.subr.mxu0 0.0
    %171 = vmatpush1.msra.mxu0 0.0
    %172 = vmatprep.subr.mxu0 0.0
    %173 = vmatpush1.msra.mxu0 0.0
    %174 = vmatprep.subr.mxu0 0.0
    %175 = vmatpush1.msra.mxu0 0.0
    %176 = vmatprep.subr.mxu0 0.0
    %177 = vmatpush1.msra.mxu0 0.0
    %178 = vmatprep.subr.mxu0 0.0
    %179 = vmatpush1.msra.mxu0 0.0
    %180 = vmatprep.subr.mxu0 0.0
    %181 = vmatpush1.msra.mxu0 0.0
    %182 = vmatprep.subr.mxu0 0.0
    %183 = vmatpush1.msra.mxu0 %v144
    %184 = vmatprep.subr.mxu0 0.0
    %185 = vmatpush1.msra.mxu0 %v143
    %186 = vmatprep.subr.mxu0 0.0
    %187 = vmatpush2.msra.mxu0 0.0
    %188 = vmatprep.subr.mxu0 0.0
    %189 = vmatpush2.msra.mxu0 0.0
    %190 = vmatprep.subr.mxu0 0.0
    %191 = vmatpush2.msra.mxu0 0.0
    %192 = vmatprep.subr.mxu0 0.0
    %193 = vmatpush2.msra.mxu0 0.0
    %194 = vmatprep.subr.mxu0 0.0
    %195 = vmatpush2.msra.mxu0 0.0
    %196 = vmatprep.subr.mxu0 0.0
    %197 = vmatpush2.msra.mxu0 0.0
    %198 = vmatprep.subr.mxu0 0.0
    %199 = vmatpush2.msra.mxu0 0.0
    %200 = vmatprep.subr.mxu0 0.0
    %201 = vmatpush2.msra.mxu0 0.0
    %202 = vmatprep.subr.mxu0 0.0
    %203 = vmatpush2.msra.mxu0 0.0
    %204 = vmatprep.subr.mxu0 0.0
    %205 = vmatpush2.msra.mxu0 0.0
    %206 = vmatprep.subr.mxu0 0.0
    %207 = vmatpush2.msra.mxu0 0.0
    %208 = vmatprep.subr.mxu0 0.0
    %209 = vmatpush2.msra.mxu0 0.0
    %210 = vmatprep.subr.mxu0 0.0
    %211 = vmatpush2.msra.mxu0 0.0
    %212 = vmatprep.subr.mxu0 0.0
    %213 = vmatpush2.msra.mxu0 0.0
    %214 = vmatprep.subr.mxu0 0.0
    %215 = vmatpush2.msra.mxu0 0.0
    %216 = vmatprep.subr.mxu0 0.0
    %217 = vmatpush2.msra.mxu0 0.0
    %218 = vmatprep.mubr.f32.mxu0 0.0
    %219 = vmatmul.mubr.f32.gmra.mxu0 %v149
    %v220 = vpop.f32.mrf.mxu0
    %v221 = vadd.f32 0.0, %v220
    %v222 = vpop.f32.mrf.mxu0
    %223 = vmatprep.mubr.f32.mxu0 0.0
    %224 = vmatmul.mubr.f32.gmra.mxu0 %v152
    %v225 = vpop.f32.mrf.mxu0
    %v226 = vadd.f32 0.0, %v225
    %v227 = vpop.f32.mrf.mxu0
    %228 = vdwg.mxu0
    %v229 = vld [vmem:[#allocation2 + $0x40] sm:$0xff]
    %v230 = vld [vmem:[#allocation2 + $0x48] sm:$0xff]
    %v232 = vsel %vm147, %v229, 0
    %v235 = vsel %vm147, %v230, 0
    %237 = vmatprep.subr.mxu0 0.0
    %238 = vmatpush1.msra.mxu0 0.0
    %239 = vmatprep.subr.mxu0 0.0
    %240 = vmatpush1.msra.mxu0 0.0
    %241 = vmatprep.subr.mxu0 0.0
    %242 = vmatpush1.msra.mxu0 0.0
    %243 = vmatprep.subr.mxu0 0.0
    %244 = vmatpush1.msra.mxu0 0.0
    %245 = vmatprep.subr.mxu0 0.0
    %246 = vmatpush1.msra.mxu0 0.0
    %247 = vmatprep.subr.mxu0 0.0
    %248 = vmatpush1.msra.mxu0 0.0
    %249 = vmatprep.subr.mxu0 0.0
    %250 = vmatpush1.msra.mxu0 0.0
    %251 = vmatprep.subr.mxu0 0.0
    %252 = vmatpush1.msra.mxu0 0.0
    %253 = vmatprep.subr.mxu0 0.0
    %254 = vmatpush1.msra.mxu0 0.0
    %255 = vmatprep.subr.mxu0 0.0
    %256 = vmatpush1.msra.mxu0 0.0
    %257 = vmatprep.subr.mxu0 0.0
    %258 = vmatpush1.msra.mxu0 0.0
    %259 = vmatprep.subr.mxu0 0.0
    %260 = vmatpush1.msra.mxu0 0.0
    %261 = vmatprep.subr.mxu0 0.0
    %262 = vmatpush1.msra.mxu0 0.0
    %263 = vmatprep.subr.mxu0 0.0
    %264 = vmatpush1.msra.mxu0 0.0
    %265 = vmatprep.subr.mxu0 0.0
    %266 = vmatpush1.msra.mxu0 %v144
    %267 = vmatprep.subr.mxu0 0.0
    %268 = vmatpush1.msra.mxu0 %v143
    %269 = vmatprep.subr.mxu0 0.0
    %270 = vmatpush2.msra.mxu0 0.0
    %271 = vmatprep.subr.mxu0 0.0
    %272 = vmatpush2.msra.mxu0 0.0
    %273 = vmatprep.subr.mxu0 0.0
    %274 = vmatpush2.msra.mxu0 0.0
    %275 = vmatprep.subr.mxu0 0.0
    %276 = vmatpush2.msra.mxu0 0.0
    %277 = vmatprep.subr.mxu0 0.0
    %278 = vmatpush2.msra.mxu0 0.0
    %279 = vmatprep.subr.mxu0 0.0
    %280 = vmatpush2.msra.mxu0 0.0
    %281 = vmatprep.subr.mxu0 0.0
    %282 = vmatpush2.msra.mxu0 0.0
    %283 = vmatprep.subr.mxu0 0.0
    %284 = vmatpush2.msra.mxu0 0.0
    %285 = vmatprep.subr.mxu0 0.0
    %286 = vmatpush2.msra.mxu0 0.0
    %287 = vmatprep.subr.mxu0 0.0
    %288 = vmatpush2.msra.mxu0 0.0
    %289 = vmatprep.subr.mxu0 0.0
    %290 = vmatpush2.msra.mxu0 0.0
    %291 = vmatprep.subr.mxu0 0.0
    %292 = vmatpush2.msra.mxu0 0.0
    %293 = vmatprep.subr.mxu0 0.0
    %294 = vmatpush2.msra.mxu0 0.0
    %295 = vmatprep.subr.mxu0 0.0
    %296 = vmatpush2.msra.mxu0 0.0
    %297 = vmatprep.subr.mxu0 0.0
    %298 = vmatpush2.msra.mxu0 0.0
    %299 = vmatprep.subr.mxu0 0.0
    %300 = vmatpush2.msra.mxu0 0.0
    %301 = vmatprep.mubr.f32.mxu0 0.0
    %302 = vmatmul.mubr.f32.gmra.mxu0 %v232
    %v303 = vpop.f32.mrf.mxu0
    %v304 = vadd.f32 0.0, %v303
    %v305 = vpop.f32.mrf.mxu0
    %306 = vmatprep.mubr.f32.mxu0 0.0
    %307 = vmatmul.mubr.f32.gmra.mxu0 %v235
    %v308 = vpop.f32.mrf.mxu0
    %v309 = vadd.f32 0.0, %v308
    %v310 = vpop.f32.mrf.mxu0
    %311 = vdwg.mxu0
    %v312 = vld [vmem:[#allocation2 + $0x98] sm:$0xff]
    %v313 = vld [vmem:[#allocation2 + $0xa0] sm:$0xff]
    %v314 = vld [vmem:[#allocation2 + $0xa8] sm:$0xff]
    %v315 = vld [vmem:[#allocation2 + $0xb0] sm:$0xff]
    %v316 = vld [vmem:[#allocation2 + $0xb8] sm:$0xff]
    %v317 = vld [vmem:[#allocation2 + $0xc0] sm:$0xff]
    %v318 = vld [vmem:[#allocation2 + $0xc8] sm:$0xff]
    %v319 = vld [vmem:[#allocation2 + $0xd0] sm:$0xff]
    %v320 = vld [vmem:[#allocation2 + $0xd8] sm:$0xff]
    %v321 = vld [vmem:[#allocation2 + $0xe0] sm:$0xff]
    %v322 = vld [vmem:[#allocation2 + $0xe8] sm:$0xff]
    %v323 = vld [vmem:[#allocation2 + $0xf0] sm:$0xff]
    %v324 = vld [vmem:[#allocation2 + $0xf8] sm:$0xff]
    %v325 = vld [vmem:[#allocation2 + $0x100] sm:$0xff]
    %v326 = vld [vmem:[#allocation2 + $0x108] sm:$0xff]
    %v327 = vld [vmem:[#allocation2 + $0x110] sm:$0xff]
    %v328 = vld [vmem:[#allocation2 + $0x118] sm:$0xff]
    %v329 = vld [vmem:[#allocation2 + $0x120] sm:$0xff]
    %vm330 = vcmask 588800
    %v332 = vsel %vm330, %v143, 0
    %v335 = vsel %vm330, %v144, 0
    %337 = vmatprep.subr.mxu0 0.0
    %338 = vmatpush1.msra.mxu0 0.0
    %339 = vmatprep.subr.mxu0 0.0
    %340 = vmatpush1.msra.mxu0 0.0
    %341 = vmatprep.subr.mxu0 0.0
    %342 = vmatpush1.msra.mxu0 0.0
    %343 = vmatprep.subr.mxu0 0.0
    %344 = vmatpush1.msra.mxu0 0.0
    %345 = vmatprep.subr.mxu0 0.0
    %346 = vmatpush1.msra.mxu0 0.0
    %347 = vmatprep.subr.mxu0 0.0
    %348 = vmatpush1.msra.mxu0 0.0
    %349 = vmatprep.subr.mxu0 0.0
    %350 = vmatpush1.msra.mxu0 0.0
    %351 = vmatprep.subr.mxu0 0.0
    %352 = vmatpush1.msra.mxu0 %v329
    %353 = vmatprep.subr.mxu0 0.0
    %354 = vmatpush1.msra.mxu0 %v328
    %355 = vmatprep.subr.mxu0 0.0
    %356 = vmatpush1.msra.mxu0 %v327
    %357 = vmatprep.subr.mxu0 0.0
    %358 = vmatpush1.msra.mxu0 %v326
    %359 = vmatprep.subr.mxu0 0.0
    %360 = vmatpush1.msra.mxu0 %v325
    %361 = vmatprep.subr.mxu0 0.0
    %362 = vmatpush1.msra.mxu0 %v324
    %363 = vmatprep.subr.mxu0 0.0
    %364 = vmatpush1.msra.mxu0 %v323
    %365 = vmatprep.subr.mxu0 0.0
    %366 = vmatpush1.msra.mxu0 %v322
    %367 = vmatprep.subr.mxu0 0.0
    %368 = vmatpush1.msra.mxu0 %v321
    %369 = vmatprep.subr.mxu0 0.0
    %370 = vmatpush2.msra.mxu0 0.0
    %371 = vmatprep.subr.mxu0 0.0
    %372 = vmatpush2.msra.mxu0 0.0
    %373 = vmatprep.subr.mxu0 0.0
    %374 = vmatpush2.msra.mxu0 0.0
    %375 = vmatprep.subr.mxu0 0.0
    %376 = vmatpush2.msra.mxu0 0.0
    %377 = vmatprep.subr.mxu0 0.0
    %378 = vmatpush2.msra.mxu0 0.0
    %379 = vmatprep.subr.mxu0 0.0
    %380 = vmatpush2.msra.mxu0 0.0
    %381 = vmatprep.subr.mxu0 0.0
    %382 = vmatpush2.msra.mxu0 0.0
    %383 = vmatprep.subr.mxu0 0.0
    %384 = vmatpush2.msra.mxu0 0.0
    %385 = vmatprep.subr.mxu0 0.0
    %386 = vmatpush2.msra.mxu0 0.0
    %387 = vmatprep.subr.mxu0 0.0
    %388 = vmatpush2.msra.mxu0 0.0
    %389 = vmatprep.subr.mxu0 0.0
    %390 = vmatpush2.msra.mxu0 0.0
    %391 = vmatprep.subr.mxu0 0.0
    %392 = vmatpush2.msra.mxu0 0.0
    %393 = vmatprep.subr.mxu0 0.0
    %394 = vmatpush2.msra.mxu0 0.0
    %395 = vmatprep.subr.mxu0 0.0
    %396 = vmatpush2.msra.mxu0 0.0
    %397 = vmatprep.subr.mxu0 0.0
    %398 = vmatpush2.msra.mxu0 0.0
    %399 = vmatprep.subr.mxu0 0.0
    %400 = vmatpush2.msra.mxu0 0.0
    %401 = vmatprep.mubr.f32.mxu0 0.0
    %402 = vmatmul.mubr.f32.gmra.mxu0 %v332
    %v403 = vpop.f32.mrf.mxu0
    %v404 = vadd.f32 0.0, %v403
    %v405 = vpop.f32.mrf.mxu0
    %406 = vmatprep.mubr.f32.mxu0 0.0
    %407 = vmatmul.mubr.f32.gmra.mxu0 %v335
    %v408 = vpop.f32.mrf.mxu0
    %v409 = vadd.f32 0.0, %v408
    %v410 = vpop.f32.mrf.mxu0
    %411 = vdwg.mxu0
    %v413 = vsel %vm330, %v221, 0
    %v416 = vsel %vm330, %v226, 0
    %418 = vmatprep.subr.mxu0 0.0
    %419 = vmatpush1.msra.mxu0 0.0
    %420 = vmatprep.subr.mxu0 0.0
    %421 = vmatpush1.msra.mxu0 0.0
    %422 = vmatprep.subr.mxu0 0.0
    %423 = vmatpush1.msra.mxu0 0.0
    %424 = vmatprep.subr.mxu0 0.0
    %425 = vmatpush1.msra.mxu0 0.0
    %426 = vmatprep.subr.mxu0 0.0
    %427 = vmatpush1.msra.mxu0 0.0
    %428 = vmatprep.subr.mxu0 0.0
    %429 = vmatpush1.msra.mxu0 0.0
    %430 = vmatprep.subr.mxu0 0.0
    %431 = vmatpush1.msra.mxu0 0.0
    %432 = vmatprep.subr.mxu0 0.0
    %433 = vmatpush1.msra.mxu0 %v320
    %434 = vmatprep.subr.mxu0 0.0
    %435 = vmatpush1.msra.mxu0 %v319
    %436 = vmatprep.subr.mxu0 0.0
    %437 = vmatpush1.msra.mxu0 %v318
    %438 = vmatprep.subr.mxu0 0.0
    %439 = vmatpush1.msra.mxu0 %v317
    %440 = vmatprep.subr.mxu0 0.0
    %441 = vmatpush1.msra.mxu0 %v316
    %442 = vmatprep.subr.mxu0 0.0
    %443 = vmatpush1.msra.mxu0 %v315
    %444 = vmatprep.subr.mxu0 0.0
    %445 = vmatpush1.msra.mxu0 %v314
    %446 = vmatprep.subr.mxu0 0.0
    %447 = vmatpush1.msra.mxu0 %v313
    %448 = vmatprep.subr.mxu0 0.0
    %449 = vmatpush1.msra.mxu0 %v312
    %450 = vmatprep.subr.mxu0 0.0
    %451 = vmatpush2.msra.mxu0 0.0
    %452 = vmatprep.subr.mxu0 0.0
    %453 = vmatpush2.msra.mxu0 0.0
    %454 = vmatprep.subr.mxu0 0.0
    %455 = vmatpush2.msra.mxu0 0.0
    %456 = vmatprep.subr.mxu0 0.0
    %457 = vmatpush2.msra.mxu0 0.0
    %458 = vmatprep.subr.mxu0 0.0
    %459 = vmatpush2.msra.mxu0 0.0
    %460 = vmatprep.subr.mxu0 0.0
    %461 = vmatpush2.msra.mxu0 0.0
    %462 = vmatprep.subr.mxu0 0.0
    %463 = vmatpush2.msra.mxu0 0.0
    %464 = vmatprep.subr.mxu0 0.0
    %465 = vmatpush2.msra.mxu0 0.0
    %466 = vmatprep.subr.mxu0 0.0
    %467 = vmatpush2.msra.mxu0 0.0
    %468 = vmatprep.subr.mxu0 0.0
    %469 = vmatpush2.msra.mxu0 0.0
    %470 = vmatprep.subr.mxu0 0.0
    %471 = vmatpush2.msra.mxu0 0.0
    %472 = vmatprep.subr.mxu0 0.0
    %473 = vmatpush2.msra.mxu0 0.0
    %474 = vmatprep.subr.mxu0 0.0
    %475 = vmatpush2.msra.mxu0 0.0
    %476 = vmatprep.subr.mxu0 0.0
    %477 = vmatpush2.msra.mxu0 0.0
    %478 = vmatprep.subr.mxu0 0.0
    %479 = vmatpush2.msra.mxu0 0.0
    %480 = vmatprep.subr.mxu0 0.0
    %481 = vmatpush2.msra.mxu0 0.0
    %482 = vmatprep.mubr.f32.mxu0 0.0
    %483 = vmatmul.mubr.f32.gmra.mxu0 %v413
    %v484 = vpop.f32.mrf.mxu0
    %v485 = vadd.f32 %v404, %v484
    %v486 = vpop.f32.mrf.mxu0
    %487 = vmatprep.mubr.f32.mxu0 0.0
    %488 = vmatmul.mubr.f32.gmra.mxu0 %v416
    %v489 = vpop.f32.mrf.mxu0
    %v490 = vadd.f32 %v409, %v489
    %v491 = vpop.f32.mrf.mxu0
    %492 = vdwg.mxu0
    %v493 = vld [vmem:[#allocation2 + $0x128] sm:$0xff]
    %v494 = vld [vmem:[#allocation2 + $0x130] sm:$0xff]
    %v495 = vld [vmem:[#allocation2 + $0x138] sm:$0xff]
    %v496 = vld [vmem:[#allocation2 + $0x140] sm:$0xff]
    %v497 = vld [vmem:[#allocation2 + $0x148] sm:$0xff]
    %v498 = vld [vmem:[#allocation2 + $0x150] sm:$0xff]
    %v499 = vld [vmem:[#allocation2 + $0x158] sm:$0xff]
    %v500 = vld [vmem:[#allocation2 + $0x160] sm:$0xff]
    %v501 = vld [vmem:[#allocation2 + $0x168] sm:$0xff]
    %v503 = vsel %vm330, %v304, 0
    %v506 = vsel %vm330, %v309, 0
    %508 = vmatprep.subr.mxu0 0.0
    %509 = vmatpush1.msra.mxu0 0.0
    %510 = vmatprep.subr.mxu0 0.0
    %511 = vmatpush1.msra.mxu0 0.0
    %512 = vmatprep.subr.mxu0 0.0
    %513 = vmatpush1.msra.mxu0 0.0
    %514 = vmatprep.subr.mxu0 0.0
    %515 = vmatpush1.msra.mxu0 0.0
    %516 = vmatprep.subr.mxu0 0.0
    %517 = vmatpush1.msra.mxu0 0.0
    %518 = vmatprep.subr.mxu0 0.0
    %519 = vmatpush1.msra.mxu0 0.0
    %520 = vmatprep.subr.mxu0 0.0
    %521 = vmatpush1.msra.mxu0 0.0
    %522 = vmatprep.subr.mxu0 0.0
    %523 = vmatpush1.msra.mxu0 %v501
    %524 = vmatprep.subr.mxu0 0.0
    %525 = vmatpush1.msra.mxu0 %v500
    %526 = vmatprep.subr.mxu0 0.0
    %527 = vmatpush1.msra.mxu0 %v499
    %528 = vmatprep.subr.mxu0 0.0
    %529 = vmatpush1.msra.mxu0 %v498
    %530 = vmatprep.subr.mxu0 0.0
    %531 = vmatpush1.msra.mxu0 %v497
    %532 = vmatprep.subr.mxu0 0.0
    %533 = vmatpush1.msra.mxu0 %v496
    %534 = vmatprep.subr.mxu0 0.0
    %535 = vmatpush1.msra.mxu0 %v495
    %536 = vmatprep.subr.mxu0 0.0
    %537 = vmatpush1.msra.mxu0 %v494
    %538 = vmatprep.subr.mxu0 0.0
    %539 = vmatpush1.msra.mxu0 %v493
    %540 = vmatprep.subr.mxu0 0.0
    %541 = vmatpush2.msra.mxu0 0.0
    %542 = vmatprep.subr.mxu0 0.0
    %543 = vmatpush2.msra.mxu0 0.0
    %544 = vmatprep.subr.mxu0 0.0
    %545 = vmatpush2.msra.mxu0 0.0
    %546 = vmatprep.subr.mxu0 0.0
    %547 = vmatpush2.msra.mxu0 0.0
    %548 = vmatprep.subr.mxu0 0.0
    %549 = vmatpush2.msra.mxu0 0.0
    %550 = vmatprep.subr.mxu0 0.0
    %551 = vmatpush2.msra.mxu0 0.0
    %552 = vmatprep.subr.mxu0 0.0
    %553 = vmatpush2.msra.mxu0 0.0
    %554 = vmatprep.subr.mxu0 0.0
    %555 = vmatpush2.msra.mxu0 0.0
    %556 = vmatprep.subr.mxu0 0.0
    %557 = vmatpush2.msra.mxu0 0.0
    %558 = vmatprep.subr.mxu0 0.0
    %559 = vmatpush2.msra.mxu0 0.0
    %560 = vmatprep.subr.mxu0 0.0
    %561 = vmatpush2.msra.mxu0 0.0
    %562 = vmatprep.subr.mxu0 0.0
    %563 = vmatpush2.msra.mxu0 0.0
    %564 = vmatprep.subr.mxu0 0.0
    %565 = vmatpush2.msra.mxu0 0.0
    %566 = vmatprep.subr.mxu0 0.0
    %567 = vmatpush2.msra.mxu0 0.0
    %568 = vmatprep.subr.mxu0 0.0
    %569 = vmatpush2.msra.mxu0 0.0
    %570 = vmatprep.subr.mxu0 0.0
    %571 = vmatpush2.msra.mxu0 0.0
    %572 = vmatprep.mubr.f32.mxu0 0.0
    %573 = vmatmul.mubr.f32.gmra.mxu0 %v503
    %v574 = vpop.f32.mrf.mxu0
    %v575 = vadd.f32 0.0, %v574
    %v576 = vpop.f32.mrf.mxu0
    %577 = vmatprep.mubr.f32.mxu0 0.0
    %578 = vmatmul.mubr.f32.gmra.mxu0 %v506
    %v579 = vpop.f32.mrf.mxu0
    %v580 = vadd.f32 0.0, %v579
    %v581 = vpop.f32.mrf.mxu0
    %582 = vdwg.mxu0
    %v583 = vadd.f32 %v485, %v575
    %v584 = vadd.f32 %v490, %v580
    %v585 = vld [vmem:[#allocation2] sm:$0xff]
    %v586 = vld [vmem:[#allocation2 + $0x8] sm:$0xff]
    %v587 = vadd.f32 %v583, %v585
    %v588 = vadd.f32 %v584, %v586
    %v589 = vld [vmem:[#allocation2 + $0x1e8] sm:$0x3f]
    %v590 = vsel %vm53, %v587, 0.0
    %591 = vadd.xlane.f32.xlu0 %v590
    %v592 = vpop.xlane.xlu0 %591
    %v593 = vsel %vm53, %v588, 0.0
    %594 = vadd.xlane.f32.xlu0 %v593
    %v595 = vpop.xlane.xlu0 %594
    %v596 = vrcp.pop 32.0
    %v597 = vmul.f32 %v592, %v596
    %v598 = vmul.f32 %v595, %v596
    %v599 = vsub.f32 %v587, %v597
    %v600 = vsub.f32 %v588, %v598
    %v601 = vmul.f32 %v599, %v599
    %v602 = vmul.f32 %v600, %v600
    %v603 = vsel %vm53, %v601, 0.0
    %604 = vadd.xlane.f32.xlu0 %v603
    %v605 = vpop.xlane.xlu0 %604
    %v606 = vsel %vm53, %v602, 0.0
    %607 = vadd.xlane.f32.xlu0 %v606
    %v608 = vpop.xlane.xlu0 %607
    %v609 = vmul.f32 %v605, %v596
    %v610 = vmul.f32 %v608, %v596
    %v611 = vadd.f32 %v609, 1e-05
    %v612 = vadd.f32 %v610, 1e-05
    %v613 = vrsqrt.pop %v611
    %v614 = vrsqrt.pop %v612
    %v615 = vmul.f32 %v599, %v613
    %v616 = vmul.f32 %v600, %v614
    %v617 = vlaneseq
    %v618 = vshrl.u32 %v617, 7
    %v619 = vsub.s32 0, %v618
    %v620 = vrot.slane %v589, %v619
    %v621 = vmul.f32 %v615, %v620
    %v622 = vmul.f32 %v616, %v620
    %v623 = vlaneseq
    %v624 = vshrl.u32 %v623, 7
    %v625 = vsub.s32 1, %v624
    %v626 = vrot.slane %v589, %v625
    %v627 = vadd.f32 %v621, %v626
    %v628 = vadd.f32 %v622, %v626
    %v629 = vld [vmem:[#allocation2 + $0x198] sm:$0xff]
    %v630 = vld [vmem:[#allocation2 + $0x1a0] sm:$0xff]
    %v631 = vld [vmem:[#allocation2 + $0x1a8] sm:$0xff]
    %v632 = vld [vmem:[#allocation2 + $0x1b0] sm:$0xff]
    %v633 = vld [vmem:[#allocation2 + $0x1b8] sm:$0x1]
    %v634 = vlaneseq
    %v635 = vshrl.u32 %v634, 7
    %v636 = vsub.s32 0, %v635
    %v637 = vrot.slane %v633, %v636
    %v639 = vsel %vm53, %v627, 0
    %v642 = vsel %vm53, %v628, 0
    %644 = vmatprep.subr.mxu0 0.0
    %645 = vmatpush1.msra.mxu0 0.0
    %646 = vmatprep.subr.mxu0 0.0
    %647 = vmatpush1.msra.mxu0 0.0
    %648 = vmatprep.subr.mxu0 0.0
    %649 = vmatpush1.msra.mxu0 0.0
    %650 = vmatprep.subr.mxu0 0.0
    %651 = vmatpush1.msra.mxu0 0.0
    %652 = vmatprep.subr.mxu0 0.0
    %653 = vmatpush1.msra.mxu0 0.0
    %654 = vmatprep.subr.mxu0 0.0
    %655 = vmatpush1.msra.mxu0 0.0
    %656 = vmatprep.subr.mxu0 0.0
    %657 = vmatpush1.msra.mxu0 0.0
    %658 = vmatprep.subr.mxu0 0.0
    %659 = vmatpush1.msra.mxu0 0.0
    %660 = vmatprep.subr.mxu0 0.0
    %661 = vmatpush1.msra.mxu0 0.0
    %662 = vmatprep.subr.mxu0 0.0
    %663 = vmatpush1.msra.mxu0 0.0
    %664 = vmatprep.subr.mxu0 0.0
    %665 = vmatpush1.msra.mxu0 0.0
    %666 = vmatprep.subr.mxu0 0.0
    %667 = vmatpush1.msra.mxu0 0.0
    %668 = vmatprep.subr.mxu0 0.0
    %669 = vmatpush1.msra.mxu0 %v632
    %670 = vmatprep.subr.mxu0 0.0
    %671 = vmatpush1.msra.mxu0 %v631
    %672 = vmatprep.subr.mxu0 0.0
    %673 = vmatpush1.msra.mxu0 %v630
    %674 = vmatprep.subr.mxu0 0.0
    %675 = vmatpush1.msra.mxu0 %v629
    %676 = vmatprep.subr.mxu0 0.0
    %677 = vmatpush2.msra.mxu0 0.0
    %678 = vmatprep.subr.mxu0 0.0
    %679 = vmatpush2.msra.mxu0 0.0
    %680 = vmatprep.subr.mxu0 0.0
    %681 = vmatpush2.msra.mxu0 0.0
    %682 = vmatprep.subr.mxu0 0.0
    %683 = vmatpush2.msra.mxu0 0.0
    %684 = vmatprep.subr.mxu0 0.0
    %685 = vmatpush2.msra.mxu0 0.0
    %686 = vmatprep.subr.mxu0 0.0
    %687 = vmatpush2.msra.mxu0 0.0
    %688 = vmatprep.subr.mxu0 0.0
    %689 = vmatpush2.msra.mxu0 0.0
    %690 = vmatprep.subr.mxu0 0.0
    %691 = vmatpush2.msra.mxu0 0.0
    %692 = vmatprep.subr.mxu0 0.0
    %693 = vmatpush2.msra.mxu0 0.0
    %694 = vmatprep.subr.mxu0 0.0
    %695 = vmatpush2.msra.mxu0 0.0
    %696 = vmatprep.subr.mxu0 0.0
    %697 = vmatpush2.msra.mxu0 0.0
    %698 = vmatprep.subr.mxu0 0.0
    %699 = vmatpush2.msra.mxu0 0.0
    %700 = vmatprep.subr.mxu0 0.0
    %701 = vmatpush2.msra.mxu0 0.0
    %702 = vmatprep.subr.mxu0 0.0
    %703 = vmatpush2.msra.mxu0 0.0
    %704 = vmatprep.subr.mxu0 0.0
    %705 = vmatpush2.msra.mxu0 0.0
    %706 = vmatprep.subr.mxu0 0.0
    %707 = vmatpush2.msra.mxu0 0.0
    %708 = vmatprep.mubr.f32.mxu0 0.0
    %709 = vmatmul.mubr.f32.gmra.mxu0 %v639
    %v710 = vpop.f32.mrf.mxu0
    %v711 = vadd.f32 %v637, %v710
    %v712 = vpop.f32.mrf.mxu0
    %713 = vmatprep.mubr.f32.mxu0 0.0
    %714 = vmatmul.mubr.f32.gmra.mxu0 %v642
    %v715 = vpop.f32.mrf.mxu0
    %v716 = vadd.f32 %v637, %v715
    %v717 = vpop.f32.mrf.mxu0
    %718 = vdwg.mxu0
    %v719 = vld [vmem:[#allocation2 + $0x10] sm:$0x3]
    %v720 = vld [vmem:[#allocation2 + $0x18] sm:$0x3]
    %v721 = vld [vmem:[#allocation2 + $0x20] sm:$0xff]
    %v722 = vld [vmem:[#allocation2 + $0x28] sm:$0xff]
    %v724 = vsel %vm147, %v719, 0
    %726 = vmatprep.subr.mxu0 0.0
    %727 = vmatpush1.msra.mxu0 0.0
    %728 = vmatprep.subr.mxu0 0.0
    %729 = vmatpush1.msra.mxu0 0.0
    %730 = vmatprep.subr.mxu0 0.0
    %731 = vmatpush1.msra.mxu0 0.0
    %732 = vmatprep.subr.mxu0 0.0
    %733 = vmatpush1.msra.mxu0 0.0
    %734 = vmatprep.subr.mxu0 0.0
    %735 = vmatpush1.msra.mxu0 0.0
    %736 = vmatprep.subr.mxu0 0.0
    %737 = vmatpush1.msra.mxu0 0.0
    %738 = vmatprep.subr.mxu0 0.0
    %739 = vmatpush1.msra.mxu0 0.0
    %740 = vmatprep.subr.mxu0 0.0
    %741 = vmatpush1.msra.mxu0 0.0
    %742 = vmatprep.subr.mxu0 0.0
    %743 = vmatpush1.msra.mxu0 0.0
    %744 = vmatprep.subr.mxu0 0.0
    %745 = vmatpush1.msra.mxu0 0.0
    %746 = vmatprep.subr.mxu0 0.0
    %747 = vmatpush1.msra.mxu0 0.0
    %748 = vmatprep.subr.mxu0 0.0
    %749 = vmatpush1.msra.mxu0 0.0
    %750 = vmatprep.subr.mxu0 0.0
    %751 = vmatpush1.msra.mxu0 0.0
    %752 = vmatprep.subr.mxu0 0.0
    %753 = vmatpush1.msra.mxu0 0.0
    %754 = vmatprep.subr.mxu0 0.0
    %755 = vmatpush1.msra.mxu0 %v628
    %756 = vmatprep.subr.mxu0 0.0
    %757 = vmatpush1.msra.mxu0 %v627
    %758 = vmatprep.subr.mxu0 0.0
    %759 = vmatpush2.msra.mxu0 0.0
    %760 = vmatprep.subr.mxu0 0.0
    %761 = vmatpush2.msra.mxu0 0.0
    %762 = vmatprep.subr.mxu0 0.0
    %763 = vmatpush2.msra.mxu0 0.0
    %764 = vmatprep.subr.mxu0 0.0
    %765 = vmatpush2.msra.mxu0 0.0
    %766 = vmatprep.subr.mxu0 0.0
    %767 = vmatpush2.msra.mxu0 0.0
    %768 = vmatprep.subr.mxu0 0.0
    %769 = vmatpush2.msra.mxu0 0.0
    %770 = vmatprep.subr.mxu0 0.0
    %771 = vmatpush2.msra.mxu0 0.0
    %772 = vmatprep.subr.mxu0 0.0
    %773 = vmatpush2.msra.mxu0 0.0
    %774 = vmatprep.subr.mxu0 0.0
    %775 = vmatpush2.msra.mxu0 0.0
    %776 = vmatprep.subr.mxu0 0.0
    %777 = vmatpush2.msra.mxu0 0.0
    %778 = vmatprep.subr.mxu0 0.0
    %779 = vmatpush2.msra.mxu0 0.0
    %780 = vmatprep.subr.mxu0 0.0
    %781 = vmatpush2.msra.mxu0 0.0
    %782 = vmatprep.subr.mxu0 0.0
    %783 = vmatpush2.msra.mxu0 0.0
    %784 = vmatprep.subr.mxu0 0.0
    %785 = vmatpush2.msra.mxu0 0.0
    %786 = vmatprep.subr.mxu0 0.0
    %787 = vmatpush2.msra.mxu0 0.0
    %788 = vmatprep.subr.mxu0 0.0
    %789 = vmatpush2.msra.mxu0 0.0
    %790 = vmatprep.mubr.f32.mxu0 0.0
    %791 = vmatmul.mubr.f32.gmra.mxu0 %v724
    %v792 = vpop.f32.mrf.mxu0
    %v793 = vadd.f32 0.0, %v792
    %v794 = vpop.f32.mrf.mxu0
    %795 = vdwg.mxu0
    %v796 = vld [vmem:[#allocation2 + $0x170] sm:$0xff]
    %v797 = vld [vmem:[#allocation2 + $0x178] sm:$0xff]
    %v798 = vld [vmem:[#allocation2 + $0x180] sm:$0xff]
    %v799 = vld [vmem:[#allocation2 + $0x188] sm:$0xff]
    %v800 = vld [vmem:[#allocation2 + $0x190] sm:$0x1]
    %v801 = vlaneseq
    %v802 = vshrl.u32 %v801, 7
    %v803 = vsub.s32 0, %v802
    %v804 = vrot.slane %v800, %v803
    %v806 = vsel %vm53, %v793, 0
    %808 = vmatprep.subr.mxu0 0.0
    %809 = vmatpush1.msra.mxu0 0.0
    %810 = vmatprep.subr.mxu0 0.0
    %811 = vmatpush1.msra.mxu0 0.0
    %812 = vmatprep.subr.mxu0 0.0
    %813 = vmatpush1.msra.mxu0 0.0
    %814 = vmatprep.subr.mxu0 0.0
    %815 = vmatpush1.msra.mxu0 0.0
    %816 = vmatprep.subr.mxu0 0.0
    %817 = vmatpush1.msra.mxu0 0.0
    %818 = vmatprep.subr.mxu0 0.0
    %819 = vmatpush1.msra.mxu0 0.0
    %820 = vmatprep.subr.mxu0 0.0
    %821 = vmatpush1.msra.mxu0 0.0
    %822 = vmatprep.subr.mxu0 0.0
    %823 = vmatpush1.msra.mxu0 0.0
    %824 = vmatprep.subr.mxu0 0.0
    %825 = vmatpush1.msra.mxu0 0.0
    %826 = vmatprep.subr.mxu0 0.0
    %827 = vmatpush1.msra.mxu0 0.0
    %828 = vmatprep.subr.mxu0 0.0
    %829 = vmatpush1.msra.mxu0 0.0
    %830 = vmatprep.subr.mxu0 0.0
    %831 = vmatpush1.msra.mxu0 0.0
    %832 = vmatprep.subr.mxu0 0.0
    %833 = vmatpush1.msra.mxu0 %v799
    %834 = vmatprep.subr.mxu0 0.0
    %835 = vmatpush1.msra.mxu0 %v798
    %836 = vmatprep.subr.mxu0 0.0
    %837 = vmatpush1.msra.mxu0 %v797
    %838 = vmatprep.subr.mxu0 0.0
    %839 = vmatpush1.msra.mxu0 %v796
    %840 = vmatprep.subr.mxu0 0.0
    %841 = vmatpush2.msra.mxu0 0.0
    %842 = vmatprep.subr.mxu0 0.0
    %843 = vmatpush2.msra.mxu0 0.0
    %844 = vmatprep.subr.mxu0 0.0
    %845 = vmatpush2.msra.mxu0 0.0
    %846 = vmatprep.subr.mxu0 0.0
    %847 = vmatpush2.msra.mxu0 0.0
    %848 = vmatprep.subr.mxu0 0.0
    %849 = vmatpush2.msra.mxu0 0.0
    %850 = vmatprep.subr.mxu0 0.0
    %851 = vmatpush2.msra.mxu0 0.0
    %852 = vmatprep.subr.mxu0 0.0
    %853 = vmatpush2.msra.mxu0 0.0
    %854 = vmatprep.subr.mxu0 0.0
    %855 = vmatpush2.msra.mxu0 0.0
    %856 = vmatprep.subr.mxu0 0.0
    %857 = vmatpush2.msra.mxu0 0.0
    %858 = vmatprep.subr.mxu0 0.0
    %859 = vmatpush2.msra.mxu0 0.0
    %860 = vmatprep.subr.mxu0 0.0
    %861 = vmatpush2.msra.mxu0 0.0
    %862 = vmatprep.subr.mxu0 0.0
    %863 = vmatpush2.msra.mxu0 0.0
    %864 = vmatprep.subr.mxu0 0.0
    %865 = vmatpush2.msra.mxu0 0.0
    %866 = vmatprep.subr.mxu0 0.0
    %867 = vmatpush2.msra.mxu0 0.0
    %868 = vmatprep.subr.mxu0 0.0
    %869 = vmatpush2.msra.mxu0 0.0
    %870 = vmatprep.subr.mxu0 0.0
    %871 = vmatpush2.msra.mxu0 0.0
    %872 = vmatprep.mubr.f32.mxu0 0.0
    %873 = vmatmul.mubr.f32.gmra.mxu0 %v806
    %v874 = vpop.f32.mrf.mxu0
    %v875 = vadd.f32 %v804, %v874
    %v876 = vpop.f32.mrf.mxu0
    %877 = vdwg.mxu0
    %v878 = vmul.f32 %v875, 0.35355338
    %vm879 = vcmask 15360
    %v881 = vsel %vm879, %v721, 0
    %v884 = vsel %vm879, %v722, 0
    %vm886 = vcmask 1041408
    %v888 = vsel %vm886, %v878, 0
    %890 = vmatprep.subr.mxu0 0.0
    %891 = vmatpush1.msra.mxu0 0.0
    %892 = vmatprep.subr.mxu0 0.0
    %893 = vmatpush1.msra.mxu0 0.0
    %894 = vmatprep.subr.mxu0 0.0
    %895 = vmatpush1.msra.mxu0 0.0
    %896 = vmatprep.subr.mxu0 0.0
    %897 = vmatpush1.msra.mxu0 0.0
    %898 = vmatprep.subr.mxu0 0.0
    %899 = vmatpush1.msra.mxu0 0.0
    %900 = vmatprep.subr.mxu0 0.0
    %901 = vmatpush1.msra.mxu0 0.0
    %902 = vmatprep.subr.mxu0 0.0
    %903 = vmatpush1.msra.mxu0 0.0
    %904 = vmatprep.subr.mxu0 0.0
    %905 = vmatpush1.msra.mxu0 0.0
    %906 = vmatprep.subr.mxu0 0.0
    %907 = vmatpush1.msra.mxu0 0.0
    %908 = vmatprep.subr.mxu0 0.0
    %909 = vmatpush1.msra.mxu0 0.0
    %910 = vmatprep.subr.mxu0 0.0
    %911 = vmatpush1.msra.mxu0 0.0
    %912 = vmatprep.subr.mxu0 0.0
    %913 = vmatpush1.msra.mxu0 0.0
    %914 = vmatprep.subr.mxu0 0.0
    %915 = vmatpush1.msra.mxu0 0.0
    %916 = vmatprep.subr.mxu0 0.0
    %917 = vmatpush1.msra.mxu0 0.0
    %918 = vmatprep.subr.mxu0 0.0
    %919 = vmatpush1.msra.mxu0 0.0
    %920 = vmatprep.subr.mxu0 0.0
    %921 = vmatpush1.msra.mxu0 %v888
    %922 = vmatprep.subr.mxu0 0.0
    %923 = vmatpush2.msra.mxu0 0.0
    %924 = vmatprep.subr.mxu0 0.0
    %925 = vmatpush2.msra.mxu0 0.0
    %926 = vmatprep.subr.mxu0 0.0
    %927 = vmatpush2.msra.mxu0 0.0
    %928 = vmatprep.subr.mxu0 0.0
    %929 = vmatpush2.msra.mxu0 0.0
    %930 = vmatprep.subr.mxu0 0.0
    %931 = vmatpush2.msra.mxu0 0.0
    %932 = vmatprep.subr.mxu0 0.0
    %933 = vmatpush2.msra.mxu0 0.0
    %934 = vmatprep.subr.mxu0 0.0
    %935 = vmatpush2.msra.mxu0 0.0
    %936 = vmatprep.subr.mxu0 0.0
    %937 = vmatpush2.msra.mxu0 0.0
    %938 = vmatprep.subr.mxu0 0.0
    %939 = vmatpush2.msra.mxu0 0.0
    %940 = vmatprep.subr.mxu0 0.0
    %941 = vmatpush2.msra.mxu0 0.0
    %942 = vmatprep.subr.mxu0 0.0
    %943 = vmatpush2.msra.mxu0 0.0
    %944 = vmatprep.subr.mxu0 0.0
    %945 = vmatpush2.msra.mxu0 0.0
    %946 = vmatprep.subr.mxu0 0.0
    %947 = vmatpush2.msra.mxu0 0.0
    %948 = vmatprep.subr.mxu0 0.0
    %949 = vmatpush2.msra.mxu0 0.0
    %950 = vmatprep.subr.mxu0 0.0
    %951 = vmatpush2.msra.mxu0 0.0
    %952 = vmatprep.subr.mxu0 0.0
    %953 = vmatpush2.msra.mxu0 0.0
    %954 = vmatprep.mubr.f32.mxu0 0.0
    %955 = vmatmul.mubr.f32.gmra.mxu0 %v881
    %v956 = vpop.f32.mrf.mxu0
    %v957 = vadd.f32 0.0, %v956
    %v958 = vpop.f32.mrf.mxu0
    %959 = vmatprep.mubr.f32.mxu0 0.0
    %960 = vmatmul.mubr.f32.gmra.mxu0 %v884
    %v961 = vpop.f32.mrf.mxu0
    %v962 = vadd.f32 0.0, %v961
    %v963 = vpop.f32.mrf.mxu0
    %964 = vdwg.mxu0
    %v965 = vmul.f32 %v711, %v957
    %v966 = vmul.f32 %v716, %v962
    %v967 = vld [vmem:[#allocation2 + $0x50] sm:$0xff]
    %v968 = vld [vmem:[#allocation2 + $0x58] sm:$0xff]
    %v969 = vld [vmem:[#allocation2 + $0x60] sm:$0xff]
    %v970 = vld [vmem:[#allocation2 + $0x68] sm:$0xff]
    %v972 = vsel %vm53, %v965, 0
    %v975 = vsel %vm53, %v966, 0
    %977 = vmatprep.subr.mxu0 0.0
    %978 = vmatpush1.msra.mxu0 0.0
    %979 = vmatprep.subr.mxu0 0.0
    %980 = vmatpush1.msra.mxu0 0.0
    %981 = vmatprep.subr.mxu0 0.0
    %982 = vmatpush1.msra.mxu0 0.0
    %983 = vmatprep.subr.mxu0 0.0
    %984 = vmatpush1.msra.mxu0 0.0
    %985 = vmatprep.subr.mxu0 0.0
    %986 = vmatpush1.msra.mxu0 0.0
    %987 = vmatprep.subr.mxu0 0.0
    %988 = vmatpush1.msra.mxu0 0.0
    %989 = vmatprep.subr.mxu0 0.0
    %990 = vmatpush1.msra.mxu0 0.0
    %991 = vmatprep.subr.mxu0 0.0
    %992 = vmatpush1.msra.mxu0 0.0
    %993 = vmatprep.subr.mxu0 0.0
    %994 = vmatpush1.msra.mxu0 0.0
    %995 = vmatprep.subr.mxu0 0.0
    %996 = vmatpush1.msra.mxu0 0.0
    %997 = vmatprep.subr.mxu0 0.0
    %998 = vmatpush1.msra.mxu0 0.0
    %999 = vmatprep.subr.mxu0 0.0
    %1000 = vmatpush1.msra.mxu0 0.0
    %1001 = vmatprep.subr.mxu0 0.0
    %1002 = vmatpush1.msra.mxu0 %v970
    %1003 = vmatprep.subr.mxu0 0.0
    %1004 = vmatpush1.msra.mxu0 %v969
    %1005 = vmatprep.subr.mxu0 0.0
    %1006 = vmatpush1.msra.mxu0 %v968
    %1007 = vmatprep.subr.mxu0 0.0
    %1008 = vmatpush1.msra.mxu0 %v967
    %1009 = vmatprep.subr.mxu0 0.0
    %1010 = vmatpush2.msra.mxu0 0.0
    %1011 = vmatprep.subr.mxu0 0.0
    %1012 = vmatpush2.msra.mxu0 0.0
    %1013 = vmatprep.subr.mxu0 0.0
    %1014 = vmatpush2.msra.mxu0 0.0
    %1015 = vmatprep.subr.mxu0 0.0
    %1016 = vmatpush2.msra.mxu0 0.0
    %1017 = vmatprep.subr.mxu0 0.0
    %1018 = vmatpush2.msra.mxu0 0.0
    %1019 = vmatprep.subr.mxu0 0.0
    %1020 = vmatpush2.msra.mxu0 0.0
    %1021 = vmatprep.subr.mxu0 0.0
    %1022 = vmatpush2.msra.mxu0 0.0
    %1023 = vmatprep.subr.mxu0 0.0
    %1024 = vmatpush2.msra.mxu0 0.0
    %1025 = vmatprep.subr.mxu0 0.0
    %1026 = vmatpush2.msra.mxu0 0.0
    %1027 = vmatprep.subr.mxu0 0.0
    %1028 = vmatpush2.msra.mxu0 0.0
    %1029 = vmatprep.subr.mxu0 0.0
    %1030 = vmatpush2.msra.mxu0 0.0
    %1031 = vmatprep.subr.mxu0 0.0
    %1032 = vmatpush2.msra.mxu0 0.0
    %1033 = vmatprep.subr.mxu0 0.0
    %1034 = vmatpush2.msra.mxu0 0.0
    %1035 = vmatprep.subr.mxu0 0.0
    %1036 = vmatpush2.msra.mxu0 0.0
    %1037 = vmatprep.subr.mxu0 0.0
    %1038 = vmatpush2.msra.mxu0 0.0
    %1039 = vmatprep.subr.mxu0 0.0
    %1040 = vmatpush2.msra.mxu0 0.0
    %1041 = vmatprep.mubr.f32.mxu0 0.0
    %1042 = vmatmul.mubr.f32.gmra.mxu0 %v972
    %v1043 = vpop.f32.mrf.mxu0
    %v1044 = vadd.f32 0.0, %v1043
    %v1045 = vpop.f32.mrf.mxu0
    %1046 = vmatprep.mubr.f32.mxu0 0.0
    %1047 = vmatmul.mubr.f32.gmra.mxu0 %v975
    %v1048 = vpop.f32.mrf.mxu0
    %v1049 = vadd.f32 0.0, %v1048
    %v1050 = vpop.f32.mrf.mxu0
    %1051 = vdwg.mxu0
    %vm1052 = vcmask 31744
    %v1053 = vsel %vm1052, %v1044, -inf
    %v1054 = vsel %vm1052, %v1049, -inf
    %v1055 = vmax.f32 %v1053, %v1054
    %v1056 = vrot.slane %v1055, 4
    %v1057 = vmax.f32 %v1055, %v1056
    %v1058 = vrot.slane %v1057, 2
    %v1059 = vmax.f32 %v1057, %v1058
    %v1060 = vrot.slane %v1059, 1
    %v1061 = vmax.f32 %v1059, %v1060
    %v1062 = vsub.f32 %v1044, %v1061
    %v1063 = vsub.f32 %v1049, %v1061
    %v1064 = vmul.f32 %v1062, 1.442695
    %v1065 = vpow.pop %v1064
    %v1066 = vmul.f32 %v1063, 1.442695
    %v1067 = vpow.pop %v1066
    %v1069 = vsel %vm147, %v720, 0
    %1071 = vmatprep.subr.mxu0 0.0
    %1072 = vmatpush1.msra.mxu0 0.0
    %1073 = vmatprep.subr.mxu0 0.0
    %1074 = vmatpush1.msra.mxu0 0.0
    %1075 = vmatprep.subr.mxu0 0.0
    %1076 = vmatpush1.msra.mxu0 0.0
    %1077 = vmatprep.subr.mxu0 0.0
    %1078 = vmatpush1.msra.mxu0 0.0
    %1079 = vmatprep.subr.mxu0 0.0
    %1080 = vmatpush1.msra.mxu0 0.0
    %1081 = vmatprep.subr.mxu0 0.0
    %1082 = vmatpush1.msra.mxu0 0.0
    %1083 = vmatprep.subr.mxu0 0.0
    %1084 = vmatpush1.msra.mxu0 0.0
    %1085 = vmatprep.subr.mxu0 0.0
    %1086 = vmatpush1.msra.mxu0 0.0
    %1087 = vmatprep.subr.mxu0 0.0
    %1088 = vmatpush1.msra.mxu0 0.0
    %1089 = vmatprep.subr.mxu0 0.0
    %1090 = vmatpush1.msra.mxu0 0.0
    %1091 = vmatprep.subr.mxu0 0.0
    %1092 = vmatpush1.msra.mxu0 0.0
    %1093 = vmatprep.subr.mxu0 0.0
    %1094 = vmatpush1.msra.mxu0 0.0
    %1095 = vmatprep.subr.mxu0 0.0
    %1096 = vmatpush1.msra.mxu0 0.0
    %1097 = vmatprep.subr.mxu0 0.0
    %1098 = vmatpush1.msra.mxu0 0.0
    %1099 = vmatprep.subr.mxu0 0.0
    %1100 = vmatpush1.msra.mxu0 %v1067
    %1101 = vmatprep.subr.mxu0 0.0
    %1102 = vmatpush1.msra.mxu0 %v1065
    %1103 = vmatprep.subr.mxu0 0.0
    %1104 = vmatpush2.msra.mxu0 0.0
    %1105 = vmatprep.subr.mxu0 0.0
    %1106 = vmatpush2.msra.mxu0 0.0
    %1107 = vmatprep.subr.mxu0 0.0
    %1108 = vmatpush2.msra.mxu0 0.0
    %1109 = vmatprep.subr.mxu0 0.0
    %1110 = vmatpush2.msra.mxu0 0.0
    %1111 = vmatprep.subr.mxu0 0.0
    %1112 = vmatpush2.msra.mxu0 0.0
    %1113 = vmatprep.subr.mxu0 0.0
    %1114 = vmatpush2.msra.mxu0 0.0
    %1115 = vmatprep.subr.mxu0 0.0
    %1116 = vmatpush2.msra.mxu0 0.0
    %1117 = vmatprep.subr.mxu0 0.0
    %1118 = vmatpush2.msra.mxu0 0.0
    %1119 = vmatprep.subr.mxu0 0.0
    %1120 = vmatpush2.msra.mxu0 0.0
    %1121 = vmatprep.subr.mxu0 0.0
    %1122 = vmatpush2.msra.mxu0 0.0
    %1123 = vmatprep.subr.mxu0 0.0
    %1124 = vmatpush2.msra.mxu0 0.0
    %1125 = vmatprep.subr.mxu0 0.0
    %1126 = vmatpush2.msra.mxu0 0.0
    %1127 = vmatprep.subr.mxu0 0.0
    %1128 = vmatpush2.msra.mxu0 0.0
    %1129 = vmatprep.subr.mxu0 0.0
    %1130 = vmatpush2.msra.mxu0 0.0
    %1131 = vmatprep.subr.mxu0 0.0
    %1132 = vmatpush2.msra.mxu0 0.0
    %1133 = vmatprep.subr.mxu0 0.0
    %1134 = vmatpush2.msra.mxu0 0.0
    %1135 = vmatprep.mubr.f32.mxu0 0.0
    %1136 = vmatmul.mubr.f32.gmra.mxu0 %v1069
    %v1137 = vpop.f32.mrf.mxu0
    %v1138 = vadd.f32 0.0, %v1137
    %v1139 = vpop.f32.mrf.mxu0
    %1140 = vdwg.mxu0
    %v1142 = vsel %vm886, %v1138, 0
    %1144 = vmatprep.subr.mxu0 0.0
    %1145 = vmatpush1.msra.mxu0 0.0
    %1146 = vmatprep.subr.mxu0 0.0
    %1147 = vmatpush1.msra.mxu0 0.0
    %1148 = vmatprep.subr.mxu0 0.0
    %1149 = vmatpush1.msra.mxu0 0.0
    %1150 = vmatprep.subr.mxu0 0.0
    %1151 = vmatpush1.msra.mxu0 0.0
    %1152 = vmatprep.subr.mxu0 0.0
    %1153 = vmatpush1.msra.mxu0 0.0
    %1154 = vmatprep.subr.mxu0 0.0
    %1155 = vmatpush1.msra.mxu0 0.0
    %1156 = vmatprep.subr.mxu0 0.0
    %1157 = vmatpush1.msra.mxu0 0.0
    %1158 = vmatprep.subr.mxu0 0.0
    %1159 = vmatpush1.msra.mxu0 0.0
    %1160 = vmatprep.subr.mxu0 0.0
    %1161 = vmatpush1.msra.mxu0 0.0
    %1162 = vmatprep.subr.mxu0 0.0
    %1163 = vmatpush1.msra.mxu0 0.0
    %1164 = vmatprep.subr.mxu0 0.0
    %1165 = vmatpush1.msra.mxu0 0.0
    %1166 = vmatprep.subr.mxu0 0.0
    %1167 = vmatpush1.msra.mxu0 0.0
    %1168 = vmatprep.subr.mxu0 0.0
    %1169 = vmatpush1.msra.mxu0 0.0
    %1170 = vmatprep.subr.mxu0 0.0
    %1171 = vmatpush1.msra.mxu0 0.0
    %1172 = vmatprep.subr.mxu0 0.0
    %1173 = vmatpush1.msra.mxu0 0.0
    %1174 = vmatprep.subr.mxu0 0.0
    %1175 = vmatpush1.msra.mxu0 %v1142
    %1176 = vmatprep.subr.mxu0 0.0
    %1177 = vmatpush2.msra.mxu0 0.0
    %1178 = vmatprep.subr.mxu0 0.0
    %1179 = vmatpush2.msra.mxu0 0.0
    %1180 = vmatprep.subr.mxu0 0.0
    %1181 = vmatpush2.msra.mxu0 0.0
    %1182 = vmatprep.subr.mxu0 0.0
    %1183 = vmatpush2.msra.mxu0 0.0
    %1184 = vmatprep.subr.mxu0 0.0
    %1185 = vmatpush2.msra.mxu0 0.0
    %1186 = vmatprep.subr.mxu0 0.0
    %1187 = vmatpush2.msra.mxu0 0.0
    %1188 = vmatprep.subr.mxu0 0.0
    %1189 = vmatpush2.msra.mxu0 0.0
    %1190 = vmatprep.subr.mxu0 0.0
    %1191 = vmatpush2.msra.mxu0 0.0
    %1192 = vmatprep.subr.mxu0 0.0
    %1193 = vmatpush2.msra.mxu0 0.0
    %1194 = vmatprep.subr.mxu0 0.0
    %1195 = vmatpush2.msra.mxu0 0.0
    %1196 = vmatprep.subr.mxu0 0.0
    %1197 = vmatpush2.msra.mxu0 0.0
    %1198 = vmatprep.subr.mxu0 0.0
    %1199 = vmatpush2.msra.mxu0 0.0
    %1200 = vmatprep.subr.mxu0 0.0
    %1201 = vmatpush2.msra.mxu0 0.0
    %1202 = vmatprep.subr.mxu0 0.0
    %1203 = vmatpush2.msra.mxu0 0.0
    %1204 = vmatprep.subr.mxu0 0.0
    %1205 = vmatpush2.msra.mxu0 0.0
    %1206 = vmatprep.subr.mxu0 0.0
    %1207 = vmatpush2.msra.mxu0 0.0
    %1208 = vmatprep.mubr.f32.mxu0 0.0
    %1209 = vmatmul.mubr.f32.gmra.mxu0 %v881
    %v1210 = vpop.f32.mrf.mxu0
    %v1211 = vadd.f32 0.0, %v1210
    %v1212 = vpop.f32.mrf.mxu0
    %1213 = vmatprep.mubr.f32.mxu0 0.0
    %1214 = vmatmul.mubr.f32.gmra.mxu0 %v884
    %v1215 = vpop.f32.mrf.mxu0
    %v1216 = vadd.f32 0.0, %v1215
    %v1217 = vpop.f32.mrf.mxu0
    %1218 = vdwg.mxu0
    %v1219 = vrcp.pop %v1211
    %v1220 = vmul.f32 %v1065, %v1219
    %v1221 = vrcp.pop %v1216
    %v1222 = vmul.f32 %v1067, %v1221
    %v1223 = vld [vmem:[#allocation2 + $0x70] sm:$0xf]
    %v1225 = vsel %vm1052, %v1220, 0
    %v1228 = vsel %vm1052, %v1222, 0
    %vm1230 = vcmask 1043456
    %v1232 = vsel %vm1230, %v1223, 0
    %1234 = vmatprep.subr.mxu0 0.0
    %1235 = vmatpush1.msra.mxu0 0.0
    %1236 = vmatprep.subr.mxu0 0.0
    %1237 = vmatpush1.msra.mxu0 0.0
    %1238 = vmatprep.subr.mxu0 0.0
    %1239 = vmatpush1.msra.mxu0 0.0
    %1240 = vmatprep.subr.mxu0 0.0
    %1241 = vmatpush1.msra.mxu0 0.0
    %1242 = vmatprep.subr.mxu0 0.0
    %1243 = vmatpush1.msra.mxu0 0.0
    %1244 = vmatprep.subr.mxu0 0.0
    %1245 = vmatpush1.msra.mxu0 0.0
    %1246 = vmatprep.subr.mxu0 0.0
    %1247 = vmatpush1.msra.mxu0 0.0
    %1248 = vmatprep.subr.mxu0 0.0
    %1249 = vmatpush1.msra.mxu0 0.0
    %1250 = vmatprep.subr.mxu0 0.0
    %1251 = vmatpush1.msra.mxu0 0.0
    %1252 = vmatprep.subr.mxu0 0.0
    %1253 = vmatpush1.msra.mxu0 0.0
    %1254 = vmatprep.subr.mxu0 0.0
    %1255 = vmatpush1.msra.mxu0 0.0
    %1256 = vmatprep.subr.mxu0 0.0
    %1257 = vmatpush1.msra.mxu0 0.0
    %1258 = vmatprep.subr.mxu0 0.0
    %1259 = vmatpush1.msra.mxu0 0.0
    %1260 = vmatprep.subr.mxu0 0.0
    %1261 = vmatpush1.msra.mxu0 0.0
    %1262 = vmatprep.subr.mxu0 0.0
    %1263 = vmatpush1.msra.mxu0 0.0
    %1264 = vmatprep.subr.mxu0 0.0
    %1265 = vmatpush1.msra.mxu0 %v1232
    %1266 = vmatprep.subr.mxu0 0.0
    %1267 = vmatpush2.msra.mxu0 0.0
    %1268 = vmatprep.subr.mxu0 0.0
    %1269 = vmatpush2.msra.mxu0 0.0
    %1270 = vmatprep.subr.mxu0 0.0
    %1271 = vmatpush2.msra.mxu0 0.0
    %1272 = vmatprep.subr.mxu0 0.0
    %1273 = vmatpush2.msra.mxu0 0.0
    %1274 = vmatprep.subr.mxu0 0.0
    %1275 = vmatpush2.msra.mxu0 0.0
    %1276 = vmatprep.subr.mxu0 0.0
    %1277 = vmatpush2.msra.mxu0 0.0
    %1278 = vmatprep.subr.mxu0 0.0
    %1279 = vmatpush2.msra.mxu0 0.0
    %1280 = vmatprep.subr.mxu0 0.0
    %1281 = vmatpush2.msra.mxu0 0.0
    %1282 = vmatprep.subr.mxu0 0.0
    %1283 = vmatpush2.msra.mxu0 0.0
    %1284 = vmatprep.subr.mxu0 0.0
    %1285 = vmatpush2.msra.mxu0 0.0
    %1286 = vmatprep.subr.mxu0 0.0
    %1287 = vmatpush2.msra.mxu0 0.0
    %1288 = vmatprep.subr.mxu0 0.0
    %1289 = vmatpush2.msra.mxu0 0.0
    %1290 = vmatprep.subr.mxu0 0.0
    %1291 = vmatpush2.msra.mxu0 0.0
    %1292 = vmatprep.subr.mxu0 0.0
    %1293 = vmatpush2.msra.mxu0 0.0
    %1294 = vmatprep.subr.mxu0 0.0
    %1295 = vmatpush2.msra.mxu0 0.0
    %1296 = vmatprep.subr.mxu0 0.0
    %1297 = vmatpush2.msra.mxu0 0.0
    %1298 = vmatprep.mubr.f32.mxu0 0.0
    %1299 = vmatmul.mubr.f32.gmra.mxu0 %v1225
    %v1300 = vpop.f32.mrf.mxu0
    %v1301 = vadd.f32 0.0, %v1300
    %v1302 = vpop.f32.mrf.mxu0
    %1303 = vmatprep.mubr.f32.mxu0 0.0
    %1304 = vmatmul.mubr.f32.gmra.mxu0 %v1228
    %v1305 = vpop.f32.mrf.mxu0
    %v1306 = vadd.f32 0.0, %v1305
    %v1307 = vpop.f32.mrf.mxu0
    %1308 = vdwg.mxu0
    %1311 = vrot.lane.b32.xlu0 %v711, 96
    %v1312 = vpop.permute.xlu0 %1311
    %1313 = vrot.lane.b32.xlu0 %v716, 96
    %v1314 = vpop.permute.xlu0 %1313
    %v1317 = vmul.f32 %v1301, %v1312
    %v1318 = vmul.f32 %v1306, %v1314
    %1319 = vmatprep.subr.mxu0 0.0
    %1320 = vmatpush1.msra.mxu0 0.0
    %1321 = vmatprep.subr.mxu0 0.0
    %1322 = vmatpush1.msra.mxu0 0.0
    %1323 = vmatprep.subr.mxu0 0.0
    %1324 = vmatpush1.msra.mxu0 0.0
    %1325 = vmatprep.subr.mxu0 0.0
    %1326 = vmatpush1.msra.mxu0 0.0
    %1327 = vmatprep.subr.mxu0 0.0
    %1328 = vmatpush1.msra.mxu0 0.0
    %1329 = vmatprep.subr.mxu0 0.0
    %1330 = vmatpush1.msra.mxu0 0.0
    %1331 = vmatprep.subr.mxu0 0.0
    %1332 = vmatpush1.msra.mxu0 0.0
    %1333 = vmatprep.subr.mxu0 0.0
    %1334 = vmatpush1.msra.mxu0 0.0
    %1335 = vmatprep.subr.mxu0 0.0
    %1336 = vmatpush1.msra.mxu0 0.0
    %1337 = vmatprep.subr.mxu0 0.0
    %1338 = vmatpush1.msra.mxu0 0.0
    %1339 = vmatprep.subr.mxu0 0.0
    %1340 = vmatpush1.msra.mxu0 0.0
    %1341 = vmatprep.subr.mxu0 0.0
    %1342 = vmatpush1.msra.mxu0 0.0
    %1343 = vmatprep.subr.mxu0 0.0
    %1344 = vmatpush1.msra.mxu0 0.0
    %1345 = vmatprep.subr.mxu0 0.0
    %1346 = vmatpush1.msra.mxu0 0.0
    %1347 = vmatprep.subr.mxu0 0.0
    %1348 = vmatpush1.msra.mxu0 %v1318
    %1349 = vmatprep.subr.mxu0 0.0
    %1350 = vmatpush1.msra.mxu0 %v1317
    %1351 = vmatprep.subr.mxu0 0.0
    %1352 = vmatpush2.msra.mxu0 0.0
    %1353 = vmatprep.subr.mxu0 0.0
    %1354 = vmatpush2.msra.mxu0 0.0
    %1355 = vmatprep.subr.mxu0 0.0
    %1356 = vmatpush2.msra.mxu0 0.0
    %1357 = vmatprep.subr.mxu0 0.0
    %1358 = vmatpush2.msra.mxu0 0.0
    %1359 = vmatprep.subr.mxu0 0.0
    %1360 = vmatpush2.msra.mxu0 0.0
    %1361 = vmatprep.subr.mxu0 0.0
    %1362 = vmatpush2.msra.mxu0 0.0
    %1363 = vmatprep.subr.mxu0 0.0
    %1364 = vmatpush2.msra.mxu0 0.0
    %1365 = vmatprep.subr.mxu0 0.0
    %1366 = vmatpush2.msra.mxu0 0.0
    %1367 = vmatprep.subr.mxu0 0.0
    %1368 = vmatpush2.msra.mxu0 0.0
    %1369 = vmatprep.subr.mxu0 0.0
    %1370 = vmatpush2.msra.mxu0 0.0
    %1371 = vmatprep.subr.mxu0 0.0
    %1372 = vmatpush2.msra.mxu0 0.0
    %1373 = vmatprep.subr.mxu0 0.0
    %1374 = vmatpush2.msra.mxu0 0.0
    %1375 = vmatprep.subr.mxu0 0.0
    %1376 = vmatpush2.msra.mxu0 0.0
    %1377 = vmatprep.subr.mxu0 0.0
    %1378 = vmatpush2.msra.mxu0 0.0
    %1379 = vmatprep.subr.mxu0 0.0
    %1380 = vmatpush2.msra.mxu0 0.0
    %1381 = vmatprep.subr.mxu0 0.0
    %1382 = vmatpush2.msra.mxu0 0.0
    %1383 = vmatprep.mubr.f32.mxu0 0.0
    %1384 = vmatmul.mubr.f32.gmra.mxu0 %v1069
    %v1385 = vpop.f32.mrf.mxu0
    %v1386 = vadd.f32 0.0, %v1385
    %v1387 = vpop.f32.mrf.mxu0
    %1388 = vdwg.mxu0
    %v1389 = vld [vmem:[#allocation2 + $0x1c0] sm:$0xff]
    %v1390 = vld [vmem:[#allocation2 + $0x1c8] sm:$0xff]
    %v1391 = vld [vmem:[#allocation2 + $0x1d0] sm:$0xff]
    %v1392 = vld [vmem:[#allocation2 + $0x1d8] sm:$0xff]
    %v1394 = vsel %vm53, %v1386, 0
    %1396 = vmatprep.subr.mxu0 0.0
    %1397 = vmatpush1.msra.mxu0 0.0
    %1398 = vmatprep.subr.mxu0 0.0
    %1399 = vmatpush1.msra.mxu0 0.0
    %1400 = vmatprep.subr.mxu0 0.0
    %1401 = vmatpush1.msra.mxu0 0.0
    %1402 = vmatprep.subr.mxu0 0.0
    %1403 = vmatpush1.msra.mxu0 0.0
    %1404 = vmatprep.subr.mxu0 0.0
    %1405 = vmatpush1.msra.mxu0 0.0
    %1406 = vmatprep.subr.mxu0 0.0
    %1407 = vmatpush1.msra.mxu0 0.0
    %1408 = vmatprep.subr.mxu0 0.0
    %1409 = vmatpush1.msra.mxu0 0.0
    %1410 = vmatprep.subr.mxu0 0.0
    %1411 = vmatpush1.msra.mxu0 0.0
    %1412 = vmatprep.subr.mxu0 0.0
    %1413 = vmatpush1.msra.mxu0 0.0
    %1414 = vmatprep.subr.mxu0 0.0
    %1415 = vmatpush1.msra.mxu0 0.0
    %1416 = vmatprep.subr.mxu0 0.0
    %1417 = vmatpush1.msra.mxu0 0.0
    %1418 = vmatprep.subr.mxu0 0.0
    %1419 = vmatpush1.msra.mxu0 0.0
    %1420 = vmatprep.subr.mxu0 0.0
    %1421 = vmatpush1.msra.mxu0 %v1392
    %1422 = vmatprep.subr.mxu0 0.0
    %1423 = vmatpush1.msra.mxu0 %v1391
    %1424 = vmatprep.subr.mxu0 0.0
    %1425 = vmatpush1.msra.mxu0 %v1390
    %1426 = vmatprep.subr.mxu0 0.0
    %1427 = vmatpush1.msra.mxu0 %v1389
    %1428 = vmatprep.subr.mxu0 0.0
    %1429 = vmatpush2.msra.mxu0 0.0
    %1430 = vmatprep.subr.mxu0 0.0
    %1431 = vmatpush2.msra.mxu0 0.0
    %1432 = vmatprep.subr.mxu0 0.0
    %1433 = vmatpush2.msra.mxu0 0.0
    %1434 = vmatprep.subr.mxu0 0.0
    %1435 = vmatpush2.msra.mxu0 0.0
    %1436 = vmatprep.subr.mxu0 0.0
    %1437 = vmatpush2.msra.mxu0 0.0
    %1438 = vmatprep.subr.mxu0 0.0
    %1439 = vmatpush2.msra.mxu0 0.0
    %1440 = vmatprep.subr.mxu0 0.0
    %1441 = vmatpush2.msra.mxu0 0.0
    %1442 = vmatprep.subr.mxu0 0.0
    %1443 = vmatpush2.msra.mxu0 0.0
    %1444 = vmatprep.subr.mxu0 0.0
    %1445 = vmatpush2.msra.mxu0 0.0
    %1446 = vmatprep.subr.mxu0 0.0
    %1447 = vmatpush2.msra.mxu0 0.0
    %1448 = vmatprep.subr.mxu0 0.0
    %1449 = vmatpush2.msra.mxu0 0.0
    %1450 = vmatprep.subr.mxu0 0.0
    %1451 = vmatpush2.msra.mxu0 0.0
    %1452 = vmatprep.subr.mxu0 0.0
    %1453 = vmatpush2.msra.mxu0 0.0
    %1454 = vmatprep.subr.mxu0 0.0
    %1455 = vmatpush2.msra.mxu0 0.0
    %1456 = vmatprep.subr.mxu0 0.0
    %1457 = vmatpush2.msra.mxu0 0.0
    %1458 = vmatprep.subr.mxu0 0.0
    %1459 = vmatpush2.msra.mxu0 0.0
    %1460 = vmatprep.mubr.f32.mxu0 0.0
    %1461 = vmatmul.mubr.f32.gmra.mxu0 %v1394
    %v1462 = vpop.f32.mrf.mxu0
    %v1463 = vadd.f32 0.0, %v1462
    %v1464 = vpop.f32.mrf.mxu0
    %1465 = vdwg.mxu0
    %1466 = vmatprep.subr.mxu0 0.0
    %1467 = vmatpush1.msra.mxu0 0.0
    %1468 = vmatprep.subr.mxu0 0.0
    %1469 = vmatpush1.msra.mxu0 0.0
    %1470 = vmatprep.subr.mxu0 0.0
    %1471 = vmatpush1.msra.mxu0 0.0
    %1472 = vmatprep.subr.mxu0 0.0
    %1473 = vmatpush1.msra.mxu0 0.0
    %1474 = vmatprep.subr.mxu0 0.0
    %1475 = vmatpush1.msra.mxu0 0.0
    %1476 = vmatprep.subr.mxu0 0.0
    %1477 = vmatpush1.msra.mxu0 0.0
    %1478 = vmatprep.subr.mxu0 0.0
    %1479 = vmatpush1.msra.mxu0 0.0
    %1480 = vmatprep.subr.mxu0 0.0
    %1481 = vmatpush1.msra.mxu0 0.0
    %1482 = vmatprep.subr.mxu0 0.0
    %1483 = vmatpush1.msra.mxu0 0.0
    %1484 = vmatprep.subr.mxu0 0.0
    %1485 = vmatpush1.msra.mxu0 0.0
    %1486 = vmatprep.subr.mxu0 0.0
    %1487 = vmatpush1.msra.mxu0 0.0
    %1488 = vmatprep.subr.mxu0 0.0
    %1489 = vmatpush1.msra.mxu0 0.0
    %1490 = vmatprep.subr.mxu0 0.0
    %1491 = vmatpush1.msra.mxu0 0.0
    %1492 = vmatprep.subr.mxu0 0.0
    %1493 = vmatpush1.msra.mxu0 0.0
    %1494 = vmatprep.subr.mxu0 0.0
    %1495 = vmatpush1.msra.mxu0 %v588
    %1496 = vmatprep.subr.mxu0 0.0
    %1497 = vmatpush1.msra.mxu0 %v587
    %1498 = vmatprep.subr.mxu0 0.0
    %1499 = vmatpush2.msra.mxu0 0.0
    %1500 = vmatprep.subr.mxu0 0.0
    %1501 = vmatpush2.msra.mxu0 0.0
    %1502 = vmatprep.subr.mxu0 0.0
    %1503 = vmatpush2.msra.mxu0 0.0
    %1504 = vmatprep.subr.mxu0 0.0
    %1505 = vmatpush2.msra.mxu0 0.0
    %1506 = vmatprep.subr.mxu0 0.0
    %1507 = vmatpush2.msra.mxu0 0.0
    %1508 = vmatprep.subr.mxu0 0.0
    %1509 = vmatpush2.msra.mxu0 0.0
    %1510 = vmatprep.subr.mxu0 0.0
    %1511 = vmatpush2.msra.mxu0 0.0
    %1512 = vmatprep.subr.mxu0 0.0
    %1513 = vmatpush2.msra.mxu0 0.0
    %1514 = vmatprep.subr.mxu0 0.0
    %1515 = vmatpush2.msra.mxu0 0.0
    %1516 = vmatprep.subr.mxu0 0.0
    %1517 = vmatpush2.msra.mxu0 0.0
    %1518 = vmatprep.subr.mxu0 0.0
    %1519 = vmatpush2.msra.mxu0 0.0
    %1520 = vmatprep.subr.mxu0 0.0
    %1521 = vmatpush2.msra.mxu0 0.0
    %1522 = vmatprep.subr.mxu0 0.0
    %1523 = vmatpush2.msra.mxu0 0.0
    %1524 = vmatprep.subr.mxu0 0.0
    %1525 = vmatpush2.msra.mxu0 0.0
    %1526 = vmatprep.subr.mxu0 0.0
    %1527 = vmatpush2.msra.mxu0 0.0
    %1528 = vmatprep.subr.mxu0 0.0
    %1529 = vmatpush2.msra.mxu0 0.0
    %1530 = vmatprep.mubr.f32.mxu0 0.0
    %1531 = vmatmul.mubr.f32.gmra.mxu0 %v724
    %v1532 = vpop.f32.mrf.mxu0
    %v1533 = vadd.f32 %v1463, %v1532
    %v1534 = vpop.f32.mrf.mxu0
    %1535 = vdwg.mxu0
    %v1536 = vld [vmem:[#allocation2 + $0x1e0] sm:$0x1]
    %v1537 = vlaneseq
    %v1538 = vshrl.u32 %v1537, 7
    %v1539 = vsub.s32 0, %v1538
    %v1540 = vrot.slane %v1536, %v1539
    %v1541 = vadd.f32 %v1533, %v1540
    %vm1542 = vcmask 254976
    %v1543 = vsel %vm1542, %v1541, 0.0
    %1544 = vadd.xlane.f32.xlu0 %v1543
    %v1545 = vpop.xlane.xlu0 %1544
    %v1546 = vmul.f32 %v1545, %v596
    %v1547 = vsub.f32 %v1541, %v1546
    %v1548 = vmul.f32 %v1547, %v1547
    %v1549 = vsel %vm1542, %v1548, 0.0
    %1550 = vadd.xlane.f32.xlu0 %v1549
    %v1551 = vpop.xlane.xlu0 %1550
    %v1552 = vmul.f32 %v1551, %v596
    %v1553 = vadd.f32 %v1552, 1e-05
    %v1554 = vrsqrt.pop %v1553
    %v1555 = vmul.f32 %v1547, %v1554
    %v1556 = vlaneseq
    %v1557 = vshrl.u32 %v1556, 7
    %v1558 = vsub.s32 2, %v1557
    %v1559 = vrot.slane %v589, %v1558
    %v1560 = vmul.f32 %v1555, %v1559
    %v1561 = vlaneseq
    %v1562 = vshrl.u32 %v1561, 7
    %v1563 = vsub.s32 3, %v1562
    %v1564 = vrot.slane %v589, %v1563
    %v1565 = vadd.f32 %v1560, %v1564
    %v1566 = vld [vmem:[#allocation2 + $0x1f0] sm:$0xff]
    %v1567 = vld [vmem:[#allocation2 + $0x1f8] sm:$0xff]
    %v1568 = vld [vmem:[#allocation2 + $0x200] sm:$0xff]
    %v1569 = vld [vmem:[#allocation2 + $0x208] sm:$0xff]
    %v1570 = vld [vmem:[#allocation2 + $0x210] sm:$0x1]
    %v1571 = vlaneseq
    %v1572 = vshrl.u32 %v1571, 7
    %v1573 = vsub.s32 0, %v1572
    %v1574 = vrot.slane %v1570, %v1573
    %v1576 = vsel %vm53, %v1565, 0
    %1578 = vmatprep.subr.mxu0 0.0
    %1579 = vmatpush1.msra.mxu0 0.0
    %1580 = vmatprep.subr.mxu0 0.0
    %1581 = vmatpush1.msra.mxu0 0.0
    %1582 = vmatprep.subr.mxu0 0.0
    %1583 = vmatpush1.msra.mxu0 0.0
    %1584 = vmatprep.subr.mxu0 0.0
    %1585 = vmatpush1.msra.mxu0 0.0
    %1586 = vmatprep.subr.mxu0 0.0
    %1587 = vmatpush1.msra.mxu0 0.0
    %1588 = vmatprep.subr.mxu0 0.0
    %1589 = vmatpush1.msra.mxu0 0.0
    %1590 = vmatprep.subr.mxu0 0.0
    %1591 = vmatpush1.msra.mxu0 0.0
    %1592 = vmatprep.subr.mxu0 0.0
    %1593 = vmatpush1.msra.mxu0 0.0
    %1594 = vmatprep.subr.mxu0 0.0
    %1595 = vmatpush1.msra.mxu0 0.0
    %1596 = vmatprep.subr.mxu0 0.0
    %1597 = vmatpush1.msra.mxu0 0.0
    %1598 = vmatprep.subr.mxu0 0.0
    %1599 = vmatpush1.msra.mxu0 0.0
    %1600 = vmatprep.subr.mxu0 0.0
    %1601 = vmatpush1.msra.mxu0 0.0
    %1602 = vmatprep.subr.mxu0 0.0
    %1603 = vmatpush1.msra.mxu0 %v1569
    %1604 = vmatprep.subr.mxu0 0.0
    %1605 = vmatpush1.msra.mxu0 %v1568
    %1606 = vmatprep.subr.mxu0 0.0
    %1607 = vmatpush1.msra.mxu0 %v1567
    %1608 = vmatprep.subr.mxu0 0.0
    %1609 = vmatpush1.msra.mxu0 %v1566
    %1610 = vmatprep.subr.mxu0 0.0
    %1611 = vmatpush2.msra.mxu0 0.0
    %1612 = vmatprep.subr.mxu0 0.0
    %1613 = vmatpush2.msra.mxu0 0.0
    %1614 = vmatprep.subr.mxu0 0.0
    %1615 = vmatpush2.msra.mxu0 0.0
    %1616 = vmatprep.subr.mxu0 0.0
    %1617 = vmatpush2.msra.mxu0 0.0
    %1618 = vmatprep.subr.mxu0 0.0
    %1619 = vmatpush2.msra.mxu0 0.0
    %1620 = vmatprep.subr.mxu0 0.0
    %1621 = vmatpush2.msra.mxu0 0.0
    %1622 = vmatprep.subr.mxu0 0.0
    %1623 = vmatpush2.msra.mxu0 0.0
    %1624 = vmatprep.subr.mxu0 0.0
    %1625 = vmatpush2.msra.mxu0 0.0
    %1626 = vmatprep.subr.mxu0 0.0
    %1627 = vmatpush2.msra.mxu0 0.0
    %1628 = vmatprep.subr.mxu0 0.0
    %1629 = vmatpush2.msra.mxu0 0.0
    %1630 = vmatprep.subr.mxu0 0.0
    %1631 = vmatpush2.msra.mxu0 0.0
    %1632 = vmatprep.subr.mxu0 0.0
    %1633 = vmatpush2.msra.mxu0 0.0
    %1634 = vmatprep.subr.mxu0 0.0
    %1635 = vmatpush2.msra.mxu0 0.0
    %1636 = vmatprep.subr.mxu0 0.0
    %1637 = vmatpush2.msra.mxu0 0.0
    %1638 = vmatprep.subr.mxu0 0.0
    %1639 = vmatpush2.msra.mxu0 0.0
    %1640 = vmatprep.subr.mxu0 0.0
    %1641 = vmatpush2.msra.mxu0 0.0
    %1642 = vmatprep.mubr.f32.mxu0 0.0
    %1643 = vmatmul.mubr.f32.gmra.mxu0 %v1576
    %v1644 = vpop.f32.mrf.mxu0
    %v1645 = vadd.f32 %v1574, %v1644
    %v1646 = vpop.f32.mrf.mxu0
    %1647 = vdwg.mxu0
    %v1648 = vmax.f32 %v1645, 0.0
    %v1649 = vld [vmem:[#allocation2 + $0x218] sm:$0xff]
    %v1650 = vld [vmem:[#allocation2 + $0x220] sm:$0xff]
    %v1651 = vld [vmem:[#allocation2 + $0x228] sm:$0xff]
    %v1652 = vld [vmem:[#allocation2 + $0x230] sm:$0xff]
    %v1653 = vld [vmem:[#allocation2 + $0x238] sm:$0xff]
    %v1654 = vld [vmem:[#allocation2 + $0x240] sm:$0xff]
    %v1655 = vld [vmem:[#allocation2 + $0x248] sm:$0xff]
    %v1656 = vld [vmem:[#allocation2 + $0x250] sm:$0xff]
    %v1657 = vld [vmem:[#allocation2 + $0x258] sm:$0xff]
    %v1658 = vld [vmem:[#allocation2 + $0x260] sm:$0xff]
    %v1659 = vld [vmem:[#allocation2 + $0x268] sm:$0xff]
    %v1660 = vld [vmem:[#allocation2 + $0x270] sm:$0xff]
    %v1661 = vld [vmem:[#allocation2 + $0x278] sm:$0xff]
    %v1662 = vld [vmem:[#allocation2 + $0x280] sm:$0xff]
    %v1663 = vld [vmem:[#allocation2 + $0x288] sm:$0xff]
    %v1664 = vld [vmem:[#allocation2 + $0x290] sm:$0xff]
    %1665 = vmatprep.subr.mxu0 0.0
    %1666 = vmatpush1.msra.mxu0 %v1664
    %1667 = vmatprep.subr.mxu0 0.0
    %1668 = vmatpush1.msra.mxu0 %v1663
    %1669 = vmatprep.subr.mxu0 0.0
    %1670 = vmatpush1.msra.mxu0 %v1662
    %1671 = vmatprep.subr.mxu0 0.0
    %1672 = vmatpush1.msra.mxu0 %v1661
    %1673 = vmatprep.subr.mxu0 0.0
    %1674 = vmatpush1.msra.mxu0 %v1660
    %1675 = vmatprep.subr.mxu0 0.0
    %1676 = vmatpush1.msra.mxu0 %v1659
    %1677 = vmatprep.subr.mxu0 0.0
    %1678 = vmatpush1.msra.mxu0 %v1658
    %1679 = vmatprep.subr.mxu0 0.0
    %1680 = vmatpush1.msra.mxu0 %v1657
    %1681 = vmatprep.subr.mxu0 0.0
    %1682 = vmatpush1.msra.mxu0 %v1656
    %1683 = vmatprep.subr.mxu0 0.0
    %1684 = vmatpush1.msra.mxu0 %v1655
    %1685 = vmatprep.subr.mxu0 0.0
    %1686 = vmatpush1.msra.mxu0 %v1654
    %1687 = vmatprep.subr.mxu0 0.0
    %1688 = vmatpush1.msra.mxu0 %v1653
    %1689 = vmatprep.subr.mxu0 0.0
    %1690 = vmatpush1.msra.mxu0 %v1652
    %1691 = vmatprep.subr.mxu0 0.0
    %1692 = vmatpush1.msra.mxu0 %v1651
    %1693 = vmatprep.subr.mxu0 0.0
    %1694 = vmatpush1.msra.mxu0 %v1650
    %1695 = vmatprep.subr.mxu0 0.0
    %1696 = vmatpush1.msra.mxu0 %v1649
    %1697 = vmatprep.subr.mxu0 0.0
    %1698 = vmatpush2.msra.mxu0 0.0
    %1699 = vmatprep.subr.mxu0 0.0
    %1700 = vmatpush2.msra.mxu0 0.0
    %1701 = vmatprep.subr.mxu0 0.0
    %1702 = vmatpush2.msra.mxu0 0.0
    %1703 = vmatprep.subr.mxu0 0.0
    %1704 = vmatpush2.msra.mxu0 0.0
    %1705 = vmatprep.subr.mxu0 0.0
    %1706 = vmatpush2.msra.mxu0 0.0
    %1707 = vmatprep.subr.mxu0 0.0
    %1708 = vmatpush2.msra.mxu0 0.0
    %1709 = vmatprep.subr.mxu0 0.0
    %1710 = vmatpush2.msra.mxu0 0.0
    %1711 = vmatprep.subr.mxu0 0.0
    %1712 = vmatpush2.msra.mxu0 0.0
    %1713 = vmatprep.subr.mxu0 0.0
    %1714 = vmatpush2.msra.mxu0 0.0
    %1715 = vmatprep.subr.mxu0 0.0
    %1716 = vmatpush2.msra.mxu0 0.0
    %1717 = vmatprep.subr.mxu0 0.0
    %1718 = vmatpush2.msra.mxu0 0.0
    %1719 = vmatprep.subr.mxu0 0.0
    %1720 = vmatpush2.msra.mxu0 0.0
    %1721 = vmatprep.subr.mxu0 0.0
    %1722 = vmatpush2.msra.mxu0 0.0
    %1723 = vmatprep.subr.mxu0 0.0
    %1724 = vmatpush2.msra.mxu0 0.0
    %1725 = vmatprep.subr.mxu0 0.0
    %1726 = vmatpush2.msra.mxu0 0.0
    %1727 = vmatprep.subr.mxu0 0.0
    %1728 = vmatpush2.msra.mxu0 0.0
    %1729 = vmatprep.mubr.f32.mxu0 0.0
    %1730 = vmatmul.mubr.f32.gmra.mxu0 %v1648
    %v1731 = vpop.f32.mrf.mxu0
    %v1732 = vadd.f32 0.0, %v1731
    %v1733 = vpop.f32.mrf.mxu0
    %1734 = vdwg.mxu0
    %v1735 = vadd.f32 %v1541, %v1732
    %v1736 = vld [vmem:[#allocation2 + $0x298] sm:$0x1]
    %v1737 = vlaneseq
    %v1738 = vshrl.u32 %v1737, 7
    %v1739 = vsub.s32 0, %v1738
    %v1740 = vrot.slane %v1736, %v1739
    %v1741 = vadd.f32 %v1735, %v1740
    %v1742 = vsel %vm1542, %v1741, 0.0
    %1743 = vadd.xlane.f32.xlu0 %v1742
    %v1744 = vpop.xlane.xlu0 %1743
    %v1745 = vmul.f32 %v1744, %v596
    %v1746 = vsub.f32 %v1741, %v1745
    %v1747 = vmul.f32 %v1746, %v1746
    %v1748 = vsel %vm1542, %v1747, 0.0
    %1749 = vadd.xlane.f32.xlu0 %v1748
    %v1750 = vpop.xlane.xlu0 %1749
    %v1751 = vmul.f32 %v1750, %v596
    %v1752 = vadd.f32 %v1751, 1e-05
    %v1753 = vrsqrt.pop %v1752
    %v1754 = vmul.f32 %v1746, %v1753
    %v1755 = vlaneseq
    %v1756 = vshrl.u32 %v1755, 7
    %v1757 = vsub.s32 4, %v1756
    %v1758 = vrot.slane %v589, %v1757
    %v1759 = vmul.f32 %v1754, %v1758
    %v1760 = vlaneseq
    %v1761 = vshrl.u32 %v1760, 7
    %v1762 = vsub.s32 5, %v1761
    %v1763 = vrot.slane %v589, %v1762
    %v1764 = vadd.f32 %v1759, %v1763
    %v1765 = vld [vmem:[#allocation2 + $0x2a0] sm:$0x3]
    %v1766 = vsel %vm1542, %v1764, 0.0
    %v1767 = vrot.slane %v1766, 4
    %v1768 = vadd.f32 %v1766, %v1767
    %v1769 = vrot.slane %v1768, 2
    %v1770 = vadd.f32 %v1768, %v1769
    %v1771 = vrot.slane %v1770, 1
    %v1772 = vadd.f32 %v1770, %v1771
    %v1773 = vrcp.pop 2.0
    %v1774 = vmul.f32 %v1772, %v1773
    %v1775 = vsub.f32 %v1764, %v1774
    %v1776 = vmul.f32 %v1775, %v1775
    %v1777 = vsel %vm1542, %v1776, 0.0
    %v1778 = vrot.slane %v1777, 4
    %v1779 = vadd.f32 %v1777, %v1778
    %v1780 = vrot.slane %v1779, 2
    %v1781 = vadd.f32 %v1779, %v1780
    %v1782 = vrot.slane %v1781, 1
    %v1783 = vadd.f32 %v1781, %v1782
    %v1784 = vmul.f32 %v1783, %v1773
    %v1785 = vadd.f32 %v1784, 1e-05
    %v1786 = vrsqrt.pop %v1785
    %v1787 = vmul.f32 %v1775, %v1786
    %v1788 = vlaneseq
    %v1789 = vshrl.u32 %v1788, 7
    %v1790 = vsub.s32 0, %v1789
    %v1791 = vrot.slane %v1765, %v1790
    %v1792 = vmul.f32 %v1787, %v1791
    %v1793 = vlaneseq
    %v1794 = vshrl.u32 %v1793, 7
    %v1795 = vsub.s32 1, %v1794
    %v1796 = vrot.slane %v1765, %v1795
    %v1797 = vadd.f32 %v1792, %v1796
    %v1798 = vld [vmem:[#allocation2 + $0x2a8] sm:$0xff]
    %v1799 = vld [vmem:[#allocation2 + $0x2b0] sm:$0xff]
    %v1800 = vld [vmem:[#allocation2 + $0x2b8] sm:$0xff]
    %v1801 = vld [vmem:[#allocation2 + $0x2c0] sm:$0xff]
    %v1802 = vld [vmem:[#allocation2 + $0x2c8] sm:$0x1]
    %v1803 = vlaneseq
    %v1804 = vshrl.u32 %v1803, 7
    %v1805 = vsub.s32 0, %v1804
    %v1806 = vrot.slane %v1802, %v1805
    %v1808 = vsel %vm53, %v1797, 0
    %1810 = vmatprep.subr.mxu0 0.0
    %1811 = vmatpush1.msra.mxu0 0.0
    %1812 = vmatprep.subr.mxu0 0.0
    %1813 = vmatpush1.msra.mxu0 0.0
    %1814 = vmatprep.subr.mxu0 0.0
    %1815 = vmatpush1.msra.mxu0 0.0
    %1816 = vmatprep.subr.mxu0 0.0
    %1817 = vmatpush1.msra.mxu0 0.0
    %1818 = vmatprep.subr.mxu0 0.0
    %1819 = vmatpush1.msra.mxu0 0.0
    %1820 = vmatprep.subr.mxu0 0.0
    %1821 = vmatpush1.msra.mxu0 0.0
    %1822 = vmatprep.subr.mxu0 0.0
    %1823 = vmatpush1.msra.mxu0 0.0
    %1824 = vmatprep.subr.mxu0 0.0
    %1825 = vmatpush1.msra.mxu0 0.0
    %1826 = vmatprep.subr.mxu0 0.0
    %1827 = vmatpush1.msra.mxu0 0.0
    %1828 = vmatprep.subr.mxu0 0.0
    %1829 = vmatpush1.msra.mxu0 0.0
    %1830 = vmatprep.subr.mxu0 0.0
    %1831 = vmatpush1.msra.mxu0 0.0
    %1832 = vmatprep.subr.mxu0 0.0
    %1833 = vmatpush1.msra.mxu0 0.0
    %1834 = vmatprep.subr.mxu0 0.0
    %1835 = vmatpush1.msra.mxu0 %v1801
    %1836 = vmatprep.subr.mxu0 0.0
    %1837 = vmatpush1.msra.mxu0 %v1800
    %1838 = vmatprep.subr.mxu0 0.0
    %1839 = vmatpush1.msra.mxu0 %v1799
    %1840 = vmatprep.subr.mxu0 0.0
    %1841 = vmatpush1.msra.mxu0 %v1798
    %1842 = vmatprep.subr.mxu0 0.0
    %1843 = vmatpush2.msra.mxu0 0.0
    %1844 = vmatprep.subr.mxu0 0.0
    %1845 = vmatpush2.msra.mxu0 0.0
    %1846 = vmatprep.subr.mxu0 0.0
    %1847 = vmatpush2.msra.mxu0 0.0
    %1848 = vmatprep.subr.mxu0 0.0
    %1849 = vmatpush2.msra.mxu0 0.0
    %1850 = vmatprep.subr.mxu0 0.0
    %1851 = vmatpush2.msra.mxu0 0.0
    %1852 = vmatprep.subr.mxu0 0.0
    %1853 = vmatpush2.msra.mxu0 0.0
    %1854 = vmatprep.subr.mxu0 0.0
    %1855 = vmatpush2.msra.mxu0 0.0
    %1856 = vmatprep.subr.mxu0 0.0
    %1857 = vmatpush2.msra.mxu0 0.0
    %1858 = vmatprep.subr.mxu0 0.0
    %1859 = vmatpush2.msra.mxu0 0.0
    %1860 = vmatprep.subr.mxu0 0.0
    %1861 = vmatpush2.msra.mxu0 0.0
    %1862 = vmatprep.subr.mxu0 0.0
    %1863 = vmatpush2.msra.mxu0 0.0
    %1864 = vmatprep.subr.mxu0 0.0
    %1865 = vmatpush2.msra.mxu0 0.0
    %1866 = vmatprep.subr.mxu0 0.0
    %1867 = vmatpush2.msra.mxu0 0.0
    %1868 = vmatprep.subr.mxu0 0.0
    %1869 = vmatpush2.msra.mxu0 0.0
    %1870 = vmatprep.subr.mxu0 0.0
    %1871 = vmatpush2.msra.mxu0 0.0
    %1872 = vmatprep.subr.mxu0 0.0
    %1873 = vmatpush2.msra.mxu0 0.0
    %1874 = vmatprep.mubr.f32.mxu0 0.0
    %1875 = vmatmul.mubr.f32.gmra.mxu0 %v1808
    %v1876 = vpop.f32.mrf.mxu0
    %v1877 = vadd.f32 %v1806, %v1876
    %v1878 = vpop.f32.mrf.mxu0
    %1879 = vdwg.mxu0
    %v1880 = vmax.f32 %v1877, 0.0
    %v1881 = vld [vmem:[#allocation2 + $0x2d0] sm:$0xff]
    %v1882 = vld [vmem:[#allocation2 + $0x2d8] sm:$0xff]
    %v1883 = vld [vmem:[#allocation2 + $0x2e0] sm:$0x1]
    %v1884 = vlaneseq
    %v1885 = vshrl.u32 %v1884, 7
    %v1886 = vsub.s32 0, %v1885
    %v1887 = vrot.slane %v1883, %v1886
    %v1889 = vsel %vm147, %v1880, 0
    %1891 = vmatprep.subr.mxu0 0.0
    %1892 = vmatpush1.msra.mxu0 0.0
    %1893 = vmatprep.subr.mxu0 0.0
    %1894 = vmatpush1.msra.mxu0 0.0
    %1895 = vmatprep.subr.mxu0 0.0
    %1896 = vmatpush1.msra.mxu0 0.0
    %1897 = vmatprep.subr.mxu0 0.0
    %1898 = vmatpush1.msra.mxu0 0.0
    %1899 = vmatprep.subr.mxu0 0.0
    %1900 = vmatpush1.msra.mxu0 0.0
    %1901 = vmatprep.subr.mxu0 0.0
    %1902 = vmatpush1.msra.mxu0 0.0
    %1903 = vmatprep.subr.mxu0 0.0
    %1904 = vmatpush1.msra.mxu0 0.0
    %1905 = vmatprep.subr.mxu0 0.0
    %1906 = vmatpush1.msra.mxu0 0.0
    %1907 = vmatprep.subr.mxu0 0.0
    %1908 = vmatpush1.msra.mxu0 0.0
    %1909 = vmatprep.subr.mxu0 0.0
    %1910 = vmatpush1.msra.mxu0 0.0
    %1911 = vmatprep.subr.mxu0 0.0
    %1912 = vmatpush1.msra.mxu0 0.0
    %1913 = vmatprep.subr.mxu0 0.0
    %1914 = vmatpush1.msra.mxu0 0.0
    %1915 = vmatprep.subr.mxu0 0.0
    %1916 = vmatpush1.msra.mxu0 0.0
    %1917 = vmatprep.subr.mxu0 0.0
    %1918 = vmatpush1.msra.mxu0 0.0
    %1919 = vmatprep.subr.mxu0 0.0
    %1920 = vmatpush1.msra.mxu0 %v1882
    %1921 = vmatprep.subr.mxu0 0.0
    %1922 = vmatpush1.msra.mxu0 %v1881
    %1923 = vmatprep.subr.mxu0 0.0
    %1924 = vmatpush2.msra.mxu0 0.0
    %1925 = vmatprep.subr.mxu0 0.0
    %1926 = vmatpush2.msra.mxu0 0.0
    %1927 = vmatprep.subr.mxu0 0.0
    %1928 = vmatpush2.msra.mxu0 0.0
    %1929 = vmatprep.subr.mxu0 0.0
    %1930 = vmatpush2.msra.mxu0 0.0
    %1931 = vmatprep.subr.mxu0 0.0
    %1932 = vmatpush2.msra.mxu0 0.0
    %1933 = vmatprep.subr.mxu0 0.0
    %1934 = vmatpush2.msra.mxu0 0.0
    %1935 = vmatprep.subr.mxu0 0.0
    %1936 = vmatpush2.msra.mxu0 0.0
    %1937 = vmatprep.subr.mxu0 0.0
    %1938 = vmatpush2.msra.mxu0 0.0
    %1939 = vmatprep.subr.mxu0 0.0
    %1940 = vmatpush2.msra.mxu0 0.0
    %1941 = vmatprep.subr.mxu0 0.0
    %1942 = vmatpush2.msra.mxu0 0.0
    %1943 = vmatprep.subr.mxu0 0.0
    %1944 = vmatpush2.msra.mxu0 0.0
    %1945 = vmatprep.subr.mxu0 0.0
    %1946 = vmatpush2.msra.mxu0 0.0
    %1947 = vmatprep.subr.mxu0 0.0
    %1948 = vmatpush2.msra.mxu0 0.0
    %1949 = vmatprep.subr.mxu0 0.0
    %1950 = vmatpush2.msra.mxu0 0.0
    %1951 = vmatprep.subr.mxu0 0.0
    %1952 = vmatpush2.msra.mxu0 0.0
    %1953 = vmatprep.subr.mxu0 0.0
    %1954 = vmatpush2.msra.mxu0 0.0
    %1955 = vmatprep.mubr.f32.mxu0 0.0
    %1956 = vmatmul.mubr.f32.gmra.mxu0 %v1889
    %v1957 = vpop.f32.mrf.mxu0
    %v1958 = vadd.f32 %v1887, %v1957
    %v1959 = vpop.f32.mrf.mxu0
    %1960 = vdwg.mxu0
    %v1961 = vxor.u32 %v1958, 2147483648
    %v1962 = vmul.f32 %v1961, 1.442695
    %v1963 = vpow.pop %v1962
    %v1964 = vadd.f32 %v1963, 1.0
    %v1965 = vrcp.pop %v1964
    %v1966 = vmul.f32 1.0, %v1965
    %v1967 = vmul.f32 %v1966, 6.0
    %v1968 = vsub.f32 %v1967, 3.0
    %v1969 = vld [vmem:[#allocation2 + $0x2e8] sm:$0x3]
    %v1970 = vlaneseq
    %v1971 = vshrl.u32 %v1970, 7
    %v1972 = vsub.s32 0, %v1971
    %v1973 = vrot.slane %v1969, %v1972
    %v1974 = vmul.f32 %v1787, %v1973
    %v1975 = vlaneseq
    %v1976 = vshrl.u32 %v1975, 7
    %v1977 = vsub.s32 1, %v1976
    %v1978 = vrot.slane %v1969, %v1977
    %v1979 = vadd.f32 %v1974, %v1978
    %v1980 = vld [vmem:[#allocation2 + $0x2f0] sm:$0xff]
    %v1981 = vld [vmem:[#allocation2 + $0x2f8] sm:$0xff]
    %v1982 = vld [vmem:[#allocation2 + $0x300] sm:$0xff]
    %v1983 = vld [vmem:[#allocation2 + $0x308] sm:$0xff]
    %v1984 = vld [vmem:[#allocation2 + $0x310] sm:$0x1]
    %v1985 = vlaneseq
    %v1986 = vshrl.u32 %v1985, 7
    %v1987 = vsub.s32 0, %v1986
    %v1988 = vrot.slane %v1984, %v1987
    %v1990 = vsel %vm53, %v1979, 0
    %1992 = vmatprep.subr.mxu0 0.0
    %1993 = vmatpush1.msra.mxu0 0.0
    %1994 = vmatprep.subr.mxu0 0.0
    %1995 = vmatpush1.msra.mxu0 0.0
    %1996 = vmatprep.subr.mxu0 0.0
    %1997 = vmatpush1.msra.mxu0 0.0
    %1998 = vmatprep.subr.mxu0 0.0
    %1999 = vmatpush1.msra.mxu0 0.0
    %2000 = vmatprep.subr.mxu0 0.0
    %2001 = vmatpush1.msra.mxu0 0.0
    %2002 = vmatprep.subr.mxu0 0.0
    %2003 = vmatpush1.msra.mxu0 0.0
    %2004 = vmatprep.subr.mxu0 0.0
    %2005 = vmatpush1.msra.mxu0 0.0
    %2006 = vmatprep.subr.mxu0 0.0
    %2007 = vmatpush1.msra.mxu0 0.0
    %2008 = vmatprep.subr.mxu0 0.0
    %2009 = vmatpush1.msra.mxu0 0.0
    %2010 = vmatprep.subr.mxu0 0.0
    %2011 = vmatpush1.msra.mxu0 0.0
    %2012 = vmatprep.subr.mxu0 0.0
    %2013 = vmatpush1.msra.mxu0 0.0
    %2014 = vmatprep.subr.mxu0 0.0
    %2015 = vmatpush1.msra.mxu0 0.0
    %2016 = vmatprep.subr.mxu0 0.0
    %2017 = vmatpush1.msra.mxu0 %v1983
    %2018 = vmatprep.subr.mxu0 0.0
    %2019 = vmatpush1.msra.mxu0 %v1982
    %2020 = vmatprep.subr.mxu0 0.0
    %2021 = vmatpush1.msra.mxu0 %v1981
    %2022 = vmatprep.subr.mxu0 0.0
    %2023 = vmatpush1.msra.mxu0 %v1980
    %2024 = vmatprep.subr.mxu0 0.0
    %2025 = vmatpush2.msra.mxu0 0.0
    %2026 = vmatprep.subr.mxu0 0.0
    %2027 = vmatpush2.msra.mxu0 0.0
    %2028 = vmatprep.subr.mxu0 0.0
    %2029 = vmatpush2.msra.mxu0 0.0
    %2030 = vmatprep.subr.mxu0 0.0
    %2031 = vmatpush2.msra.mxu0 0.0
    %2032 = vmatprep.subr.mxu0 0.0
    %2033 = vmatpush2.msra.mxu0 0.0
    %2034 = vmatprep.subr.mxu0 0.0
    %2035 = vmatpush2.msra.mxu0 0.0
    %2036 = vmatprep.subr.mxu0 0.0
    %2037 = vmatpush2.msra.mxu0 0.0
    %2038 = vmatprep.subr.mxu0 0.0
    %2039 = vmatpush2.msra.mxu0 0.0
    %2040 = vmatprep.subr.mxu0 0.0
    %2041 = vmatpush2.msra.mxu0 0.0
    %2042 = vmatprep.subr.mxu0 0.0
    %2043 = vmatpush2.msra.mxu0 0.0
    %2044 = vmatprep.subr.mxu0 0.0
    %2045 = vmatpush2.msra.mxu0 0.0
    %2046 = vmatprep.subr.mxu0 0.0
    %2047 = vmatpush2.msra.mxu0 0.0
    %2048 = vmatprep.subr.mxu0 0.0
    %2049 = vmatpush2.msra.mxu0 0.0
    %2050 = vmatprep.subr.mxu0 0.0
    %2051 = vmatpush2.msra.mxu0 0.0
    %2052 = vmatprep.subr.mxu0 0.0
    %2053 = vmatpush2.msra.mxu0 0.0
    %2054 = vmatprep.subr.mxu0 0.0
    %2055 = vmatpush2.msra.mxu0 0.0
    %2056 = vmatprep.mubr.f32.mxu0 0.0
    %2057 = vmatmul.mubr.f32.gmra.mxu0 %v1990
    %v2058 = vpop.f32.mrf.mxu0
    %v2059 = vadd.f32 %v1988, %v2058
    %v2060 = vpop.f32.mrf.mxu0
    %2061 = vdwg.mxu0
    %vm2062 = vcmp.gt.f32.partialorder %v2059, 0.0
    %v2063 = vmul.f32 %v2059, 0.2
    %v2064 = vsel %vm2062, %v2059, %v2063
    %v2065 = vld [vmem:[#allocation2 + $0x318] sm:$0xff]
    %v2066 = vld [vmem:[#allocation2 + $0x320] sm:$0xff]
    %v2067 = vld [vmem:[#allocation2 + $0x328] sm:$0x1]
    %v2068 = vlaneseq
    %v2069 = vshrl.u32 %v2068, 7
    %v2070 = vsub.s32 0, %v2069
    %v2071 = vrot.slane %v2067, %v2070
    %v2073 = vsel %vm147, %v2064, 0
    %2075 = vmatprep.subr.mxu0 0.0
    %2076 = vmatpush1.msra.mxu0 0.0
    %2077 = vmatprep.subr.mxu0 0.0
    %2078 = vmatpush1.msra.mxu0 0.0
    %2079 = vmatprep.subr.mxu0 0.0
    %2080 = vmatpush1.msra.mxu0 0.0
    %2081 = vmatprep.subr.mxu0 0.0
    %2082 = vmatpush1.msra.mxu0 0.0
    %2083 = vmatprep.subr.mxu0 0.0
    %2084 = vmatpush1.msra.mxu0 0.0
    %2085 = vmatprep.subr.mxu0 0.0
    %2086 = vmatpush1.msra.mxu0 0.0
    %2087 = vmatprep.subr.mxu0 0.0
    %2088 = vmatpush1.msra.mxu0 0.0
    %2089 = vmatprep.subr.mxu0 0.0
    %2090 = vmatpush1.msra.mxu0 0.0
    %2091 = vmatprep.subr.mxu0 0.0
    %2092 = vmatpush1.msra.mxu0 0.0
    %2093 = vmatprep.subr.mxu0 0.0
    %2094 = vmatpush1.msra.mxu0 0.0
    %2095 = vmatprep.subr.mxu0 0.0
    %2096 = vmatpush1.msra.mxu0 0.0
    %2097 = vmatprep.subr.mxu0 0.0
    %2098 = vmatpush1.msra.mxu0 0.0
    %2099 = vmatprep.subr.mxu0 0.0
    %2100 = vmatpush1.msra.mxu0 0.0
    %2101 = vmatprep.subr.mxu0 0.0
    %2102 = vmatpush1.msra.mxu0 0.0
    %2103 = vmatprep.subr.mxu0 0.0
    %2104 = vmatpush1.msra.mxu0 %v2066
    %2105 = vmatprep.subr.mxu0 0.0
    %2106 = vmatpush1.msra.mxu0 %v2065
    %2107 = vmatprep.subr.mxu0 0.0
    %2108 = vmatpush2.msra.mxu0 0.0
    %2109 = vmatprep.subr.mxu0 0.0
    %2110 = vmatpush2.msra.mxu0 0.0
    %2111 = vmatprep.subr.mxu0 0.0
    %2112 = vmatpush2.msra.mxu0 0.0
    %2113 = vmatprep.subr.mxu0 0.0
    %2114 = vmatpush2.msra.mxu0 0.0
    %2115 = vmatprep.subr.mxu0 0.0
    %2116 = vmatpush2.msra.mxu0 0.0
    %2117 = vmatprep.subr.mxu0 0.0
    %2118 = vmatpush2.msra.mxu0 0.0
    %2119 = vmatprep.subr.mxu0 0.0
    %2120 = vmatpush2.msra.mxu0 0.0
    %2121 = vmatprep.subr.mxu0 0.0
    %2122 = vmatpush2.msra.mxu0 0.0
    %2123 = vmatprep.subr.mxu0 0.0
    %2124 = vmatpush2.msra.mxu0 0.0
    %2125 = vmatprep.subr.mxu0 0.0
    %2126 = vmatpush2.msra.mxu0 0.0
    %2127 = vmatprep.subr.mxu0 0.0
    %2128 = vmatpush2.msra.mxu0 0.0
    %2129 = vmatprep.subr.mxu0 0.0
    %2130 = vmatpush2.msra.mxu0 0.0
    %2131 = vmatprep.subr.mxu0 0.0
    %2132 = vmatpush2.msra.mxu0 0.0
    %2133 = vmatprep.subr.mxu0 0.0
    %2134 = vmatpush2.msra.mxu0 0.0
    %2135 = vmatprep.subr.mxu0 0.0
    %2136 = vmatpush2.msra.mxu0 0.0
    %2137 = vmatprep.subr.mxu0 0.0
    %2138 = vmatpush2.msra.mxu0 0.0
    %2139 = vmatprep.mubr.f32.mxu0 0.0
    %2140 = vmatmul.mubr.f32.gmra.mxu0 %v2073
    %v2141 = vpop.f32.mrf.mxu0
    %v2142 = vadd.f32 %v2071, %v2141
    %v2143 = vpop.f32.mrf.mxu0
    %2144 = vdwg.mxu0
    %v2145 = vtanh.pop %v2142
    %v2146 = vld [vmem:[#allocation2 + $0x330] sm:$0xff]
    %v2147 = vld [vmem:[#allocation2 + $0x338] sm:$0x1]
    %v2148 = vlaneseq
    %v2149 = vshrl.u32 %v2148, 7
    %v2150 = vsub.s32 0, %v2149
    %v2151 = vrot.slane %v2147, %v2150
    %vm2152 = vcmask 64512
    %v2154 = vsel %vm2152, %v2145, 0
    %2156 = vmatprep.subr.mxu0 0.0
    %2157 = vmatpush1.msra.mxu0 0.0
    %2158 = vmatprep.subr.mxu0 0.0
    %2159 = vmatpush1.msra.mxu0 0.0
    %2160 = vmatprep.subr.mxu0 0.0
    %2161 = vmatpush1.msra.mxu0 0.0
    %2162 = vmatprep.subr.mxu0 0.0
    %2163 = vmatpush1.msra.mxu0 0.0
    %2164 = vmatprep.subr.mxu0 0.0
    %2165 = vmatpush1.msra.mxu0 0.0
    %2166 = vmatprep.subr.mxu0 0.0
    %2167 = vmatpush1.msra.mxu0 0.0
    %2168 = vmatprep.subr.mxu0 0.0
    %2169 = vmatpush1.msra.mxu0 0.0
    %2170 = vmatprep.subr.mxu0 0.0
    %2171 = vmatpush1.msra.mxu0 0.0
    %2172 = vmatprep.subr.mxu0 0.0
    %2173 = vmatpush1.msra.mxu0 0.0
    %2174 = vmatprep.subr.mxu0 0.0
    %2175 = vmatpush1.msra.mxu0 0.0
    %2176 = vmatprep.subr.mxu0 0.0
    %2177 = vmatpush1.msra.mxu0 0.0
    %2178 = vmatprep.subr.mxu0 0.0
    %2179 = vmatpush1.msra.mxu0 0.0
    %2180 = vmatprep.subr.mxu0 0.0
    %2181 = vmatpush1.msra.mxu0 0.0
    %2182 = vmatprep.subr.mxu0 0.0
    %2183 = vmatpush1.msra.mxu0 0.0
    %2184 = vmatprep.subr.mxu0 0.0
    %2185 = vmatpush1.msra.mxu0 0.0
    %2186 = vmatprep.subr.mxu0 0.0
    %2187 = vmatpush1.msra.mxu0 %v2146
    %2188 = vmatprep.subr.mxu0 0.0
    %2189 = vmatpush2.msra.mxu0 0.0
    %2190 = vmatprep.subr.mxu0 0.0
    %2191 = vmatpush2.msra.mxu0 0.0
    %2192 = vmatprep.subr.mxu0 0.0
    %2193 = vmatpush2.msra.mxu0 0.0
    %2194 = vmatprep.subr.mxu0 0.0
    %2195 = vmatpush2.msra.mxu0 0.0
    %2196 = vmatprep.subr.mxu0 0.0
    %2197 = vmatpush2.msra.mxu0 0.0
    %2198 = vmatprep.subr.mxu0 0.0
    %2199 = vmatpush2.msra.mxu0 0.0
    %2200 = vmatprep.subr.mxu0 0.0
    %2201 = vmatpush2.msra.mxu0 0.0
    %2202 = vmatprep.subr.mxu0 0.0
    %2203 = vmatpush2.msra.mxu0 0.0
    %2204 = vmatprep.subr.mxu0 0.0
    %2205 = vmatpush2.msra.mxu0 0.0
    %2206 = vmatprep.subr.mxu0 0.0
    %2207 = vmatpush2.msra.mxu0 0.0
    %2208 = vmatprep.subr.mxu0 0.0
    %2209 = vmatpush2.msra.mxu0 0.0
    %2210 = vmatprep.subr.mxu0 0.0
    %2211 = vmatpush2.msra.mxu0 0.0
    %2212 = vmatprep.subr.mxu0 0.0
    %2213 = vmatpush2.msra.mxu0 0.0
    %2214 = vmatprep.subr.mxu0 0.0
    %2215 = vmatpush2.msra.mxu0 0.0
    %2216 = vmatprep.subr.mxu0 0.0
    %2217 = vmatpush2.msra.mxu0 0.0
    %2218 = vmatprep.subr.mxu0 0.0
    %2219 = vmatpush2.msra.mxu0 0.0
    %2220 = vmatprep.mubr.f32.mxu0 0.0
    %2221 = vmatmul.mubr.f32.gmra.mxu0 %v2154
    %v2222 = vpop.f32.mrf.mxu0
    %v2223 = vadd.f32 %v2151, %v2222
    %v2224 = vpop.f32.mrf.mxu0
    %2225 = vdwg.mxu0
    %v2226 = vxor.u32 %v2223, 2147483648
    %v2227 = vmul.f32 %v2226, 1.442695
    %v2228 = vpow.pop %v2227
    %v2229 = vadd.f32 %v2228, 1.0
    %v2230 = vrcp.pop %v2229
    %v2231 = vmul.f32 1.0, %v2230
    %v2232 = vld [vmem:[#allocation2 + $0x340] sm:$0xff]
    %v2233 = vld [vmem:[#allocation2 + $0x348] sm:$0xff]
    %v2234 = vld [vmem:[#allocation2 + $0x350] sm:$0xff]
    %v2235 = vld [vmem:[#allocation2 + $0x358] sm:$0xff]
    %v2236 = vld [vmem:[#allocation2 + $0x360] sm:$0x1]
    %v2237 = vlaneseq
    %v2238 = vshrl.u32 %v2237, 7
    %v2239 = vsub.s32 0, %v2238
    %v2240 = vrot.slane %v2236, %v2239
    %v2242 = vsel %vm53, %v1764, 0
    %2244 = vmatprep.subr.mxu0 0.0
    %2245 = vmatpush1.msra.mxu0 0.0
    %2246 = vmatprep.subr.mxu0 0.0
    %2247 = vmatpush1.msra.mxu0 0.0
    %2248 = vmatprep.subr.mxu0 0.0
    %2249 = vmatpush1.msra.mxu0 0.0
    %2250 = vmatprep.subr.mxu0 0.0
    %2251 = vmatpush1.msra.mxu0 0.0
    %2252 = vmatprep.subr.mxu0 0.0
    %2253 = vmatpush1.msra.mxu0 0.0
    %2254 = vmatprep.subr.mxu0 0.0
    %2255 = vmatpush1.msra.mxu0 0.0
    %2256 = vmatprep.subr.mxu0 0.0
    %2257 = vmatpush1.msra.mxu0 0.0
    %2258 = vmatprep.subr.mxu0 0.0
    %2259 = vmatpush1.msra.mxu0 0.0
    %2260 = vmatprep.subr.mxu0 0.0
    %2261 = vmatpush1.msra.mxu0 0.0
    %2262 = vmatprep.subr.mxu0 0.0
    %2263 = vmatpush1.msra.mxu0 0.0
    %2264 = vmatprep.subr.mxu0 0.0
    %2265 = vmatpush1.msra.mxu0 0.0
    %2266 = vmatprep.subr.mxu0 0.0
    %2267 = vmatpush1.msra.mxu0 0.0
    %2268 = vmatprep.subr.mxu0 0.0
    %2269 = vmatpush1.msra.mxu0 %v2235
    %2270 = vmatprep.subr.mxu0 0.0
    %2271 = vmatpush1.msra.mxu0 %v2234
    %2272 = vmatprep.subr.mxu0 0.0
    %2273 = vmatpush1.msra.mxu0 %v2233
    %2274 = vmatprep.subr.mxu0 0.0
    %2275 = vmatpush1.msra.mxu0 %v2232
    %2276 = vmatprep.subr.mxu0 0.0
    %2277 = vmatpush2.msra.mxu0 0.0
    %2278 = vmatprep.subr.mxu0 0.0
    %2279 = vmatpush2.msra.mxu0 0.0
    %2280 = vmatprep.subr.mxu0 0.0
    %2281 = vmatpush2.msra.mxu0 0.0
    %2282 = vmatprep.subr.mxu0 0.0
    %2283 = vmatpush2.msra.mxu0 0.0
    %2284 = vmatprep.subr.mxu0 0.0
    %2285 = vmatpush2.msra.mxu0 0.0
    %2286 = vmatprep.subr.mxu0 0.0
    %2287 = vmatpush2.msra.mxu0 0.0
    %2288 = vmatprep.subr.mxu0 0.0
    %2289 = vmatpush2.msra.mxu0 0.0
    %2290 = vmatprep.subr.mxu0 0.0
    %2291 = vmatpush2.msra.mxu0 0.0
    %2292 = vmatprep.subr.mxu0 0.0
    %2293 = vmatpush2.msra.mxu0 0.0
    %2294 = vmatprep.subr.mxu0 0.0
    %2295 = vmatpush2.msra.mxu0 0.0
    %2296 = vmatprep.subr.mxu0 0.0
    %2297 = vmatpush2.msra.mxu0 0.0
    %2298 = vmatprep.subr.mxu0 0.0
    %2299 = vmatpush2.msra.mxu0 0.0
    %2300 = vmatprep.subr.mxu0 0.0
    %2301 = vmatpush2.msra.mxu0 0.0
    %2302 = vmatprep.subr.mxu0 0.0
    %2303 = vmatpush2.msra.mxu0 0.0
    %2304 = vmatprep.subr.mxu0 0.0
    %2305 = vmatpush2.msra.mxu0 0.0
    %2306 = vmatprep.subr.mxu0 0.0
    %2307 = vmatpush2.msra.mxu0 0.0
    %2308 = vmatprep.mubr.f32.mxu0 0.0
    %2309 = vmatmul.mubr.f32.gmra.mxu0 %v2242
    %v2310 = vpop.f32.mrf.mxu0
    %v2311 = vadd.f32 %v2240, %v2310
    %v2312 = vpop.f32.mrf.mxu0
    %2313 = vdwg.mxu0
    %vm2314 = vcmp.gt.f32.partialorder %v2311, 0.0
    %v2315 = vmul.f32 %v2311, 0.2
    %v2316 = vsel %vm2314, %v2311, %v2315
    %v2317 = vld [vmem:[#allocation2 + $0x368] sm:$0xff]
    %v2318 = vld [vmem:[#allocation2 + $0x370] sm:$0xff]
    %v2319 = vld [vmem:[#allocation2 + $0x378] sm:$0xff]
    %v2320 = vld [vmem:[#allocation2 + $0x380] sm:$0x1]
    %v2321 = vlaneseq
    %v2322 = vshrl.u32 %v2321, 7
    %v2323 = vsub.s32 0, %v2322
    %v2324 = vrot.slane %v2320, %v2323
    %vm2325 = vcmask 195584
    %v2327 = vsel %vm2325, %v2316, 0
    %2329 = vmatprep.subr.mxu0 0.0
    %2330 = vmatpush1.msra.mxu0 0.0
    %2331 = vmatprep.subr.mxu0 0.0
    %2332 = vmatpush1.msra.mxu0 0.0
    %2333 = vmatprep.subr.mxu0 0.0
    %2334 = vmatpush1.msra.mxu0 0.0
    %2335 = vmatprep.subr.mxu0 0.0
    %2336 = vmatpush1.msra.mxu0 0.0
    %2337 = vmatprep.subr.mxu0 0.0
    %2338 = vmatpush1.msra.mxu0 0.0
    %2339 = vmatprep.subr.mxu0 0.0
    %2340 = vmatpush1.msra.mxu0 0.0
    %2341 = vmatprep.subr.mxu0 0.0
    %2342 = vmatpush1.msra.mxu0 0.0
    %2343 = vmatprep.subr.mxu0 0.0
    %2344 = vmatpush1.msra.mxu0 0.0
    %2345 = vmatprep.subr.mxu0 0.0
    %2346 = vmatpush1.msra.mxu0 0.0
    %2347 = vmatprep.subr.mxu0 0.0
    %2348 = vmatpush1.msra.mxu0 0.0
    %2349 = vmatprep.subr.mxu0 0.0
    %2350 = vmatpush1.msra.mxu0 0.0
    %2351 = vmatprep.subr.mxu0 0.0
    %2352 = vmatpush1.msra.mxu0 0.0
    %2353 = vmatprep.subr.mxu0 0.0
    %2354 = vmatpush1.msra.mxu0 0.0
    %2355 = vmatprep.subr.mxu0 0.0
    %2356 = vmatpush1.msra.mxu0 %v2319
    %2357 = vmatprep.subr.mxu0 0.0
    %2358 = vmatpush1.msra.mxu0 %v2318
    %2359 = vmatprep.subr.mxu0 0.0
    %2360 = vmatpush1.msra.mxu0 %v2317
    %2361 = vmatprep.subr.mxu0 0.0
    %2362 = vmatpush2.msra.mxu0 0.0
    %2363 = vmatprep.subr.mxu0 0.0
    %2364 = vmatpush2.msra.mxu0 0.0
    %2365 = vmatprep.subr.mxu0 0.0
    %2366 = vmatpush2.msra.mxu0 0.0
    %2367 = vmatprep.subr.mxu0 0.0
    %2368 = vmatpush2.msra.mxu0 0.0
    %2369 = vmatprep.subr.mxu0 0.0
    %2370 = vmatpush2.msra.mxu0 0.0
    %2371 = vmatprep.subr.mxu0 0.0
    %2372 = vmatpush2.msra.mxu0 0.0
    %2373 = vmatprep.subr.mxu0 0.0
    %2374 = vmatpush2.msra.mxu0 0.0
    %2375 = vmatprep.subr.mxu0 0.0
    %2376 = vmatpush2.msra.mxu0 0.0
    %2377 = vmatprep.subr.mxu0 0.0
    %2378 = vmatpush2.msra.mxu0 0.0
    %2379 = vmatprep.subr.mxu0 0.0
    %2380 = vmatpush2.msra.mxu0 0.0
    %2381 = vmatprep.subr.mxu0 0.0
    %2382 = vmatpush2.msra.mxu0 0.0
    %2383 = vmatprep.subr.mxu0 0.0
    %2384 = vmatpush2.msra.mxu0 0.0
    %2385 = vmatprep.subr.mxu0 0.0
    %2386 = vmatpush2.msra.mxu0 0.0
    %2387 = vmatprep.subr.mxu0 0.0
    %2388 = vmatpush2.msra.mxu0 0.0
    %2389 = vmatprep.subr.mxu0 0.0
    %2390 = vmatpush2.msra.mxu0 0.0
    %2391 = vmatprep.subr.mxu0 0.0
    %2392 = vmatpush2.msra.mxu0 0.0
    %2393 = vmatprep.mubr.f32.mxu0 0.0
    %2394 = vmatmul.mubr.f32.gmra.mxu0 %v2327
    %v2395 = vpop.f32.mrf.mxu0
    %v2396 = vadd.f32 %v2324, %v2395
    %v2397 = vpop.f32.mrf.mxu0
    %2398 = vdwg.mxu0
    %v2399 = vld [vmem:[#allocation2 + $0x388] sm:$0x3]
    %vm2400 = vcmask 123904
    %v2401 = vsel %vm2400, %v2396, 0.0
    %v2402 = vrot.slane %v2401, 4
    %v2403 = vadd.f32 %v2401, %v2402
    %v2404 = vrot.slane %v2403, 2
    %v2405 = vadd.f32 %v2403, %v2404
    %v2406 = vrot.slane %v2405, 1
    %v2407 = vadd.f32 %v2405, %v2406
    %v2408 = vmul.f32 %v2407, %v1773
    %v2409 = vsub.f32 %v2396, %v2408
    %v2410 = vmul.f32 %v2409, %v2409
    %v2411 = vsel %vm2400, %v2410, 0.0
    %v2412 = vrot.slane %v2411, 4
    %v2413 = vadd.f32 %v2411, %v2412
    %v2414 = vrot.slane %v2413, 2
    %v2415 = vadd.f32 %v2413, %v2414
    %v2416 = vrot.slane %v2415, 1
    %v2417 = vadd.f32 %v2415, %v2416
    %v2418 = vmul.f32 %v2417, %v1773
    %v2419 = vadd.f32 %v2418, 1e-05
    %v2420 = vrsqrt.pop %v2419
    %v2421 = vmul.f32 %v2409, %v2420
    %v2422 = vlaneseq
    %v2423 = vshrl.u32 %v2422, 7
    %v2424 = vsub.s32 0, %v2423
    %v2425 = vrot.slane %v2399, %v2424
    %v2426 = vmul.f32 %v2421, %v2425
    %v2427 = vlaneseq
    %v2428 = vshrl.u32 %v2427, 7
    %v2429 = vsub.s32 1, %v2428
    %v2430 = vrot.slane %v2399, %v2429
    %v2431 = vadd.f32 %v2426, %v2430
    %vm2432 = vcmp.gt.f32.partialorder %v2431, 0.0
    %v2433 = vmul.f32 %v2431, 0.2
    %v2434 = vsel %vm2432, %v2431, %v2433
    %v2435 = vld [vmem:[#allocation2 + $0x390] sm:$0xff]
    %v2436 = vld [vmem:[#allocation2 + $0x398] sm:$0xff]
    %v2437 = vld [vmem:[#allocation2 + $0x3a0] sm:$0x1]
    %v2438 = vlaneseq
    %v2439 = vshrl.u32 %v2438, 7
    %v2440 = vsub.s32 0, %v2439
    %v2441 = vrot.slane %v2437, %v2440
    %v2443 = vsel %vm147, %v2434, 0
    %2445 = vmatprep.subr.mxu0 0.0
    %2446 = vmatpush1.msra.mxu0 0.0
    %2447 = vmatprep.subr.mxu0 0.0
    %2448 = vmatpush1.msra.mxu0 0.0
    %2449 = vmatprep.subr.mxu0 0.0
    %2450 = vmatpush1.msra.mxu0 0.0
    %2451 = vmatprep.subr.mxu0 0.0
    %2452 = vmatpush1.msra.mxu0 0.0
    %2453 = vmatprep.subr.mxu0 0.0
    %2454 = vmatpush1.msra.mxu0 0.0
    %2455 = vmatprep.subr.mxu0 0.0
    %2456 = vmatpush1.msra.mxu0 0.0
    %2457 = vmatprep.subr.mxu0 0.0
    %2458 = vmatpush1.msra.mxu0 0.0
    %2459 = vmatprep.subr.mxu0 0.0
    %2460 = vmatpush1.msra.mxu0 0.0
    %2461 = vmatprep.subr.mxu0 0.0
    %2462 = vmatpush1.msra.mxu0 0.0
    %2463 = vmatprep.subr.mxu0 0.0
    %2464 = vmatpush1.msra.mxu0 0.0
    %2465 = vmatprep.subr.mxu0 0.0
    %2466 = vmatpush1.msra.mxu0 0.0
    %2467 = vmatprep.subr.mxu0 0.0
    %2468 = vmatpush1.msra.mxu0 0.0
    %2469 = vmatprep.subr.mxu0 0.0
    %2470 = vmatpush1.msra.mxu0 0.0
    %2471 = vmatprep.subr.mxu0 0.0
    %2472 = vmatpush1.msra.mxu0 0.0
    %2473 = vmatprep.subr.mxu0 0.0
    %2474 = vmatpush1.msra.mxu0 %v2436
    %2475 = vmatprep.subr.mxu0 0.0
    %2476 = vmatpush1.msra.mxu0 %v2435
    %2477 = vmatprep.subr.mxu0 0.0
    %2478 = vmatpush2.msra.mxu0 0.0
    %2479 = vmatprep.subr.mxu0 0.0
    %2480 = vmatpush2.msra.mxu0 0.0
    %2481 = vmatprep.subr.mxu0 0.0
    %2482 = vmatpush2.msra.mxu0 0.0
    %2483 = vmatprep.subr.mxu0 0.0
    %2484 = vmatpush2.msra.mxu0 0.0
    %2485 = vmatprep.subr.mxu0 0.0
    %2486 = vmatpush2.msra.mxu0 0.0
    %2487 = vmatprep.subr.mxu0 0.0
    %2488 = vmatpush2.msra.mxu0 0.0
    %2489 = vmatprep.subr.mxu0 0.0
    %2490 = vmatpush2.msra.mxu0 0.0
    %2491 = vmatprep.subr.mxu0 0.0
    %2492 = vmatpush2.msra.mxu0 0.0
    %2493 = vmatprep.subr.mxu0 0.0
    %2494 = vmatpush2.msra.mxu0 0.0
    %2495 = vmatprep.subr.mxu0 0.0
    %2496 = vmatpush2.msra.mxu0 0.0
    %2497 = vmatprep.subr.mxu0 0.0
    %2498 = vmatpush2.msra.mxu0 0.0
    %2499 = vmatprep.subr.mxu0 0.0
    %2500 = vmatpush2.msra.mxu0 0.0
    %2501 = vmatprep.subr.mxu0 0.0
    %2502 = vmatpush2.msra.mxu0 0.0
    %2503 = vmatprep.subr.mxu0 0.0
    %2504 = vmatpush2.msra.mxu0 0.0
    %2505 = vmatprep.subr.mxu0 0.0
    %2506 = vmatpush2.msra.mxu0 0.0
    %2507 = vmatprep.subr.mxu0 0.0
    %2508 = vmatpush2.msra.mxu0 0.0
    %2509 = vmatprep.mubr.f32.mxu0 0.0
    %2510 = vmatmul.mubr.f32.gmra.mxu0 %v2443
    %v2511 = vpop.f32.mrf.mxu0
    %v2512 = vadd.f32 %v2441, %v2511
    %v2513 = vpop.f32.mrf.mxu0
    %2514 = vdwg.mxu0
    %v2515 = vtanh.pop %v2512
    %2516 = vst.msk [vmem:[#allocation5] sm:$0x3] %vm1542, %v1764
    %2517 = vst.msk [vmem:[#allocation6] sm:$0x3] %vm1542, %v2515
    %vm2518 = vcmask 1024
    %2519 = vst.msk [vmem:[%s4] sm:$0x3] %vm2518, %v2231
    %2520 = vst.msk [vmem:[%s5] sm:$0x3] %vm2518, %v1968
    // Predicated region
    $region14: #{_lambda_.1} parent=1 // pred_check
      _
    $region15: #{_lambda_.1} parent=1 // pred_check_branch
      %2522 = sbr.rel (0) target = $region17
    $region16: #{_lambda_.1} parent=1 // pred_region
      %s2524 = ssub.s32 32, 32
      %2525 = vsyncadd [#allocation4], %s2524
      %s2527 = sshll.u32 [#allocation5], 4
      %s2528 = int_to_ptr.vmem [resolvable:$true] %s2527
      %2530 = dma.vmem_to_hbm [thread:$0]  %s2528, 32, %s2, [#allocation4]
    $region17: #{_lambda_.1} parent=1 // pred_fallthru
      _
    // Predicated region
    $region18: #{_lambda_.1} parent=1 // pred_check
      _
    $region19: #{_lambda_.1} parent=1 // pred_check_branch
      %2532 = sbr.rel (0) target = $region21
    $region20: #{_lambda_.1} parent=1 // pred_region
      %s2534 = ssub.s32 32, 32
      %2535 = vsyncadd [#allocation7], %s2534
      %s2537 = sshll.u32 [#allocation6], 4
      %s2538 = int_to_ptr.vmem [resolvable:$true] %s2537
      %2540 = dma.vmem_to_hbm [thread:$0]  %s2538, 32, %s3, [#allocation7]
    $region21: #{_lambda_.1} parent=1 // pred_fallthru
      _
    // Predicated region
    $region22: #{_lambda_.1} parent=1 // pred_check
      _
    $region23: #{_lambda_.1} parent=1 // pred_check_branch
      %2542 = sbr.rel (0) target = $region25
    $region24: #{_lambda_.1} parent=1 // pred_region
      _
    $region25: #{_lambda_.1} parent=1 // pred_fallthru
      _
    // Predicated region
    $region26: #{_lambda_.1} parent=1 // pred_check
      _
    $region27: #{_lambda_.1} parent=1 // pred_check_branch
      %2544 = sbr.rel (0) target = $region29
    $region28: #{_lambda_.1} parent=1 // pred_region
      _
    $region29: #{_lambda_.1} parent=1 // pred_fallthru
      _
    // Predicated region
    $region30: #{_lambda_.1} parent=1 // pred_check
      _
    $region31: #{_lambda_.1} parent=1 // pred_check_branch
      %2546 = sbr.rel (0) target = $region33
    $region32: #{_lambda_.1} parent=1 // pred_region
      %2547 = dma.done [#allocation4], 32
    $region33: #{_lambda_.1} parent=1 // pred_fallthru
      _
    // Predicated region
    $region34: #{_lambda_.1} parent=1 // pred_check
      _
    $region35: #{_lambda_.1} parent=1 // pred_check_branch
      %2549 = sbr.rel (0) target = $region37
    $region36: #{_lambda_.1} parent=1 // pred_region
      %2550 = dma.done [#allocation7], 32
    $region37: #{_lambda_.1} parent=1 // pred_fallthru
      _
    // Predicated region
    $region38: #{_lambda_.1} parent=1 // pred_check
      _
    $region39: #{_lambda_.1} parent=1 // pred_check_branch
      %2552 = sbr.rel (0) target = $region41
    $region40: #{_lambda_.1} parent=1 // pred_region
      _
    $region41: #{_lambda_.1} parent=1 // pred_fallthru
      _
    // Predicated region
    $region42: #{_lambda_.1} parent=1 // pred_check
      _
    $region43: #{_lambda_.1} parent=1 // pred_check_branch
      %2554 = sbr.rel (0) target = $region45
    $region44: #{_lambda_.1} parent=1 // pred_region
      _
    $region45: #{_lambda_.1} parent=1 // pred_fallthru
      _
    %2555 = vsyncpa [#allocation3], 1
    %2556 = vsyncpa [#allocation4], 1
    %2557 = vsyncpa [#allocation7], 1

</llo_original>
